<compile_context>
chip_gen: v6e
topology: v6e:2x2x1
jax: 0.10.0
libtpu: 0.0.40
codegen_flags: <defaults>
</compile_context>

<pallas_src>
import jax
import jax.numpy as jnp
from jax.experimental import pallas as pl
from jax.experimental.pallas import tpu as pltpu

_BF16 = 2
_F32 = 4


# --------------------------------------------------------------------------- #
# Kernel bodies
# --------------------------------------------------------------------------- #
def _ffn_kernel_resident(x_ref, w1_ref, b1_ref, w2_ref, b2_ref, o_ref):
    """Full-d_ff FFN for one M tile; W1/W2 blocks are grid-invariant (resident)."""
    # linear_1: bf16 operands, f32 MXU accumulation; bias + ReLU in f32 on the VPU.
    h = jnp.dot(x_ref[...], w1_ref[...], preferred_element_type=jnp.float32)
    h = jnp.maximum(h + b1_ref[...], 0.0)
    # dropout == identity at inference time.
    # linear_2 in one shot: no accumulator scratch, no pl.when init/finalize.
    o_ref[...] = (
        jnp.dot(h.astype(jnp.bfloat16), w2_ref[...],
                preferred_element_type=jnp.float32)
        + b2_ref[...]
    ).astype(o_ref.dtype)


def _ffn_kernel_chunked(x_ref, w1_ref, b1_ref, w2_ref, b2_ref, o_ref, acc_ref):
    """d_ff-chunked FFN: grid = (n_m, n_f); axis 1 is the innermost reduction."""
    f = pl.program_id(1)

    @pl.when(f == 0)
    def _init():
        acc_ref[...] = jnp.zeros_like(acc_ref)

    h = jnp.dot(x_ref[...], w1_ref[...], preferred_element_type=jnp.float32)
    h = jnp.maximum(h + b1_ref[...], 0.0)
    # dropout == identity at inference time.
    acc_ref[...] += jnp.dot(h.astype(jnp.bfloat16), w2_ref[...],
                            preferred_element_type=jnp.float32)

    @pl.when(f == pl.num_programs(1) - 1)
    def _finalize():
        # b2 added exactly once, after the d_ff reduction finishes.
        o_ref[...] = (acc_ref[...] + b2_ref[...]).astype(o_ref.dtype)


# --------------------------------------------------------------------------- #
# Tiling / budget helpers
# --------------------------------------------------------------------------- #
def _round_up(x, m):
    return ((x + m - 1) // m) * m


def _hw_vmem():
    """(physical VMEM bytes, is_megacore) with conservative fallbacks."""
    cap = 64 * 1024 * 1024      # conservative (v7x-sized) fallback
    megacore = False
    try:
        info = pltpu.get_tpu_info()
        cap_attr = getattr(info, "vmem_capacity_bytes", None)
        if isinstance(cap_attr, int) and cap_attr > 0:
            cap = cap_attr
    except Exception:
        pass
    try:
        kind = jax.devices()[0].device_kind.lower()
        megacore = ("v7" in kind) or ("7x" in kind)
    except Exception:
        pass
    return cap, megacore


def _vmem_need(tile_m, tile_f, dim, resident):
    """Approximate VMEM bytes for one configuration (2 buffers per streamed input)."""
    need = (
        2 * tile_m * dim * _BF16            # x tiles (double-buffered, bf16)
        + 2 * tile_m * dim * _F32           # out tiles (double-buffered, f32)
        + 2 * 2 * tile_f * dim * _BF16      # W1 + W2 blocks (double-buffered, bf16)
        + 2 * (tile_f + dim) * _F32         # bias blocks (f32)
        + tile_m * tile_f * _F32            # f32 `h` intermediate / spill headroom
    )
    if not resident:
        need += tile_m * dim * _F32         # f32 accumulator scratch
    return need


def _tile_m_options(M, want_split):
    top = max(8, _round_up(M, 8))
    opts = [t for t in (1024, 512, 256, 128, 64, 32, 16, 8) if t <= top]
    if not opts:
        opts = [8]
    if want_split and M >= 16:
        # Cap tile_m so the "parallel" M axis has >= 2 grid steps
        # (keeps both v7x TensorCores busy).
        cap = max(8, _round_up((M + 1) // 2, 8))
        capped = [t for t in opts if t <= cap]
        opts = capped if capped else [opts[-1]]
    return opts


def _select_config(M, dim, d_ff, budget, want_split):
    """Returns (tile_m, tile_f, resident)."""
    tile_m_opts = _tile_m_options(M, want_split)   # descending
    # 1) Best case: full-width d_ff, grid-invariant (VMEM-resident) weights.
    for tm in tile_m_opts:
        if _vmem_need(tm, d_ff, dim, resident=True) <= budget:
            return tm, d_ff, True
    # 2) Stream the weights in lane-aligned d_ff chunks (innermost reduction).
    tf_opts = [t for t in (4096, 2048, 1024, 512, 256, 128)
               if t < d_ff and d_ff % t == 0]
    for tf in tf_opts:
        for tm in tile_m_opts:
            if _vmem_need(tm, tf, dim, resident=False) <= budget:
                return tm, tf, False
    # 3) Last resort: smallest tiles; the compiler limit handles the rest.
    return tile_m_opts[-1], (tf_opts[-1] if tf_opts else d_ff), False


# --------------------------------------------------------------------------- #
# Wrapper
# --------------------------------------------------------------------------- #
def feed_forward(x, w1, b1, w2, b2, *, vmem_budget_bytes=None):
    """x: [batch, seq, dim] -> linear_2(relu(linear_1(x))), shape [batch, seq, dim].

    Weights are stored pre-transposed vs. PyTorch nn.Linear: w1 [dim, d_ff],
    w2 [d_ff, dim].  Matmuls run with bf16 operands and f32 accumulation.
    """
    batch, seq, dim = x.shape
    d_ff = w1.shape[1]
    M = batch * seq
    out_dtype = x.dtype

    hw_cap, megacore = _hw_vmem()
    budget = (hw_cap * 3) // 4 if vmem_budget_bytes is None else int(vmem_budget_bytes)

    tile_m, tile_f, resident = _select_config(M, dim, d_ff, budget, megacore)
    n_m = pl.cdiv(M, tile_m)
    n_f = 1 if resident else pl.cdiv(d_ff, tile_f)
    m_pad = n_m * tile_m

    # bf16 pre-cast in the wrapper: the BlockSpec DMAs actually move bf16.
    x2d = x.reshape(M, dim).astype(jnp.bfloat16)
    if m_pad != M:                      # only pad when the last tile is ragged
        x2d = jnp.pad(x2d, ((0, m_pad - M), (0, 0)))
    w1_b = w1.astype(jnp.bfloat16)
    w2_b = w2.astype(jnp.bfloat16)
    b1_2d = b1.reshape(1, d_ff).astype(jnp.float32)
    b2_2d = b2.reshape(1, dim).astype(jnp.float32)

    need = _vmem_need(tile_m, tile_f, dim, resident)
    vmem_limit = int(min(max((hw_cap * 3) // 4, 2 * need), (hw_cap * 7) // 8))

    weight_bytes = 2 * dim * d_ff * _BF16
    cost = pl.CostEstimate(
        flops=4 * M * dim * d_ff,                        # two matmuls
        transcendentals=0,
        bytes_accessed=(M * dim * _BF16                  # x read (bf16)
                        + M * dim * _F32                 # out write (f32)
                        + (1 if resident else n_m) * weight_bytes
                        + (d_ff + dim) * _F32),          # biases
    )

    if resident:
        grid_spec = pltpu.PrefetchScalarGridSpec(
            num_scalar_prefetch=0,
            grid=(n_m,),
            in_specs=[
                pl.BlockSpec((tile_m, dim), lambda m: (m, 0)),   # x row tile
                pl.BlockSpec((dim, d_ff), lambda m: (0, 0)),     # W1 (resident)
                pl.BlockSpec((1, d_ff), lambda m: (0, 0)),       # b1 (resident)
                pl.BlockSpec((d_ff, dim), lambda m: (0, 0)),     # W2 (resident)
                pl.BlockSpec((1, dim), lambda m: (0, 0)),        # b2 (resident)
            ],
            out_specs=pl.BlockSpec((tile_m, dim), lambda m: (m, 0)),
            scratch_shapes=[],
        )
        kernel = _ffn_kernel_resident
        dim_sem = ("parallel",)
    else:
        # TODO(synk): sweep pipeline_mode=pl.Buffered(3) on the W1/W2 specs if the
        #             per-chunk weight DMA is exposed at small dim.
        grid_spec = pltpu.PrefetchScalarGridSpec(
            num_scalar_prefetch=0,
            grid=(n_m, n_f),
            in_specs=[
                pl.BlockSpec((tile_m, dim), lambda m, f: (m, 0)),   # x row tile
                pl.BlockSpec((dim, tile_f), lambda m, f: (0, f)),   # W1 chunk
                pl.BlockSpec((1, tile_f), lambda m, f: (0, f)),     # b1 chunk
                pl.BlockSpec((tile_f, dim), lambda m, f: (f, 0)),   # W2 chunk
                pl.BlockSpec((1, dim), lambda m, f: (0, 0)),        # b2 (resident)
            ],
            out_specs=pl.BlockSpec((tile_m, dim), lambda m, f: (m, 0)),
            scratch_shapes=[pltpu.VMEM((tile_m, dim), jnp.float32)],
        )
        kernel = _ffn_kernel_chunked
        dim_sem = ("parallel", "arbitrary")

    out2d = pl.pallas_call(
        kernel,
        out_shape=jax.ShapeDtypeStruct((m_pad, dim), out_dtype),
        grid_spec=grid_spec,
        compiler_params=pltpu.CompilerParams(
            dimension_semantics=dim_sem,
            vmem_limit_bytes=vmem_limit,
        ),
        cost_estimate=cost,
    )(x2d, w1_b, b1_2d, w2_b, b2_2d)

    if m_pad != M:
        out2d = out2d[:M]
    return out2d.reshape(batch, seq, dim)


# --------------------------------------------------------------------------- #
# Parameter init + demo
# --------------------------------------------------------------------------- #
def _init_params(key, dim, d_ff):
    """Deterministic init matching nn.Linear default (uniform +/- 1/sqrt(fan_in))."""
    k1, k2, k3, k4 = jax.random.split(key, 4)
    bound1 = 1.0 / (dim ** 0.5)
    bound2 = 1.0 / (d_ff ** 0.5)
    # Stored pre-transposed relative to PyTorch's (out, in) convention.
    w1 = jax.random.uniform(k1, (dim, d_ff), jnp.float32, -bound1, bound1)
    b1 = jax.random.uniform(k2, (d_ff,), jnp.float32, -bound1, bound1)
    w2 = jax.random.uniform(k3, (d_ff, dim), jnp.float32, -bound2, bound2)
    b2 = jax.random.uniform(k4, (dim,), jnp.float32, -bound2, bound2)
    return w1, b1, w2, b2


if __name__ == "__main__":
    # Small but representative shapes: lane-dense dim (128), d_ff = 8*dim.
    # (Note: dim=128 half-fills the 256-wide v6e/v7x MXU; that is a model-shape
    #  constraint, not a kernel one.)
    batch, seq, dim, d_ff = 2, 256, 128, 1024

    key = jax.random.PRNGKey(0)
    kx, kp = jax.random.split(key)
    x = jax.random.normal(kx, (batch, seq, dim), jnp.float32)
    w1, b1, w2, b2 = _init_params(kp, dim, d_ff)

    # Pure-JAX f32 reference (dropout is identity at inference time).
    ref = jnp.maximum(x @ w1 + b1, 0.0) @ w2 + b2

    # 1) Default path: weights VMEM-resident (tile_f = d_ff, DMA'd once).
    out = feed_forward(x, w1, b1, w2, b2)
    jax.block_until_ready(out)
    assert out.shape == (batch, seq, dim)
    err = float(jnp.max(jnp.abs(out - ref)))
    assert jnp.allclose(out, ref, atol=3e-2, rtol=3e-2), f"resident max abs err {err}"

    # 2) Force the streamed-weights (d_ff-chunked reduction) path with a tiny
    #    tile-selection budget so both code paths are exercised.
    out_chunked = feed_forward(x, w1, b1, w2, b2, vmem_budget_bytes=768 * 1024)
    jax.block_until_ready(out_chunked)
    err_c = float(jnp.max(jnp.abs(out_chunked - ref)))
    assert jnp.allclose(out_chunked, ref, atol=3e-2, rtol=3e-2), f"chunked max abs err {err_c}"

    print("KERNEL_OK")
</pallas_src>

<mosaic_0001>
module attributes {stable_mosaic.version = 11 : i64} {
  func.func @_ffn_kernel_resident(%arg0: i32, %arg1: memref<512x128xbf16, #tpu.memory_space<vmem>>, %arg2: memref<128x1024xbf16, #tpu.memory_space<vmem>>, %arg3: memref<1x1024xf32, #tpu.memory_space<vmem>>, %arg4: memref<1024x128xbf16, #tpu.memory_space<vmem>>, %arg5: memref<1x128xf32, #tpu.memory_space<vmem>>, %arg6: memref<512x128xf32, #tpu.memory_space<vmem>>) attributes {dimension_semantics = [#tpu.dimension_semantics<parallel>], iteration_bounds = array<i64: 1>, scalar_prefetch = 0 : i64, scratch_operands = 0 : i64, tpu.core_type = #tpu.core_type<tc>, window_params = [{transform_indices = @transform_0, window_bounds = array<i64: 512, 128>}, {pipeline_mode = #tpu.pipeline_mode<synchronous>, transform_indices = @transform_1, window_bounds = array<i64: 128, 1024>}, {pipeline_mode = #tpu.pipeline_mode<synchronous>, transform_indices = @transform_2, window_bounds = array<i64: 1, 1024>}, {pipeline_mode = #tpu.pipeline_mode<synchronous>, transform_indices = @transform_3, window_bounds = array<i64: 1024, 128>}, {pipeline_mode = #tpu.pipeline_mode<synchronous>, transform_indices = @transform_4, window_bounds = array<i64: 1, 128>}, {transform_indices = @transform_5, window_bounds = array<i64: 512, 128>}]} {
    %c0 = arith.constant 0 : index
    %c0_0 = arith.constant 0 : index
    %0 = vector.load %arg1[%c0, %c0_0] : memref<512x128xbf16, #tpu.memory_space<vmem>>, vector<512x128xbf16>
    %c0_1 = arith.constant 0 : index
    %c0_2 = arith.constant 0 : index
    %1 = vector.load %arg2[%c0_1, %c0_2] : memref<128x1024xbf16, #tpu.memory_space<vmem>>, vector<128x1024xbf16>
    %cst = arith.constant dense<0.000000e+00> : vector<512x1024xf32>
    %2 = tpu.matmul %0, %1, %cst {dimension_numbers = #tpu.dot_dimension_numbers<[1], [0], [0], [1], [0, 0, 1, 1], [], []>} : vector<512x128xbf16>, vector<128x1024xbf16>, vector<512x1024xf32> -> vector<512x1024xf32>
    %c0_3 = arith.constant 0 : index
    %c0_4 = arith.constant 0 : index
    %3 = vector.load %arg3[%c0_3, %c0_4] : memref<1x1024xf32, #tpu.memory_space<vmem>>, vector<1x1024xf32>
    %4 = vector.broadcast %3 : vector<1x1024xf32> to vector<512x1024xf32>
    %5 = arith.addf %2, %4 : vector<512x1024xf32>
    %cst_5 = arith.constant 0.000000e+00 : f32
    %6 = vector.broadcast %cst_5 : f32 to vector<512x1024xf32>
    %7 = arith.maximumf %5, %6 : vector<512x1024xf32>
    %8 = arith.truncf %7 : vector<512x1024xf32> to vector<512x1024xbf16>
    %c0_6 = arith.constant 0 : index
    %c0_7 = arith.constant 0 : index
    %9 = vector.load %arg4[%c0_6, %c0_7] : memref<1024x128xbf16, #tpu.memory_space<vmem>>, vector<1024x128xbf16>
    %cst_8 = arith.constant dense<0.000000e+00> : vector<512x128xf32>
    %10 = tpu.matmul %8, %9, %cst_8 {dimension_numbers = #tpu.dot_dimension_numbers<[1], [0], [0], [1], [0, 0, 1, 1], [], []>} : vector<512x1024xbf16>, vector<1024x128xbf16>, vector<512x128xf32> -> vector<512x128xf32>
    %c0_9 = arith.constant 0 : index
    %c0_10 = arith.constant 0 : index
    %11 = vector.load %arg5[%c0_9, %c0_10] : memref<1x128xf32, #tpu.memory_space<vmem>>, vector<1x128xf32>
    %12 = vector.broadcast %11 : vector<1x128xf32> to vector<512x128xf32>
    %13 = arith.addf %10, %12 : vector<512x128xf32>
    %c0_11 = arith.constant 0 : index
    %c0_12 = arith.constant 0 : index
    %14 = vector.load %arg6[%c0_11, %c0_12] : memref<512x128xf32, #tpu.memory_space<vmem>>, vector<512x128xf32>
    tpu.vector_store %arg6[%c0_11, %c0_12], %13 {strides = array<i32>} : memref<512x128xf32, #tpu.memory_space<vmem>>, vector<512x128xf32>,
    return
  }
  func.func @transform_0(%arg0: i32) -> (i32, i32) {
    %c0_i32 = arith.constant 0 : i32
    %c0_i32_0 = arith.constant 0 : i32
    return %arg0, %c0_i32 : i32, i32
  }
  func.func @transform_1(%arg0: i32) -> (i32, i32) {
    %c0_i32 = arith.constant 0 : i32
    %c0_i32_0 = arith.constant 0 : i32
    %c0_i32_1 = arith.constant 0 : i32
    return %c0_i32, %c0_i32_0 : i32, i32
  }
  func.func @transform_2(%arg0: i32) -> (i32, i32) {
    %c0_i32 = arith.constant 0 : i32
    %c0_i32_0 = arith.constant 0 : i32
    %c0_i32_1 = arith.constant 0 : i32
    return %c0_i32, %c0_i32_0 : i32, i32
  }
  func.func @transform_3(%arg0: i32) -> (i32, i32) {
    %c0_i32 = arith.constant 0 : i32
    %c0_i32_0 = arith.constant 0 : i32
    %c0_i32_1 = arith.constant 0 : i32
    return %c0_i32, %c0_i32_0 : i32, i32
  }
  func.func @transform_4(%arg0: i32) -> (i32, i32) {
    %c0_i32 = arith.constant 0 : i32
    %c0_i32_0 = arith.constant 0 : i32
    %c0_i32_1 = arith.constant 0 : i32
    return %c0_i32, %c0_i32_0 : i32, i32
  }
  func.func @transform_5(%arg0: i32) -> (i32, i32) {
    %c0_i32 = arith.constant 0 : i32
    %c0_i32_0 = arith.constant 0 : i32
    return %arg0, %c0_i32 : i32, i32
  }
}

</mosaic_0001>

<llo_original>
// kernel: tpu_custom_call.1
$region0: #{tpu_custom_call.1}
  #allocation0 [shape = 'u32[]', space=smem, size = 0x4, offset = 0x4, fixed_abs, tag = 'smem constant byte address 0x4 - core index']
  #allocation1 [shape = 'u32[144,128]{1,0:T(1,128)}', space=vmem, size = 0x12000, scoped, tag = 'internal scratch']
  %s0 = inlined_call_operand.hbm [shape: bf16[512,128], index: 0, kind: input, shape index: {}]
  %s1 = inlined_call_operand.hbm [shape: bf16[128,1024], index: 1, kind: input, shape index: {}]
  %s2 = inlined_call_operand.hbm [shape: f32[1,1024], index: 2, kind: input, shape index: {}]
  %s3 = inlined_call_operand.hbm [shape: bf16[1024,128], index: 3, kind: input, shape index: {}]
  %s4 = inlined_call_operand.vmem [shape: f32[1,128], index: 4, kind: input, shape index: {}]
  %s5 = inlined_call_operand.hbm [shape: f32[512,128], index: 5, kind: output, shape index: {}]
  %s6 = sld [smem:[#allocation0]]
  $region46: #{tpu_custom_call.1} parent=0
    _
  %s8 = ssub.s32 1, %s6
  %s9 = scalar_select 0, %s8, %s6
  $region1: #{tpu_custom_call.1} parent=0
    #allocation2 [shape = 'u8[131072]{0}', space=vmem, size = 0x20000, scoped, tag = 'input window, operand 0, single buffered']
    #allocation3 [shape = 's32[1]{0}', space=sflag, size = 0x4, scoped, tag = 'scoped memory for tpu_custom_call.1']
    #allocation4 [shape = 's32[1]{0}', space=sflag, size = 0x4, scoped, tag = 'scoped memory for tpu_custom_call.1']
    #allocation5 [shape = 'u8[262144]{0}', space=vmem, size = 0x40000, scoped, tag = 'input window, operand 1, single buffered']
    #allocation6 [shape = 's32[1]{0}', space=sflag, size = 0x4, scoped, tag = 'scoped memory for tpu_custom_call.1']
    #allocation7 [shape = 'u8[4096]{0}', space=vmem, size = 0x1000, scoped, tag = 'input window, operand 2, single buffered']
    #allocation8 [shape = 'u8[262144]{0}', space=vmem, size = 0x40000, scoped, tag = 'input window, operand 3, single buffered']
    #allocation9 [shape = 's32[1]{0}', space=sflag, size = 0x4, scoped, tag = 'scoped memory for tpu_custom_call.1']
    #allocation10 [shape = 'u8[262144]{0}', space=vmem, size = 0x40000, scoped, tag = 'output window, operand 0, single buffered']
    %10 = vsyncpa [#allocation3], 0
    %11 = vsyncpa [#allocation6], 0
    %12 = vsyncpa [#allocation9], 0
    %13 = vsyncpa [#allocation4], 0
    // Predicated region
    $region2: #{tpu_custom_call.1} parent=1 // pred_check
      _
    $region3: #{tpu_custom_call.1} parent=1 // pred_check_branch
      %15 = sbr.rel (0) target = $region5
    $region4: #{tpu_custom_call.1} parent=1 // pred_region
      %s17 = ssub.s32 4096, 4096
      %18 = vsyncadd [#allocation3], %s17
      %s19 = sshll.u32 [#allocation2], 4
      %s20 = int_to_ptr.vmem [resolvable:$true] %s19
      %25 = dma.hbm_to_vmem [thread:$0]  %s0, 4096, %s20, [#allocation3], 64, 64, 4
    $region5: #{tpu_custom_call.1} parent=1 // pred_fallthru
      _
    // Predicated region
    $region6: #{tpu_custom_call.1} parent=1 // pred_check
      _
    $region7: #{tpu_custom_call.1} parent=1 // pred_check_branch
      %27 = sbr.rel (0) target = $region9
    $region8: #{tpu_custom_call.1} parent=1 // pred_region
      %s29 = ssub.s32 8192, 8192
      %30 = vsyncadd [#allocation6], %s29
      %s31 = sshll.u32 [#allocation5], 4
      %s32 = int_to_ptr.vmem [resolvable:$true] %s31
      %37 = dma.hbm_to_vmem [thread:$0]  %s1, 8192, %s32, [#allocation6], 512, 512, 32
    $region9: #{tpu_custom_call.1} parent=1 // pred_fallthru
      _
    // Predicated region
    $region10: #{tpu_custom_call.1} parent=1 // pred_check
      _
    $region11: #{tpu_custom_call.1} parent=1 // pred_check_branch
      %39 = sbr.rel (0) target = $region13
    $region12: #{tpu_custom_call.1} parent=1 // pred_region
      %s41 = ssub.s32 128, 128
      %42 = vsyncadd [#allocation6], %s41
      %s44 = sshll.u32 [#allocation7], 4
      %s45 = int_to_ptr.vmem [resolvable:$true] %s44
      %47 = dma.hbm_to_vmem [thread:$0]  %s2, 128, %s45, [#allocation6]
    $region13: #{tpu_custom_call.1} parent=1 // pred_fallthru
      _
    // Predicated region
    $region14: #{tpu_custom_call.1} parent=1 // pred_check
      _
    $region15: #{tpu_custom_call.1} parent=1 // pred_check_branch
      %49 = sbr.rel (0) target = $region17
    $region16: #{tpu_custom_call.1} parent=1 // pred_region
      %s51 = ssub.s32 8192, 8192
      %52 = vsyncadd [#allocation9], %s51
      %s53 = sshll.u32 [#allocation8], 4
      %s54 = int_to_ptr.vmem [resolvable:$true] %s53
      %59 = dma.hbm_to_vmem [thread:$0]  %s3, 8192, %s54, [#allocation9], 64, 64, 4
    $region17: #{tpu_custom_call.1} parent=1 // pred_fallthru
      _
    // Predicated region
    $region18: #{tpu_custom_call.1} parent=1 // pred_check
      _
    $region19: #{tpu_custom_call.1} parent=1 // pred_check_branch
      %61 = sbr.rel (0) target = $region21
    $region20: #{tpu_custom_call.1} parent=1 // pred_region
      _
    $region21: #{tpu_custom_call.1} parent=1 // pred_fallthru
      _
    // Predicated region
    $region22: #{tpu_custom_call.1} parent=1 // pred_check
      _
    $region23: #{tpu_custom_call.1} parent=1 // pred_check_branch
      %63 = sbr.rel (0) target = $region25
    $region24: #{tpu_custom_call.1} parent=1 // pred_region
      %64 = dma.done [#allocation3], 4096
    $region25: #{tpu_custom_call.1} parent=1 // pred_fallthru
      _
    // Predicated region
    $region26: #{tpu_custom_call.1} parent=1 // pred_check
      _
    $region27: #{tpu_custom_call.1} parent=1 // pred_check_branch
      %66 = sbr.rel (0) target = $region29
    $region28: #{tpu_custom_call.1} parent=1 // pred_region
      %67 = dma.done [#allocation6], 8192
    $region29: #{tpu_custom_call.1} parent=1 // pred_fallthru
      _
    // Predicated region
    $region30: #{tpu_custom_call.1} parent=1 // pred_check
      _
    $region31: #{tpu_custom_call.1} parent=1 // pred_check_branch
      %69 = sbr.rel (0) target = $region33
    $region32: #{tpu_custom_call.1} parent=1 // pred_region
      %70 = dma.done [#allocation6], 128
    $region33: #{tpu_custom_call.1} parent=1 // pred_fallthru
      _
    // Predicated region
    $region34: #{tpu_custom_call.1} parent=1 // pred_check
      _
    $region35: #{tpu_custom_call.1} parent=1 // pred_check_branch
      %72 = sbr.rel (0) target = $region37
    $region36: #{tpu_custom_call.1} parent=1 // pred_region
      %73 = dma.done [#allocation9], 8192
    $region37: #{tpu_custom_call.1} parent=1 // pred_fallthru
      _
    %v75 = vld [vmem:[#allocation2] sm:$0xf]
    %v76 = vld [vmem:[#allocation2 + $0x4] sm:$0xf]
    %v77 = vld [vmem:[#allocation2 + $0x8] sm:$0xf]
    %v78 = vld [vmem:[#allocation2 + $0xc] sm:$0xf]
    %v79 = vld [vmem:[#allocation2 + $0x10] sm:$0xf]
    %v80 = vld [vmem:[#allocation2 + $0x14] sm:$0xf]
    %v81 = vld [vmem:[#allocation2 + $0x18] sm:$0xf]
    %v82 = vld [vmem:[#allocation2 + $0x1c] sm:$0xf]
    %v83 = vld [vmem:[#allocation2 + $0x20] sm:$0xf]
    %v84 = vld [vmem:[#allocation2 + $0x24] sm:$0xf]
    %v85 = vld [vmem:[#allocation2 + $0x28] sm:$0xf]
    %v86 = vld [vmem:[#allocation2 + $0x2c] sm:$0xf]
    %v87 = vld [vmem:[#allocation2 + $0x30] sm:$0xf]
    %v88 = vld [vmem:[#allocation2 + $0x34] sm:$0xf]
    %v89 = vld [vmem:[#allocation2 + $0x38] sm:$0xf]
    %v90 = vld [vmem:[#allocation2 + $0x3c] sm:$0xf]
    %v91 = vld [vmem:[#allocation2 + $0x40] sm:$0xf]
    %v92 = vld [vmem:[#allocation2 + $0x44] sm:$0xf]
    %v93 = vld [vmem:[#allocation2 + $0x48] sm:$0xf]
    %v94 = vld [vmem:[#allocation2 + $0x4c] sm:$0xf]
    %v95 = vld [vmem:[#allocation2 + $0x50] sm:$0xf]
    %v96 = vld [vmem:[#allocation2 + $0x54] sm:$0xf]
    %v97 = vld [vmem:[#allocation2 + $0x58] sm:$0xf]
    %v98 = vld [vmem:[#allocation2 + $0x5c] sm:$0xf]
    %v99 = vld [vmem:[#allocation2 + $0x60] sm:$0xf]
    %v100 = vld [vmem:[#allocation2 + $0x64] sm:$0xf]
    %v101 = vld [vmem:[#allocation2 + $0x68] sm:$0xf]
    %v102 = vld [vmem:[#allocation2 + $0x6c] sm:$0xf]
    %v103 = vld [vmem:[#allocation2 + $0x70] sm:$0xf]
    %v104 = vld [vmem:[#allocation2 + $0x74] sm:$0xf]
    %v105 = vld [vmem:[#allocation2 + $0x78] sm:$0xf]
    %v106 = vld [vmem:[#allocation2 + $0x7c] sm:$0xf]
    %v107 = vld [vmem:[#allocation2 + $0x80] sm:$0xf]
    %v108 = vld [vmem:[#allocation2 + $0x84] sm:$0xf]
    %v109 = vld [vmem:[#allocation2 + $0x88] sm:$0xf]
    %v110 = vld [vmem:[#allocation2 + $0x8c] sm:$0xf]
    %v111 = vld [vmem:[#allocation2 + $0x90] sm:$0xf]
    %v112 = vld [vmem:[#allocation2 + $0x94] sm:$0xf]
    %v113 = vld [vmem:[#allocation2 + $0x98] sm:$0xf]
    %v114 = vld [vmem:[#allocation2 + $0x9c] sm:$0xf]
    %v115 = vld [vmem:[#allocation2 + $0xa0] sm:$0xf]
    %v116 = vld [vmem:[#allocation2 + $0xa4] sm:$0xf]
    %v117 = vld [vmem:[#allocation2 + $0xa8] sm:$0xf]
    %v118 = vld [vmem:[#allocation2 + $0xac] sm:$0xf]
    %v119 = vld [vmem:[#allocation2 + $0xb0] sm:$0xf]
    %v120 = vld [vmem:[#allocation2 + $0xb4] sm:$0xf]
    %v121 = vld [vmem:[#allocation2 + $0xb8] sm:$0xf]
    %v122 = vld [vmem:[#allocation2 + $0xbc] sm:$0xf]
    %v123 = vld [vmem:[#allocation2 + $0xc0] sm:$0xf]
    %v124 = vld [vmem:[#allocation2 + $0xc4] sm:$0xf]
    %v125 = vld [vmem:[#allocation2 + $0xc8] sm:$0xf]
    %v126 = vld [vmem:[#allocation2 + $0xcc] sm:$0xf]
    %v127 = vld [vmem:[#allocation2 + $0xd0] sm:$0xf]
    %v128 = vld [vmem:[#allocation2 + $0xd4] sm:$0xf]
    %v129 = vld [vmem:[#allocation2 + $0xd8] sm:$0xf]
    %v130 = vld [vmem:[#allocation2 + $0xdc] sm:$0xf]
    %v131 = vld [vmem:[#allocation2 + $0xe0] sm:$0xf]
    %v132 = vld [vmem:[#allocation2 + $0xe4] sm:$0xf]
    %v133 = vld [vmem:[#allocation2 + $0xe8] sm:$0xf]
    %v134 = vld [vmem:[#allocation2 + $0xec] sm:$0xf]
    %v135 = vld [vmem:[#allocation2 + $0xf0] sm:$0xf]
    %v136 = vld [vmem:[#allocation2 + $0xf4] sm:$0xf]
    %v137 = vld [vmem:[#allocation2 + $0xf8] sm:$0xf]
    %v138 = vld [vmem:[#allocation2 + $0xfc] sm:$0xf]
    %v139 = vld [vmem:[#allocation5] sm:$0xff]
    %v140 = vld [vmem:[#allocation5 + $0x8] sm:$0xff]
    %v141 = vld [vmem:[#allocation5 + $0x10] sm:$0xff]
    %v142 = vld [vmem:[#allocation5 + $0x18] sm:$0xff]
    %v143 = vld [vmem:[#allocation5 + $0x20] sm:$0xff]
    %v144 = vld [vmem:[#allocation5 + $0x28] sm:$0xff]
    %v145 = vld [vmem:[#allocation5 + $0x30] sm:$0xff]
    %v146 = vld [vmem:[#allocation5 + $0x38] sm:$0xff]
    %v147 = vld [vmem:[#allocation5 + $0x40] sm:$0xff]
    %v148 = vld [vmem:[#allocation5 + $0x48] sm:$0xff]
    %v149 = vld [vmem:[#allocation5 + $0x50] sm:$0xff]
    %v150 = vld [vmem:[#allocation5 + $0x58] sm:$0xff]
    %v151 = vld [vmem:[#allocation5 + $0x60] sm:$0xff]
    %v152 = vld [vmem:[#allocation5 + $0x68] sm:$0xff]
    %v153 = vld [vmem:[#allocation5 + $0x70] sm:$0xff]
    %v154 = vld [vmem:[#allocation5 + $0x78] sm:$0xff]
    %v155 = vld [vmem:[#allocation5 + $0x80] sm:$0xff]
    %v156 = vld [vmem:[#allocation5 + $0x88] sm:$0xff]
    %v157 = vld [vmem:[#allocation5 + $0x90] sm:$0xff]
    %v158 = vld [vmem:[#allocation5 + $0x98] sm:$0xff]
    %v159 = vld [vmem:[#allocation5 + $0xa0] sm:$0xff]
    %v160 = vld [vmem:[#allocation5 + $0xa8] sm:$0xff]
    %v161 = vld [vmem:[#allocation5 + $0xb0] sm:$0xff]
    %v162 = vld [vmem:[#allocation5 + $0xb8] sm:$0xff]
    %v163 = vld [vmem:[#allocation5 + $0xc0] sm:$0xff]
    %v164 = vld [vmem:[#allocation5 + $0xc8] sm:$0xff]
    %v165 = vld [vmem:[#allocation5 + $0xd0] sm:$0xff]
    %v166 = vld [vmem:[#allocation5 + $0xd8] sm:$0xff]
    %v167 = vld [vmem:[#allocation5 + $0xe0] sm:$0xff]
    %v168 = vld [vmem:[#allocation5 + $0xe8] sm:$0xff]
    %v169 = vld [vmem:[#allocation5 + $0xf0] sm:$0xff]
    %v170 = vld [vmem:[#allocation5 + $0xf8] sm:$0xff]
    %v171 = vld [vmem:[#allocation5 + $0x100] sm:$0xff]
    %v172 = vld [vmem:[#allocation5 + $0x108] sm:$0xff]
    %v173 = vld [vmem:[#allocation5 + $0x110] sm:$0xff]
    %v174 = vld [vmem:[#allocation5 + $0x118] sm:$0xff]
    %v175 = vld [vmem:[#allocation5 + $0x120] sm:$0xff]
    %v176 = vld [vmem:[#allocation5 + $0x128] sm:$0xff]
    %v177 = vld [vmem:[#allocation5 + $0x130] sm:$0xff]
    %v178 = vld [vmem:[#allocation5 + $0x138] sm:$0xff]
    %v179 = vld [vmem:[#allocation5 + $0x140] sm:$0xff]
    %v180 = vld [vmem:[#allocation5 + $0x148] sm:$0xff]
    %v181 = vld [vmem:[#allocation5 + $0x150] sm:$0xff]
    %v182 = vld [vmem:[#allocation5 + $0x158] sm:$0xff]
    %v183 = vld [vmem:[#allocation5 + $0x160] sm:$0xff]
    %v184 = vld [vmem:[#allocation5 + $0x168] sm:$0xff]
    %v185 = vld [vmem:[#allocation5 + $0x170] sm:$0xff]
    %v186 = vld [vmem:[#allocation5 + $0x178] sm:$0xff]
    %v187 = vld [vmem:[#allocation5 + $0x180] sm:$0xff]
    %v188 = vld [vmem:[#allocation5 + $0x188] sm:$0xff]
    %v189 = vld [vmem:[#allocation5 + $0x190] sm:$0xff]
    %v190 = vld [vmem:[#allocation5 + $0x198] sm:$0xff]
    %v191 = vld [vmem:[#allocation5 + $0x1a0] sm:$0xff]
    %v192 = vld [vmem:[#allocation5 + $0x1a8] sm:$0xff]
    %v193 = vld [vmem:[#allocation5 + $0x1b0] sm:$0xff]
    %v194 = vld [vmem:[#allocation5 + $0x1b8] sm:$0xff]
    %v195 = vld [vmem:[#allocation5 + $0x1c0] sm:$0xff]
    %v196 = vld [vmem:[#allocation5 + $0x1c8] sm:$0xff]
    %v197 = vld [vmem:[#allocation5 + $0x1d0] sm:$0xff]
    %v198 = vld [vmem:[#allocation5 + $0x1d8] sm:$0xff]
    %v199 = vld [vmem:[#allocation5 + $0x1e0] sm:$0xff]
    %v200 = vld [vmem:[#allocation5 + $0x1e8] sm:$0xff]
    %v201 = vld [vmem:[#allocation5 + $0x1f0] sm:$0xff]
    %v202 = vld [vmem:[#allocation5 + $0x1f8] sm:$0xff]
    %v203 = vld [vmem:[#allocation7] sm:$0xff]
    %v205 = vlaneseq
    %v206 = vshrl.u32 %v205, 7
    %v207 = vsub.s32 0, %v206
    %v208 = vrot.slane %v203, %v207
    %v209 = vlaneseq
    %v210 = vshrl.u32 %v209, 7
    %v211 = vsub.s32 1, %v210
    %v212 = vrot.slane %v203, %v211
    %v213 = vlaneseq
    %v214 = vshrl.u32 %v213, 7
    %v215 = vsub.s32 2, %v214
    %v216 = vrot.slane %v203, %v215
    %v217 = vlaneseq
    %v218 = vshrl.u32 %v217, 7
    %v219 = vsub.s32 3, %v218
    %v220 = vrot.slane %v203, %v219
    %v221 = vlaneseq
    %v222 = vshrl.u32 %v221, 7
    %v223 = vsub.s32 4, %v222
    %v224 = vrot.slane %v203, %v223
    %v225 = vlaneseq
    %v226 = vshrl.u32 %v225, 7
    %v227 = vsub.s32 5, %v226
    %v228 = vrot.slane %v203, %v227
    %v229 = vlaneseq
    %v230 = vshrl.u32 %v229, 7
    %v231 = vsub.s32 6, %v230
    %v232 = vrot.slane %v203, %v231
    %v233 = vlaneseq
    %v234 = vshrl.u32 %v233, 7
    %v235 = vsub.s32 7, %v234
    %v236 = vrot.slane %v203, %v235
    %v309 = vunpack.c.l.b16 %v75
    %v310 = vunpack.c.l.b16 %v76
    %v311 = vunpack.c.l.b16 %v77
    %v312 = vunpack.c.l.b16 %v78
    %v313 = vunpack.c.l.b16 %v79
    %v314 = vunpack.c.l.b16 %v80
    %v315 = vunpack.c.l.b16 %v81
    %v316 = vunpack.c.l.b16 %v82
    %v317 = vunpack.c.l.b16 %v83
    %v318 = vunpack.c.l.b16 %v84
    %v319 = vunpack.c.l.b16 %v85
    %v320 = vunpack.c.l.b16 %v86
    %v321 = vunpack.c.l.b16 %v87
    %v322 = vunpack.c.l.b16 %v88
    %v323 = vunpack.c.l.b16 %v89
    %v324 = vunpack.c.l.b16 %v90
    %v325 = vunpack.c.l.b16 %v91
    %v326 = vunpack.c.l.b16 %v92
    %v327 = vunpack.c.l.b16 %v93
    %v328 = vunpack.c.l.b16 %v94
    %v329 = vunpack.c.l.b16 %v95
    %v330 = vunpack.c.l.b16 %v96
    %v331 = vunpack.c.l.b16 %v97
    %v332 = vunpack.c.l.b16 %v98
    %v333 = vunpack.c.l.b16 %v99
    %v334 = vunpack.c.l.b16 %v100
    %v335 = vunpack.c.l.b16 %v101
    %v336 = vunpack.c.l.b16 %v102
    %v337 = vunpack.c.l.b16 %v103
    %v338 = vunpack.c.l.b16 %v104
    %v339 = vunpack.c.l.b16 %v105
    %v340 = vunpack.c.l.b16 %v106
    %v341 = vunpack.c.l.b16 %v107
    %v342 = vunpack.c.l.b16 %v108
    %v343 = vunpack.c.l.b16 %v109
    %v344 = vunpack.c.l.b16 %v110
    %v345 = vunpack.c.l.b16 %v111
    %v346 = vunpack.c.l.b16 %v112
    %v347 = vunpack.c.l.b16 %v113
    %v348 = vunpack.c.l.b16 %v114
    %v349 = vunpack.c.l.b16 %v115
    %v350 = vunpack.c.l.b16 %v116
    %v351 = vunpack.c.l.b16 %v117
    %v352 = vunpack.c.l.b16 %v118
    %v353 = vunpack.c.l.b16 %v119
    %v354 = vunpack.c.l.b16 %v120
    %v355 = vunpack.c.l.b16 %v121
    %v356 = vunpack.c.l.b16 %v122
    %v357 = vunpack.c.l.b16 %v123
    %v358 = vunpack.c.l.b16 %v124
    %v359 = vunpack.c.l.b16 %v125
    %v360 = vunpack.c.l.b16 %v126
    %v361 = vunpack.c.l.b16 %v127
    %v362 = vunpack.c.l.b16 %v128
    %v363 = vunpack.c.l.b16 %v129
    %v364 = vunpack.c.l.b16 %v130
    %v365 = vunpack.c.l.b16 %v131
    %v366 = vunpack.c.l.b16 %v132
    %v367 = vunpack.c.l.b16 %v133
    %v368 = vunpack.c.l.b16 %v134
    %v369 = vunpack.c.l.b16 %v135
    %v370 = vunpack.c.l.b16 %v136
    %v371 = vunpack.c.l.b16 %v137
    %v372 = vunpack.c.l.b16 %v138
    %v373 = vpack.c.b16 %v310, %v309
    %v374 = vpack.c.b16 %v312, %v311
    %v375 = vpack.c.b16 %v314, %v313
    %v376 = vpack.c.b16 %v316, %v315
    %v377 = vpack.c.b16 %v318, %v317
    %v378 = vpack.c.b16 %v320, %v319
    %v379 = vpack.c.b16 %v322, %v321
    %v380 = vpack.c.b16 %v324, %v323
    %v381 = vpack.c.b16 %v326, %v325
    %v382 = vpack.c.b16 %v328, %v327
    %v383 = vpack.c.b16 %v330, %v329
    %v384 = vpack.c.b16 %v332, %v331
    %v385 = vpack.c.b16 %v334, %v333
    %v386 = vpack.c.b16 %v336, %v335
    %v387 = vpack.c.b16 %v338, %v337
    %v388 = vpack.c.b16 %v340, %v339
    %v389 = vpack.c.b16 %v342, %v341
    %v390 = vpack.c.b16 %v344, %v343
    %v391 = vpack.c.b16 %v346, %v345
    %v392 = vpack.c.b16 %v348, %v347
    %v393 = vpack.c.b16 %v350, %v349
    %v394 = vpack.c.b16 %v352, %v351
    %v395 = vpack.c.b16 %v354, %v353
    %v396 = vpack.c.b16 %v356, %v355
    %v397 = vpack.c.b16 %v358, %v357
    %v398 = vpack.c.b16 %v360, %v359
    %v399 = vpack.c.b16 %v362, %v361
    %v400 = vpack.c.b16 %v364, %v363
    %v401 = vpack.c.b16 %v366, %v365
    %v402 = vpack.c.b16 %v368, %v367
    %v403 = vpack.c.b16 %v370, %v369
    %v404 = vpack.c.b16 %v372, %v371
    %v501 = vunpack.c.l.b16 %v139
    %v502 = vunpack.c.h.b16 %v139
    %v503 = vunpack.c.l.b16 %v140
    %v504 = vunpack.c.h.b16 %v140
    %v505 = vunpack.c.l.b16 %v141
    %v506 = vunpack.c.h.b16 %v141
    %v507 = vunpack.c.l.b16 %v142
    %v508 = vunpack.c.h.b16 %v142
    %v509 = vunpack.c.l.b16 %v143
    %v510 = vunpack.c.h.b16 %v143
    %v511 = vunpack.c.l.b16 %v144
    %v512 = vunpack.c.h.b16 %v144
    %v513 = vunpack.c.l.b16 %v145
    %v514 = vunpack.c.h.b16 %v145
    %v515 = vunpack.c.l.b16 %v146
    %v516 = vunpack.c.h.b16 %v146
    %v517 = vunpack.c.l.b16 %v147
    %v518 = vunpack.c.h.b16 %v147
    %v519 = vunpack.c.l.b16 %v148
    %v520 = vunpack.c.h.b16 %v148
    %v521 = vunpack.c.l.b16 %v149
    %v522 = vunpack.c.h.b16 %v149
    %v523 = vunpack.c.l.b16 %v150
    %v524 = vunpack.c.h.b16 %v150
    %v525 = vunpack.c.l.b16 %v151
    %v526 = vunpack.c.h.b16 %v151
    %v527 = vunpack.c.l.b16 %v152
    %v528 = vunpack.c.h.b16 %v152
    %v529 = vunpack.c.l.b16 %v153
    %v530 = vunpack.c.h.b16 %v153
    %v531 = vunpack.c.l.b16 %v154
    %v532 = vunpack.c.h.b16 %v154
    %v533 = vunpack.c.l.b16 %v155
    %v534 = vunpack.c.h.b16 %v155
    %v535 = vunpack.c.l.b16 %v156
    %v536 = vunpack.c.h.b16 %v156
    %v537 = vunpack.c.l.b16 %v157
    %v538 = vunpack.c.h.b16 %v157
    %v539 = vunpack.c.l.b16 %v158
    %v540 = vunpack.c.h.b16 %v158
    %v541 = vunpack.c.l.b16 %v159
    %v542 = vunpack.c.h.b16 %v159
    %v543 = vunpack.c.l.b16 %v160
    %v544 = vunpack.c.h.b16 %v160
    %v545 = vunpack.c.l.b16 %v161
    %v546 = vunpack.c.h.b16 %v161
    %v547 = vunpack.c.l.b16 %v162
    %v548 = vunpack.c.h.b16 %v162
    %v549 = vunpack.c.l.b16 %v163
    %v550 = vunpack.c.h.b16 %v163
    %v551 = vunpack.c.l.b16 %v164
    %v552 = vunpack.c.h.b16 %v164
    %v553 = vunpack.c.l.b16 %v165
    %v554 = vunpack.c.h.b16 %v165
    %v555 = vunpack.c.l.b16 %v166
    %v556 = vunpack.c.h.b16 %v166
    %v557 = vunpack.c.l.b16 %v167
    %v558 = vunpack.c.h.b16 %v167
    %v559 = vunpack.c.l.b16 %v168
    %v560 = vunpack.c.h.b16 %v168
    %v561 = vunpack.c.l.b16 %v169
    %v562 = vunpack.c.h.b16 %v169
    %v563 = vunpack.c.l.b16 %v170
    %v564 = vunpack.c.h.b16 %v170
    %v565 = vunpack.c.l.b16 %v171
    %v566 = vunpack.c.h.b16 %v171
    %v567 = vunpack.c.l.b16 %v172
    %v568 = vunpack.c.h.b16 %v172
    %v569 = vunpack.c.l.b16 %v173
    %v570 = vunpack.c.h.b16 %v173
    %v571 = vunpack.c.l.b16 %v174
    %v572 = vunpack.c.h.b16 %v174
    %v573 = vunpack.c.l.b16 %v175
    %v574 = vunpack.c.h.b16 %v175
    %v575 = vunpack.c.l.b16 %v176
    %v576 = vunpack.c.h.b16 %v176
    %v577 = vunpack.c.l.b16 %v177
    %v578 = vunpack.c.h.b16 %v177
    %v579 = vunpack.c.l.b16 %v178
    %v580 = vunpack.c.h.b16 %v178
    %v581 = vunpack.c.l.b16 %v179
    %v582 = vunpack.c.h.b16 %v179
    %v583 = vunpack.c.l.b16 %v180
    %v584 = vunpack.c.h.b16 %v180
    %v585 = vunpack.c.l.b16 %v181
    %v586 = vunpack.c.h.b16 %v181
    %v587 = vunpack.c.l.b16 %v182
    %v588 = vunpack.c.h.b16 %v182
    %v589 = vunpack.c.l.b16 %v183
    %v590 = vunpack.c.h.b16 %v183
    %v591 = vunpack.c.l.b16 %v184
    %v592 = vunpack.c.h.b16 %v184
    %v593 = vunpack.c.l.b16 %v185
    %v594 = vunpack.c.h.b16 %v185
    %v595 = vunpack.c.l.b16 %v186
    %v596 = vunpack.c.h.b16 %v186
    %v597 = vunpack.c.l.b16 %v187
    %v598 = vunpack.c.h.b16 %v187
    %v599 = vunpack.c.l.b16 %v188
    %v600 = vunpack.c.h.b16 %v188
    %v601 = vunpack.c.l.b16 %v189
    %v602 = vunpack.c.h.b16 %v189
    %v603 = vunpack.c.l.b16 %v190
    %v604 = vunpack.c.h.b16 %v190
    %v605 = vunpack.c.l.b16 %v191
    %v606 = vunpack.c.h.b16 %v191
    %v607 = vunpack.c.l.b16 %v192
    %v608 = vunpack.c.h.b16 %v192
    %v609 = vunpack.c.l.b16 %v193
    %v610 = vunpack.c.h.b16 %v193
    %v611 = vunpack.c.l.b16 %v194
    %v612 = vunpack.c.h.b16 %v194
    %v613 = vunpack.c.l.b16 %v195
    %v614 = vunpack.c.h.b16 %v195
    %v615 = vunpack.c.l.b16 %v196
    %v616 = vunpack.c.h.b16 %v196
    %v617 = vunpack.c.l.b16 %v197
    %v618 = vunpack.c.h.b16 %v197
    %v619 = vunpack.c.l.b16 %v198
    %v620 = vunpack.c.h.b16 %v198
    %v621 = vunpack.c.l.b16 %v199
    %v622 = vunpack.c.h.b16 %v199
    %v623 = vunpack.c.l.b16 %v200
    %v624 = vunpack.c.h.b16 %v200
    %v625 = vunpack.c.l.b16 %v201
    %v626 = vunpack.c.h.b16 %v201
    %v627 = vunpack.c.l.b16 %v202
    %v628 = vunpack.c.h.b16 %v202
    %v629 = vpack.c.b16 %v509, %v501
    %v630 = vpack.c.b16 %v510, %v502
    %v631 = vpack.c.b16 %v511, %v503
    %v632 = vpack.c.b16 %v512, %v504
    %v633 = vpack.c.b16 %v513, %v505
    %v634 = vpack.c.b16 %v514, %v506
    %v635 = vpack.c.b16 %v515, %v507
    %v636 = vpack.c.b16 %v516, %v508
    %v637 = vpack.c.b16 %v525, %v517
    %v638 = vpack.c.b16 %v526, %v518
    %v639 = vpack.c.b16 %v527, %v519
    %v640 = vpack.c.b16 %v528, %v520
    %v641 = vpack.c.b16 %v529, %v521
    %v642 = vpack.c.b16 %v530, %v522
    %v643 = vpack.c.b16 %v531, %v523
    %v644 = vpack.c.b16 %v532, %v524
    %v645 = vpack.c.b16 %v541, %v533
    %v646 = vpack.c.b16 %v542, %v534
    %v647 = vpack.c.b16 %v543, %v535
    %v648 = vpack.c.b16 %v544, %v536
    %v649 = vpack.c.b16 %v545, %v537
    %v650 = vpack.c.b16 %v546, %v538
    %v651 = vpack.c.b16 %v547, %v539
    %v652 = vpack.c.b16 %v548, %v540
    %v653 = vpack.c.b16 %v557, %v549
    %v654 = vpack.c.b16 %v558, %v550
    %v655 = vpack.c.b16 %v559, %v551
    %v656 = vpack.c.b16 %v560, %v552
    %v657 = vpack.c.b16 %v561, %v553
    %v658 = vpack.c.b16 %v562, %v554
    %v659 = vpack.c.b16 %v563, %v555
    %v660 = vpack.c.b16 %v564, %v556
    %v661 = vpack.c.b16 %v573, %v565
    %v662 = vpack.c.b16 %v574, %v566
    %v663 = vpack.c.b16 %v575, %v567
    %v664 = vpack.c.b16 %v576, %v568
    %v665 = vpack.c.b16 %v577, %v569
    %v666 = vpack.c.b16 %v578, %v570
    %v667 = vpack.c.b16 %v579, %v571
    %v668 = vpack.c.b16 %v580, %v572
    %v669 = vpack.c.b16 %v589, %v581
    %v670 = vpack.c.b16 %v590, %v582
    %v671 = vpack.c.b16 %v591, %v583
    %v672 = vpack.c.b16 %v592, %v584
    %v673 = vpack.c.b16 %v593, %v585
    %v674 = vpack.c.b16 %v594, %v586
    %v675 = vpack.c.b16 %v595, %v587
    %v676 = vpack.c.b16 %v596, %v588
    %v677 = vpack.c.b16 %v605, %v597
    %v678 = vpack.c.b16 %v606, %v598
    %v679 = vpack.c.b16 %v607, %v599
    %v680 = vpack.c.b16 %v608, %v600
    %v681 = vpack.c.b16 %v609, %v601
    %v682 = vpack.c.b16 %v610, %v602
    %v683 = vpack.c.b16 %v611, %v603
    %v684 = vpack.c.b16 %v612, %v604
    %v685 = vpack.c.b16 %v621, %v613
    %v686 = vpack.c.b16 %v622, %v614
    %v687 = vpack.c.b16 %v623, %v615
    %v688 = vpack.c.b16 %v624, %v616
    %v689 = vpack.c.b16 %v625, %v617
    %v690 = vpack.c.b16 %v626, %v618
    %v691 = vpack.c.b16 %v627, %v619
    %v692 = vpack.c.b16 %v628, %v620
    %757 = vmatprep.subr.bf16.mxu0 %v686
    %758 = vmatpush1.bf16.msra.mxu0 %v685
    %759 = vmatprep.subr.bf16.mxu0 %v678
    %760 = vmatpush1.bf16.msra.mxu0 %v677
    %761 = vmatprep.subr.bf16.mxu0 %v670
    %762 = vmatpush1.bf16.msra.mxu0 %v669
    %763 = vmatprep.subr.bf16.mxu0 %v662
    %764 = vmatpush1.bf16.msra.mxu0 %v661
    %765 = vmatprep.subr.bf16.mxu0 %v654
    %766 = vmatpush1.bf16.msra.mxu0 %v653
    %767 = vmatprep.subr.bf16.mxu0 %v646
    %768 = vmatpush1.bf16.msra.mxu0 %v645
    %769 = vmatprep.subr.bf16.mxu0 %v638
    %770 = vmatpush1.bf16.msra.mxu0 %v637
    %771 = vmatprep.subr.bf16.mxu0 %v630
    %772 = vmatpush1.bf16.msra.mxu0 %v629
    %773 = vmatprep.subr.bf16.mxu0 0
    %774 = vmatpush2.bf16.msra.mxu0 0
    %775 = vmatprep.subr.bf16.mxu0 0
    %776 = vmatpush2.bf16.msra.mxu0 0
    %777 = vmatprep.subr.bf16.mxu0 0
    %778 = vmatpush2.bf16.msra.mxu0 0
    %779 = vmatprep.subr.bf16.mxu0 0
    %780 = vmatpush2.bf16.msra.mxu0 0
    %781 = vmatprep.subr.bf16.mxu0 0
    %782 = vmatpush2.bf16.msra.mxu0 0
    %783 = vmatprep.subr.bf16.mxu0 0
    %784 = vmatpush2.bf16.msra.mxu0 0
    %785 = vmatprep.subr.bf16.mxu0 0
    %786 = vmatpush2.bf16.msra.mxu0 0
    %787 = vmatprep.subr.bf16.mxu0 0
    %788 = vmatpush2.bf16.msra.mxu0 0
    %789 = vmatprep.mubr.bf16.mxu0 0
    %790 = vmatmul.mubr.bf16.gmra.mxu0 %v373
    %v791 = vpop.f32.mrf.mxu0
    %v792 = vadd.f32 %v208, %v791
    %v793 = vpop.f32.mrf.mxu0
    %v794 = vadd.f32 %v212, %v793
    %v795 = vpop.f32.mrf.mxu0
    %v796 = vadd.f32 %v208, %v795
    %v797 = vpop.f32.mrf.mxu0
    %v798 = vadd.f32 %v212, %v797
    %799 = vmatprep.mubr.bf16.mxu0 0
    %800 = vmatmul.mubr.bf16.gmra.mxu0 %v374
    %v801 = vpop.f32.mrf.mxu0
    %v802 = vadd.f32 %v208, %v801
    %v803 = vpop.f32.mrf.mxu0
    %v804 = vadd.f32 %v212, %v803
    %v805 = vpop.f32.mrf.mxu0
    %v806 = vadd.f32 %v208, %v805
    %v807 = vpop.f32.mrf.mxu0
    %v808 = vadd.f32 %v212, %v807
    %809 = vmatprep.mubr.bf16.mxu0 0
    %810 = vmatmul.mubr.bf16.gmra.mxu0 %v375
    %v811 = vpop.f32.mrf.mxu0
    %v812 = vadd.f32 %v208, %v811
    %v813 = vpop.f32.mrf.mxu0
    %v814 = vadd.f32 %v212, %v813
    %v815 = vpop.f32.mrf.mxu0
    %v816 = vadd.f32 %v208, %v815
    %v817 = vpop.f32.mrf.mxu0
    %v818 = vadd.f32 %v212, %v817
    %819 = vmatprep.mubr.bf16.mxu0 0
    %820 = vmatmul.mubr.bf16.gmra.mxu0 %v376
    %v821 = vpop.f32.mrf.mxu0
    %v822 = vadd.f32 %v208, %v821
    %v823 = vpop.f32.mrf.mxu0
    %v824 = vadd.f32 %v212, %v823
    %v825 = vpop.f32.mrf.mxu0
    %v826 = vadd.f32 %v208, %v825
    %v827 = vpop.f32.mrf.mxu0
    %v828 = vadd.f32 %v212, %v827
    %829 = vmatprep.mubr.bf16.mxu0 0
    %830 = vmatmul.mubr.bf16.gmra.mxu0 %v377
    %v831 = vpop.f32.mrf.mxu0
    %v832 = vadd.f32 %v208, %v831
    %v833 = vpop.f32.mrf.mxu0
    %v834 = vadd.f32 %v212, %v833
    %v835 = vpop.f32.mrf.mxu0
    %v836 = vadd.f32 %v208, %v835
    %v837 = vpop.f32.mrf.mxu0
    %v838 = vadd.f32 %v212, %v837
    %839 = vmatprep.mubr.bf16.mxu0 0
    %840 = vmatmul.mubr.bf16.gmra.mxu0 %v378
    %v841 = vpop.f32.mrf.mxu0
    %v842 = vadd.f32 %v208, %v841
    %v843 = vpop.f32.mrf.mxu0
    %v844 = vadd.f32 %v212, %v843
    %v845 = vpop.f32.mrf.mxu0
    %v846 = vadd.f32 %v208, %v845
    %v847 = vpop.f32.mrf.mxu0
    %v848 = vadd.f32 %v212, %v847
    %849 = vmatprep.mubr.bf16.mxu0 0
    %850 = vmatmul.mubr.bf16.gmra.mxu0 %v379
    %v851 = vpop.f32.mrf.mxu0
    %v852 = vadd.f32 %v208, %v851
    %v853 = vpop.f32.mrf.mxu0
    %v854 = vadd.f32 %v212, %v853
    %v855 = vpop.f32.mrf.mxu0
    %v856 = vadd.f32 %v208, %v855
    %v857 = vpop.f32.mrf.mxu0
    %v858 = vadd.f32 %v212, %v857
    %859 = vmatprep.mubr.bf16.mxu0 0
    %860 = vmatmul.mubr.bf16.gmra.mxu0 %v380
    %v861 = vpop.f32.mrf.mxu0
    %v862 = vadd.f32 %v208, %v861
    %v863 = vpop.f32.mrf.mxu0
    %v864 = vadd.f32 %v212, %v863
    %v865 = vpop.f32.mrf.mxu0
    %v866 = vadd.f32 %v208, %v865
    %v867 = vpop.f32.mrf.mxu0
    %v868 = vadd.f32 %v212, %v867
    %869 = vmatprep.mubr.bf16.mxu0 0
    %870 = vmatmul.mubr.bf16.gmra.mxu0 %v381
    %v871 = vpop.f32.mrf.mxu0
    %v872 = vadd.f32 %v208, %v871
    %v873 = vpop.f32.mrf.mxu0
    %v874 = vadd.f32 %v212, %v873
    %v875 = vpop.f32.mrf.mxu0
    %v876 = vadd.f32 %v208, %v875
    %v877 = vpop.f32.mrf.mxu0
    %v878 = vadd.f32 %v212, %v877
    %879 = vmatprep.mubr.bf16.mxu0 0
    %880 = vmatmul.mubr.bf16.gmra.mxu0 %v382
    %v881 = vpop.f32.mrf.mxu0
    %v882 = vadd.f32 %v208, %v881
    %v883 = vpop.f32.mrf.mxu0
    %v884 = vadd.f32 %v212, %v883
    %v885 = vpop.f32.mrf.mxu0
    %v886 = vadd.f32 %v208, %v885
    %v887 = vpop.f32.mrf.mxu0
    %v888 = vadd.f32 %v212, %v887
    %889 = vmatprep.mubr.bf16.mxu0 0
    %890 = vmatmul.mubr.bf16.gmra.mxu0 %v383
    %v891 = vpop.f32.mrf.mxu0
    %v892 = vadd.f32 %v208, %v891
    %v893 = vpop.f32.mrf.mxu0
    %v894 = vadd.f32 %v212, %v893
    %v895 = vpop.f32.mrf.mxu0
    %v896 = vadd.f32 %v208, %v895
    %v897 = vpop.f32.mrf.mxu0
    %v898 = vadd.f32 %v212, %v897
    %899 = vmatprep.mubr.bf16.mxu0 0
    %900 = vmatmul.mubr.bf16.gmra.mxu0 %v384
    %v901 = vpop.f32.mrf.mxu0
    %v902 = vadd.f32 %v208, %v901
    %v903 = vpop.f32.mrf.mxu0
    %v904 = vadd.f32 %v212, %v903
    %v905 = vpop.f32.mrf.mxu0
    %v906 = vadd.f32 %v208, %v905
    %v907 = vpop.f32.mrf.mxu0
    %v908 = vadd.f32 %v212, %v907
    %909 = vmatprep.mubr.bf16.mxu0 0
    %910 = vmatmul.mubr.bf16.gmra.mxu0 %v385
    %v911 = vpop.f32.mrf.mxu0
    %v912 = vadd.f32 %v208, %v911
    %v913 = vpop.f32.mrf.mxu0
    %v914 = vadd.f32 %v212, %v913
    %v915 = vpop.f32.mrf.mxu0
    %v916 = vadd.f32 %v208, %v915
    %v917 = vpop.f32.mrf.mxu0
    %v918 = vadd.f32 %v212, %v917
    %919 = vmatprep.mubr.bf16.mxu0 0
    %920 = vmatmul.mubr.bf16.gmra.mxu0 %v386
    %v921 = vpop.f32.mrf.mxu0
    %v922 = vadd.f32 %v208, %v921
    %v923 = vpop.f32.mrf.mxu0
    %v924 = vadd.f32 %v212, %v923
    %v925 = vpop.f32.mrf.mxu0
    %v926 = vadd.f32 %v208, %v925
    %v927 = vpop.f32.mrf.mxu0
    %v928 = vadd.f32 %v212, %v927
    %929 = vmatprep.mubr.bf16.mxu0 0
    %930 = vmatmul.mubr.bf16.gmra.mxu0 %v387
    %v931 = vpop.f32.mrf.mxu0
    %v932 = vadd.f32 %v208, %v931
    %v933 = vpop.f32.mrf.mxu0
    %v934 = vadd.f32 %v212, %v933
    %v935 = vpop.f32.mrf.mxu0
    %v936 = vadd.f32 %v208, %v935
    %v937 = vpop.f32.mrf.mxu0
    %v938 = vadd.f32 %v212, %v937
    %939 = vmatprep.mubr.bf16.mxu0 0
    %940 = vmatmul.mubr.bf16.gmra.mxu0 %v388
    %v941 = vpop.f32.mrf.mxu0
    %v942 = vadd.f32 %v208, %v941
    %v943 = vpop.f32.mrf.mxu0
    %v944 = vadd.f32 %v212, %v943
    %v945 = vpop.f32.mrf.mxu0
    %v946 = vadd.f32 %v208, %v945
    %v947 = vpop.f32.mrf.mxu0
    %v948 = vadd.f32 %v212, %v947
    %949 = vmatprep.mubr.bf16.mxu0 0
    %950 = vmatmul.mubr.bf16.gmra.mxu0 %v389
    %v951 = vpop.f32.mrf.mxu0
    %v952 = vadd.f32 %v208, %v951
    %v953 = vpop.f32.mrf.mxu0
    %v954 = vadd.f32 %v212, %v953
    %v955 = vpop.f32.mrf.mxu0
    %v956 = vadd.f32 %v208, %v955
    %v957 = vpop.f32.mrf.mxu0
    %v958 = vadd.f32 %v212, %v957
    %959 = vmatprep.mubr.bf16.mxu0 0
    %960 = vmatmul.mubr.bf16.gmra.mxu0 %v390
    %v961 = vpop.f32.mrf.mxu0
    %v962 = vadd.f32 %v208, %v961
    %v963 = vpop.f32.mrf.mxu0
    %v964 = vadd.f32 %v212, %v963
    %v965 = vpop.f32.mrf.mxu0
    %v966 = vadd.f32 %v208, %v965
    %v967 = vpop.f32.mrf.mxu0
    %v968 = vadd.f32 %v212, %v967
    %969 = vmatprep.mubr.bf16.mxu0 0
    %970 = vmatmul.mubr.bf16.gmra.mxu0 %v391
    %v971 = vpop.f32.mrf.mxu0
    %v972 = vadd.f32 %v208, %v971
    %v973 = vpop.f32.mrf.mxu0
    %v974 = vadd.f32 %v212, %v973
    %v975 = vpop.f32.mrf.mxu0
    %v976 = vadd.f32 %v208, %v975
    %v977 = vpop.f32.mrf.mxu0
    %v978 = vadd.f32 %v212, %v977
    %979 = vmatprep.mubr.bf16.mxu0 0
    %980 = vmatmul.mubr.bf16.gmra.mxu0 %v392
    %v981 = vpop.f32.mrf.mxu0
    %v982 = vadd.f32 %v208, %v981
    %v983 = vpop.f32.mrf.mxu0
    %v984 = vadd.f32 %v212, %v983
    %v985 = vpop.f32.mrf.mxu0
    %v986 = vadd.f32 %v208, %v985
    %v987 = vpop.f32.mrf.mxu0
    %v988 = vadd.f32 %v212, %v987
    %989 = vmatprep.mubr.bf16.mxu0 0
    %990 = vmatmul.mubr.bf16.gmra.mxu0 %v393
    %v991 = vpop.f32.mrf.mxu0
    %v992 = vadd.f32 %v208, %v991
    %v993 = vpop.f32.mrf.mxu0
    %v994 = vadd.f32 %v212, %v993
    %v995 = vpop.f32.mrf.mxu0
    %v996 = vadd.f32 %v208, %v995
    %v997 = vpop.f32.mrf.mxu0
    %v998 = vadd.f32 %v212, %v997
    %999 = vmatprep.mubr.bf16.mxu0 0
    %1000 = vmatmul.mubr.bf16.gmra.mxu0 %v394
    %v1001 = vpop.f32.mrf.mxu0
    %v1002 = vadd.f32 %v208, %v1001
    %v1003 = vpop.f32.mrf.mxu0
    %v1004 = vadd.f32 %v212, %v1003
    %v1005 = vpop.f32.mrf.mxu0
    %v1006 = vadd.f32 %v208, %v1005
    %v1007 = vpop.f32.mrf.mxu0
    %v1008 = vadd.f32 %v212, %v1007
    %1009 = vmatprep.mubr.bf16.mxu0 0
    %1010 = vmatmul.mubr.bf16.gmra.mxu0 %v395
    %v1011 = vpop.f32.mrf.mxu0
    %v1012 = vadd.f32 %v208, %v1011
    %v1013 = vpop.f32.mrf.mxu0
    %v1014 = vadd.f32 %v212, %v1013
    %v1015 = vpop.f32.mrf.mxu0
    %v1016 = vadd.f32 %v208, %v1015
    %v1017 = vpop.f32.mrf.mxu0
    %v1018 = vadd.f32 %v212, %v1017
    %1019 = vmatprep.mubr.bf16.mxu0 0
    %1020 = vmatmul.mubr.bf16.gmra.mxu0 %v396
    %v1021 = vpop.f32.mrf.mxu0
    %v1022 = vadd.f32 %v208, %v1021
    %v1023 = vpop.f32.mrf.mxu0
    %v1024 = vadd.f32 %v212, %v1023
    %v1025 = vpop.f32.mrf.mxu0
    %v1026 = vadd.f32 %v208, %v1025
    %v1027 = vpop.f32.mrf.mxu0
    %v1028 = vadd.f32 %v212, %v1027
    %1029 = vmatprep.mubr.bf16.mxu0 0
    %1030 = vmatmul.mubr.bf16.gmra.mxu0 %v397
    %v1031 = vpop.f32.mrf.mxu0
    %v1032 = vadd.f32 %v208, %v1031
    %v1033 = vpop.f32.mrf.mxu0
    %v1034 = vadd.f32 %v212, %v1033
    %v1035 = vpop.f32.mrf.mxu0
    %v1036 = vadd.f32 %v208, %v1035
    %v1037 = vpop.f32.mrf.mxu0
    %v1038 = vadd.f32 %v212, %v1037
    %1039 = vmatprep.mubr.bf16.mxu0 0
    %1040 = vmatmul.mubr.bf16.gmra.mxu0 %v398
    %v1041 = vpop.f32.mrf.mxu0
    %v1042 = vadd.f32 %v208, %v1041
    %v1043 = vpop.f32.mrf.mxu0
    %v1044 = vadd.f32 %v212, %v1043
    %v1045 = vpop.f32.mrf.mxu0
    %v1046 = vadd.f32 %v208, %v1045
    %v1047 = vpop.f32.mrf.mxu0
    %v1048 = vadd.f32 %v212, %v1047
    %1049 = vmatprep.mubr.bf16.mxu0 0
    %1050 = vmatmul.mubr.bf16.gmra.mxu0 %v399
    %v1051 = vpop.f32.mrf.mxu0
    %v1052 = vadd.f32 %v208, %v1051
    %v1053 = vpop.f32.mrf.mxu0
    %v1054 = vadd.f32 %v212, %v1053
    %v1055 = vpop.f32.mrf.mxu0
    %v1056 = vadd.f32 %v208, %v1055
    %v1057 = vpop.f32.mrf.mxu0
    %v1058 = vadd.f32 %v212, %v1057
    %1059 = vmatprep.mubr.bf16.mxu0 0
    %1060 = vmatmul.mubr.bf16.gmra.mxu0 %v400
    %v1061 = vpop.f32.mrf.mxu0
    %v1062 = vadd.f32 %v208, %v1061
    %v1063 = vpop.f32.mrf.mxu0
    %v1064 = vadd.f32 %v212, %v1063
    %v1065 = vpop.f32.mrf.mxu0
    %v1066 = vadd.f32 %v208, %v1065
    %v1067 = vpop.f32.mrf.mxu0
    %v1068 = vadd.f32 %v212, %v1067
    %1069 = vmatprep.mubr.bf16.mxu0 0
    %1070 = vmatmul.mubr.bf16.gmra.mxu0 %v401
    %v1071 = vpop.f32.mrf.mxu0
    %v1072 = vadd.f32 %v208, %v1071
    %v1073 = vpop.f32.mrf.mxu0
    %v1074 = vadd.f32 %v212, %v1073
    %v1075 = vpop.f32.mrf.mxu0
    %v1076 = vadd.f32 %v208, %v1075
    %v1077 = vpop.f32.mrf.mxu0
    %v1078 = vadd.f32 %v212, %v1077
    %1079 = vmatprep.mubr.bf16.mxu0 0
    %1080 = vmatmul.mubr.bf16.gmra.mxu0 %v402
    %v1081 = vpop.f32.mrf.mxu0
    %v1082 = vadd.f32 %v208, %v1081
    %v1083 = vpop.f32.mrf.mxu0
    %v1084 = vadd.f32 %v212, %v1083
    %v1085 = vpop.f32.mrf.mxu0
    %v1086 = vadd.f32 %v208, %v1085
    %v1087 = vpop.f32.mrf.mxu0
    %v1088 = vadd.f32 %v212, %v1087
    %1089 = vmatprep.mubr.bf16.mxu0 0
    %1090 = vmatmul.mubr.bf16.gmra.mxu0 %v403
    %v1091 = vpop.f32.mrf.mxu0
    %v1092 = vadd.f32 %v208, %v1091
    %v1093 = vpop.f32.mrf.mxu0
    %v1094 = vadd.f32 %v212, %v1093
    %v1095 = vpop.f32.mrf.mxu0
    %v1096 = vadd.f32 %v208, %v1095
    %v1097 = vpop.f32.mrf.mxu0
    %v1098 = vadd.f32 %v212, %v1097
    %1099 = vmatprep.mubr.bf16.mxu0 0
    %1100 = vmatmul.mubr.bf16.gmra.mxu0 %v404
    %v1101 = vpop.f32.mrf.mxu0
    %v1102 = vadd.f32 %v208, %v1101
    %v1103 = vpop.f32.mrf.mxu0
    %v1104 = vadd.f32 %v212, %v1103
    %v1105 = vpop.f32.mrf.mxu0
    %v1106 = vadd.f32 %v208, %v1105
    %v1107 = vpop.f32.mrf.mxu0
    %v1108 = vadd.f32 %v212, %v1107
    %1109 = vdwg.mxu0
    %1110 = vmatprep.subr.bf16.mxu0 %v688
    %1111 = vmatpush1.bf16.msra.mxu0 %v687
    %1112 = vmatprep.subr.bf16.mxu0 %v680
    %1113 = vmatpush1.bf16.msra.mxu0 %v679
    %1114 = vmatprep.subr.bf16.mxu0 %v672
    %1115 = vmatpush1.bf16.msra.mxu0 %v671
    %1116 = vmatprep.subr.bf16.mxu0 %v664
    %1117 = vmatpush1.bf16.msra.mxu0 %v663
    %1118 = vmatprep.subr.bf16.mxu0 %v656
    %1119 = vmatpush1.bf16.msra.mxu0 %v655
    %1120 = vmatprep.subr.bf16.mxu0 %v648
    %1121 = vmatpush1.bf16.msra.mxu0 %v647
    %1122 = vmatprep.subr.bf16.mxu0 %v640
    %1123 = vmatpush1.bf16.msra.mxu0 %v639
    %1124 = vmatprep.subr.bf16.mxu0 %v632
    %1125 = vmatpush1.bf16.msra.mxu0 %v631
    %1126 = vmatprep.subr.bf16.mxu0 0
    %1127 = vmatpush2.bf16.msra.mxu0 0
    %1128 = vmatprep.subr.bf16.mxu0 0
    %1129 = vmatpush2.bf16.msra.mxu0 0
    %1130 = vmatprep.subr.bf16.mxu0 0
    %1131 = vmatpush2.bf16.msra.mxu0 0
    %1132 = vmatprep.subr.bf16.mxu0 0
    %1133 = vmatpush2.bf16.msra.mxu0 0
    %1134 = vmatprep.subr.bf16.mxu0 0
    %1135 = vmatpush2.bf16.msra.mxu0 0
    %1136 = vmatprep.subr.bf16.mxu0 0
    %1137 = vmatpush2.bf16.msra.mxu0 0
    %1138 = vmatprep.subr.bf16.mxu0 0
    %1139 = vmatpush2.bf16.msra.mxu0 0
    %1140 = vmatprep.subr.bf16.mxu0 0
    %1141 = vmatpush2.bf16.msra.mxu0 0
    %1142 = vmatprep.mubr.bf16.mxu0 0
    %1143 = vmatmul.mubr.bf16.gmra.mxu0 %v373
    %v1144 = vpop.f32.mrf.mxu0
    %v1145 = vadd.f32 %v216, %v1144
    %v1146 = vpop.f32.mrf.mxu0
    %v1147 = vadd.f32 %v220, %v1146
    %v1148 = vpop.f32.mrf.mxu0
    %v1149 = vadd.f32 %v216, %v1148
    %v1150 = vpop.f32.mrf.mxu0
    %v1151 = vadd.f32 %v220, %v1150
    %1152 = vmatprep.mubr.bf16.mxu0 0
    %1153 = vmatmul.mubr.bf16.gmra.mxu0 %v374
    %v1154 = vpop.f32.mrf.mxu0
    %v1155 = vadd.f32 %v216, %v1154
    %v1156 = vpop.f32.mrf.mxu0
    %v1157 = vadd.f32 %v220, %v1156
    %v1158 = vpop.f32.mrf.mxu0
    %v1159 = vadd.f32 %v216, %v1158
    %v1160 = vpop.f32.mrf.mxu0
    %v1161 = vadd.f32 %v220, %v1160
    %1162 = vmatprep.mubr.bf16.mxu0 0
    %1163 = vmatmul.mubr.bf16.gmra.mxu0 %v375
    %v1164 = vpop.f32.mrf.mxu0
    %v1165 = vadd.f32 %v216, %v1164
    %v1166 = vpop.f32.mrf.mxu0
    %v1167 = vadd.f32 %v220, %v1166
    %v1168 = vpop.f32.mrf.mxu0
    %v1169 = vadd.f32 %v216, %v1168
    %v1170 = vpop.f32.mrf.mxu0
    %v1171 = vadd.f32 %v220, %v1170
    %1172 = vmatprep.mubr.bf16.mxu0 0
    %1173 = vmatmul.mubr.bf16.gmra.mxu0 %v376
    %v1174 = vpop.f32.mrf.mxu0
    %v1175 = vadd.f32 %v216, %v1174
    %v1176 = vpop.f32.mrf.mxu0
    %v1177 = vadd.f32 %v220, %v1176
    %v1178 = vpop.f32.mrf.mxu0
    %v1179 = vadd.f32 %v216, %v1178
    %v1180 = vpop.f32.mrf.mxu0
    %v1181 = vadd.f32 %v220, %v1180
    %1182 = vmatprep.mubr.bf16.mxu0 0
    %1183 = vmatmul.mubr.bf16.gmra.mxu0 %v377
    %v1184 = vpop.f32.mrf.mxu0
    %v1185 = vadd.f32 %v216, %v1184
    %v1186 = vpop.f32.mrf.mxu0
    %v1187 = vadd.f32 %v220, %v1186
    %v1188 = vpop.f32.mrf.mxu0
    %v1189 = vadd.f32 %v216, %v1188
    %v1190 = vpop.f32.mrf.mxu0
    %v1191 = vadd.f32 %v220, %v1190
    %1192 = vmatprep.mubr.bf16.mxu0 0
    %1193 = vmatmul.mubr.bf16.gmra.mxu0 %v378
    %v1194 = vpop.f32.mrf.mxu0
    %v1195 = vadd.f32 %v216, %v1194
    %v1196 = vpop.f32.mrf.mxu0
    %v1197 = vadd.f32 %v220, %v1196
    %v1198 = vpop.f32.mrf.mxu0
    %v1199 = vadd.f32 %v216, %v1198
    %v1200 = vpop.f32.mrf.mxu0
    %v1201 = vadd.f32 %v220, %v1200
    %1202 = vmatprep.mubr.bf16.mxu0 0
    %1203 = vmatmul.mubr.bf16.gmra.mxu0 %v379
    %v1204 = vpop.f32.mrf.mxu0
    %v1205 = vadd.f32 %v216, %v1204
    %v1206 = vpop.f32.mrf.mxu0
    %v1207 = vadd.f32 %v220, %v1206
    %v1208 = vpop.f32.mrf.mxu0
    %v1209 = vadd.f32 %v216, %v1208
    %v1210 = vpop.f32.mrf.mxu0
    %v1211 = vadd.f32 %v220, %v1210
    %1212 = vmatprep.mubr.bf16.mxu0 0
    %1213 = vmatmul.mubr.bf16.gmra.mxu0 %v380
    %v1214 = vpop.f32.mrf.mxu0
    %v1215 = vadd.f32 %v216, %v1214
    %v1216 = vpop.f32.mrf.mxu0
    %v1217 = vadd.f32 %v220, %v1216
    %v1218 = vpop.f32.mrf.mxu0
    %v1219 = vadd.f32 %v216, %v1218
    %v1220 = vpop.f32.mrf.mxu0
    %v1221 = vadd.f32 %v220, %v1220
    %1222 = vmatprep.mubr.bf16.mxu0 0
    %1223 = vmatmul.mubr.bf16.gmra.mxu0 %v381
    %v1224 = vpop.f32.mrf.mxu0
    %v1225 = vadd.f32 %v216, %v1224
    %v1226 = vpop.f32.mrf.mxu0
    %v1227 = vadd.f32 %v220, %v1226
    %v1228 = vpop.f32.mrf.mxu0
    %v1229 = vadd.f32 %v216, %v1228
    %v1230 = vpop.f32.mrf.mxu0
    %v1231 = vadd.f32 %v220, %v1230
    %1232 = vmatprep.mubr.bf16.mxu0 0
    %1233 = vmatmul.mubr.bf16.gmra.mxu0 %v382
    %v1234 = vpop.f32.mrf.mxu0
    %v1235 = vadd.f32 %v216, %v1234
    %v1236 = vpop.f32.mrf.mxu0
    %v1237 = vadd.f32 %v220, %v1236
    %v1238 = vpop.f32.mrf.mxu0
    %v1239 = vadd.f32 %v216, %v1238
    %v1240 = vpop.f32.mrf.mxu0
    %v1241 = vadd.f32 %v220, %v1240
    %1242 = vmatprep.mubr.bf16.mxu0 0
    %1243 = vmatmul.mubr.bf16.gmra.mxu0 %v383
    %v1244 = vpop.f32.mrf.mxu0
    %v1245 = vadd.f32 %v216, %v1244
    %v1246 = vpop.f32.mrf.mxu0
    %v1247 = vadd.f32 %v220, %v1246
    %v1248 = vpop.f32.mrf.mxu0
    %v1249 = vadd.f32 %v216, %v1248
    %v1250 = vpop.f32.mrf.mxu0
    %v1251 = vadd.f32 %v220, %v1250
    %1252 = vmatprep.mubr.bf16.mxu0 0
    %1253 = vmatmul.mubr.bf16.gmra.mxu0 %v384
    %v1254 = vpop.f32.mrf.mxu0
    %v1255 = vadd.f32 %v216, %v1254
    %v1256 = vpop.f32.mrf.mxu0
    %v1257 = vadd.f32 %v220, %v1256
    %v1258 = vpop.f32.mrf.mxu0
    %v1259 = vadd.f32 %v216, %v1258
    %v1260 = vpop.f32.mrf.mxu0
    %v1261 = vadd.f32 %v220, %v1260
    %1262 = vmatprep.mubr.bf16.mxu0 0
    %1263 = vmatmul.mubr.bf16.gmra.mxu0 %v385
    %v1264 = vpop.f32.mrf.mxu0
    %v1265 = vadd.f32 %v216, %v1264
    %v1266 = vpop.f32.mrf.mxu0
    %v1267 = vadd.f32 %v220, %v1266
    %v1268 = vpop.f32.mrf.mxu0
    %v1269 = vadd.f32 %v216, %v1268
    %v1270 = vpop.f32.mrf.mxu0
    %v1271 = vadd.f32 %v220, %v1270
    %1272 = vmatprep.mubr.bf16.mxu0 0
    %1273 = vmatmul.mubr.bf16.gmra.mxu0 %v386
    %v1274 = vpop.f32.mrf.mxu0
    %v1275 = vadd.f32 %v216, %v1274
    %v1276 = vpop.f32.mrf.mxu0
    %v1277 = vadd.f32 %v220, %v1276
    %v1278 = vpop.f32.mrf.mxu0
    %v1279 = vadd.f32 %v216, %v1278
    %v1280 = vpop.f32.mrf.mxu0
    %v1281 = vadd.f32 %v220, %v1280
    %1282 = vmatprep.mubr.bf16.mxu0 0
    %1283 = vmatmul.mubr.bf16.gmra.mxu0 %v387
    %v1284 = vpop.f32.mrf.mxu0
    %v1285 = vadd.f32 %v216, %v1284
    %v1286 = vpop.f32.mrf.mxu0
    %v1287 = vadd.f32 %v220, %v1286
    %v1288 = vpop.f32.mrf.mxu0
    %v1289 = vadd.f32 %v216, %v1288
    %v1290 = vpop.f32.mrf.mxu0
    %v1291 = vadd.f32 %v220, %v1290
    %1292 = vmatprep.mubr.bf16.mxu0 0
    %1293 = vmatmul.mubr.bf16.gmra.mxu0 %v388
    %v1294 = vpop.f32.mrf.mxu0
    %v1295 = vadd.f32 %v216, %v1294
    %v1296 = vpop.f32.mrf.mxu0
    %v1297 = vadd.f32 %v220, %v1296
    %v1298 = vpop.f32.mrf.mxu0
    %v1299 = vadd.f32 %v216, %v1298
    %v1300 = vpop.f32.mrf.mxu0
    %v1301 = vadd.f32 %v220, %v1300
    %1302 = vmatprep.mubr.bf16.mxu0 0
    %1303 = vmatmul.mubr.bf16.gmra.mxu0 %v389
    %v1304 = vpop.f32.mrf.mxu0
    %v1305 = vadd.f32 %v216, %v1304
    %v1306 = vpop.f32.mrf.mxu0
    %v1307 = vadd.f32 %v220, %v1306
    %v1308 = vpop.f32.mrf.mxu0
    %v1309 = vadd.f32 %v216, %v1308
    %v1310 = vpop.f32.mrf.mxu0
    %v1311 = vadd.f32 %v220, %v1310
    %1312 = vmatprep.mubr.bf16.mxu0 0
    %1313 = vmatmul.mubr.bf16.gmra.mxu0 %v390
    %v1314 = vpop.f32.mrf.mxu0
    %v1315 = vadd.f32 %v216, %v1314
    %v1316 = vpop.f32.mrf.mxu0
    %v1317 = vadd.f32 %v220, %v1316
    %v1318 = vpop.f32.mrf.mxu0
    %v1319 = vadd.f32 %v216, %v1318
    %v1320 = vpop.f32.mrf.mxu0
    %v1321 = vadd.f32 %v220, %v1320
    %1322 = vmatprep.mubr.bf16.mxu0 0
    %1323 = vmatmul.mubr.bf16.gmra.mxu0 %v391
    %v1324 = vpop.f32.mrf.mxu0
    %v1325 = vadd.f32 %v216, %v1324
    %v1326 = vpop.f32.mrf.mxu0
    %v1327 = vadd.f32 %v220, %v1326
    %v1328 = vpop.f32.mrf.mxu0
    %v1329 = vadd.f32 %v216, %v1328
    %v1330 = vpop.f32.mrf.mxu0
    %v1331 = vadd.f32 %v220, %v1330
    %1332 = vmatprep.mubr.bf16.mxu0 0
    %1333 = vmatmul.mubr.bf16.gmra.mxu0 %v392
    %v1334 = vpop.f32.mrf.mxu0
    %v1335 = vadd.f32 %v216, %v1334
    %v1336 = vpop.f32.mrf.mxu0
    %v1337 = vadd.f32 %v220, %v1336
    %v1338 = vpop.f32.mrf.mxu0
    %v1339 = vadd.f32 %v216, %v1338
    %v1340 = vpop.f32.mrf.mxu0
    %v1341 = vadd.f32 %v220, %v1340
    %1342 = vmatprep.mubr.bf16.mxu0 0
    %1343 = vmatmul.mubr.bf16.gmra.mxu0 %v393
    %v1344 = vpop.f32.mrf.mxu0
    %v1345 = vadd.f32 %v216, %v1344
    %v1346 = vpop.f32.mrf.mxu0
    %v1347 = vadd.f32 %v220, %v1346
    %v1348 = vpop.f32.mrf.mxu0
    %v1349 = vadd.f32 %v216, %v1348
    %v1350 = vpop.f32.mrf.mxu0
    %v1351 = vadd.f32 %v220, %v1350
    %1352 = vmatprep.mubr.bf16.mxu0 0
    %1353 = vmatmul.mubr.bf16.gmra.mxu0 %v394
    %v1354 = vpop.f32.mrf.mxu0
    %v1355 = vadd.f32 %v216, %v1354
    %v1356 = vpop.f32.mrf.mxu0
    %v1357 = vadd.f32 %v220, %v1356
    %v1358 = vpop.f32.mrf.mxu0
    %v1359 = vadd.f32 %v216, %v1358
    %v1360 = vpop.f32.mrf.mxu0
    %v1361 = vadd.f32 %v220, %v1360
    %1362 = vmatprep.mubr.bf16.mxu0 0
    %1363 = vmatmul.mubr.bf16.gmra.mxu0 %v395
    %v1364 = vpop.f32.mrf.mxu0
    %v1365 = vadd.f32 %v216, %v1364
    %v1366 = vpop.f32.mrf.mxu0
    %v1367 = vadd.f32 %v220, %v1366
    %v1368 = vpop.f32.mrf.mxu0
    %v1369 = vadd.f32 %v216, %v1368
    %v1370 = vpop.f32.mrf.mxu0
    %v1371 = vadd.f32 %v220, %v1370
    %1372 = vmatprep.mubr.bf16.mxu0 0
    %1373 = vmatmul.mubr.bf16.gmra.mxu0 %v396
    %v1374 = vpop.f32.mrf.mxu0
    %v1375 = vadd.f32 %v216, %v1374
    %v1376 = vpop.f32.mrf.mxu0
    %v1377 = vadd.f32 %v220, %v1376
    %v1378 = vpop.f32.mrf.mxu0
    %v1379 = vadd.f32 %v216, %v1378
    %v1380 = vpop.f32.mrf.mxu0
    %v1381 = vadd.f32 %v220, %v1380
    %1382 = vmatprep.mubr.bf16.mxu0 0
    %1383 = vmatmul.mubr.bf16.gmra.mxu0 %v397
    %v1384 = vpop.f32.mrf.mxu0
    %v1385 = vadd.f32 %v216, %v1384
    %v1386 = vpop.f32.mrf.mxu0
    %v1387 = vadd.f32 %v220, %v1386
    %v1388 = vpop.f32.mrf.mxu0
    %v1389 = vadd.f32 %v216, %v1388
    %v1390 = vpop.f32.mrf.mxu0
    %v1391 = vadd.f32 %v220, %v1390
    %1392 = vmatprep.mubr.bf16.mxu0 0
    %1393 = vmatmul.mubr.bf16.gmra.mxu0 %v398
    %v1394 = vpop.f32.mrf.mxu0
    %v1395 = vadd.f32 %v216, %v1394
    %v1396 = vpop.f32.mrf.mxu0
    %v1397 = vadd.f32 %v220, %v1396
    %v1398 = vpop.f32.mrf.mxu0
    %v1399 = vadd.f32 %v216, %v1398
    %v1400 = vpop.f32.mrf.mxu0
    %v1401 = vadd.f32 %v220, %v1400
    %1402 = vmatprep.mubr.bf16.mxu0 0
    %1403 = vmatmul.mubr.bf16.gmra.mxu0 %v399
    %v1404 = vpop.f32.mrf.mxu0
    %v1405 = vadd.f32 %v216, %v1404
    %v1406 = vpop.f32.mrf.mxu0
    %v1407 = vadd.f32 %v220, %v1406
    %v1408 = vpop.f32.mrf.mxu0
    %v1409 = vadd.f32 %v216, %v1408
    %v1410 = vpop.f32.mrf.mxu0
    %v1411 = vadd.f32 %v220, %v1410
    %1412 = vmatprep.mubr.bf16.mxu0 0
    %1413 = vmatmul.mubr.bf16.gmra.mxu0 %v400
    %v1414 = vpop.f32.mrf.mxu0
    %v1415 = vadd.f32 %v216, %v1414
    %v1416 = vpop.f32.mrf.mxu0
    %v1417 = vadd.f32 %v220, %v1416
    %v1418 = vpop.f32.mrf.mxu0
    %v1419 = vadd.f32 %v216, %v1418
    %v1420 = vpop.f32.mrf.mxu0
    %v1421 = vadd.f32 %v220, %v1420
    %1422 = vmatprep.mubr.bf16.mxu0 0
    %1423 = vmatmul.mubr.bf16.gmra.mxu0 %v401
    %v1424 = vpop.f32.mrf.mxu0
    %v1425 = vadd.f32 %v216, %v1424
    %v1426 = vpop.f32.mrf.mxu0
    %v1427 = vadd.f32 %v220, %v1426
    %v1428 = vpop.f32.mrf.mxu0
    %v1429 = vadd.f32 %v216, %v1428
    %v1430 = vpop.f32.mrf.mxu0
    %v1431 = vadd.f32 %v220, %v1430
    %1432 = vmatprep.mubr.bf16.mxu0 0
    %1433 = vmatmul.mubr.bf16.gmra.mxu0 %v402
    %v1434 = vpop.f32.mrf.mxu0
    %v1435 = vadd.f32 %v216, %v1434
    %v1436 = vpop.f32.mrf.mxu0
    %v1437 = vadd.f32 %v220, %v1436
    %v1438 = vpop.f32.mrf.mxu0
    %v1439 = vadd.f32 %v216, %v1438
    %v1440 = vpop.f32.mrf.mxu0
    %v1441 = vadd.f32 %v220, %v1440
    %1442 = vmatprep.mubr.bf16.mxu0 0
    %1443 = vmatmul.mubr.bf16.gmra.mxu0 %v403
    %v1444 = vpop.f32.mrf.mxu0
    %v1445 = vadd.f32 %v216, %v1444
    %v1446 = vpop.f32.mrf.mxu0
    %v1447 = vadd.f32 %v220, %v1446
    %v1448 = vpop.f32.mrf.mxu0
    %v1449 = vadd.f32 %v216, %v1448
    %v1450 = vpop.f32.mrf.mxu0
    %v1451 = vadd.f32 %v220, %v1450
    %1452 = vmatprep.mubr.bf16.mxu0 0
    %1453 = vmatmul.mubr.bf16.gmra.mxu0 %v404
    %v1454 = vpop.f32.mrf.mxu0
    %v1455 = vadd.f32 %v216, %v1454
    %v1456 = vpop.f32.mrf.mxu0
    %v1457 = vadd.f32 %v220, %v1456
    %v1458 = vpop.f32.mrf.mxu0
    %v1459 = vadd.f32 %v216, %v1458
    %v1460 = vpop.f32.mrf.mxu0
    %v1461 = vadd.f32 %v220, %v1460
    %1462 = vdwg.mxu0
    %1463 = vmatprep.subr.bf16.mxu0 %v690
    %1464 = vmatpush1.bf16.msra.mxu0 %v689
    %1465 = vmatprep.subr.bf16.mxu0 %v682
    %1466 = vmatpush1.bf16.msra.mxu0 %v681
    %1467 = vmatprep.subr.bf16.mxu0 %v674
    %1468 = vmatpush1.bf16.msra.mxu0 %v673
    %1469 = vmatprep.subr.bf16.mxu0 %v666
    %1470 = vmatpush1.bf16.msra.mxu0 %v665
    %1471 = vmatprep.subr.bf16.mxu0 %v658
    %1472 = vmatpush1.bf16.msra.mxu0 %v657
    %1473 = vmatprep.subr.bf16.mxu0 %v650
    %1474 = vmatpush1.bf16.msra.mxu0 %v649
    %1475 = vmatprep.subr.bf16.mxu0 %v642
    %1476 = vmatpush1.bf16.msra.mxu0 %v641
    %1477 = vmatprep.subr.bf16.mxu0 %v634
    %1478 = vmatpush1.bf16.msra.mxu0 %v633
    %1479 = vmatprep.subr.bf16.mxu0 0
    %1480 = vmatpush2.bf16.msra.mxu0 0
    %1481 = vmatprep.subr.bf16.mxu0 0
    %1482 = vmatpush2.bf16.msra.mxu0 0
    %1483 = vmatprep.subr.bf16.mxu0 0
    %1484 = vmatpush2.bf16.msra.mxu0 0
    %1485 = vmatprep.subr.bf16.mxu0 0
    %1486 = vmatpush2.bf16.msra.mxu0 0
    %1487 = vmatprep.subr.bf16.mxu0 0
    %1488 = vmatpush2.bf16.msra.mxu0 0
    %1489 = vmatprep.subr.bf16.mxu0 0
    %1490 = vmatpush2.bf16.msra.mxu0 0
    %1491 = vmatprep.subr.bf16.mxu0 0
    %1492 = vmatpush2.bf16.msra.mxu0 0
    %1493 = vmatprep.subr.bf16.mxu0 0
    %1494 = vmatpush2.bf16.msra.mxu0 0
    %1495 = vmatprep.mubr.bf16.mxu0 0
    %1496 = vmatmul.mubr.bf16.gmra.mxu0 %v373
    %v1497 = vpop.f32.mrf.mxu0
    %v1498 = vadd.f32 %v224, %v1497
    %v1499 = vpop.f32.mrf.mxu0
    %v1500 = vadd.f32 %v228, %v1499
    %v1501 = vpop.f32.mrf.mxu0
    %v1502 = vadd.f32 %v224, %v1501
    %v1503 = vpop.f32.mrf.mxu0
    %v1504 = vadd.f32 %v228, %v1503
    %1505 = vmatprep.mubr.bf16.mxu0 0
    %1506 = vmatmul.mubr.bf16.gmra.mxu0 %v374
    %v1507 = vpop.f32.mrf.mxu0
    %v1508 = vadd.f32 %v224, %v1507
    %v1509 = vpop.f32.mrf.mxu0
    %v1510 = vadd.f32 %v228, %v1509
    %v1511 = vpop.f32.mrf.mxu0
    %v1512 = vadd.f32 %v224, %v1511
    %v1513 = vpop.f32.mrf.mxu0
    %v1514 = vadd.f32 %v228, %v1513
    %1515 = vmatprep.mubr.bf16.mxu0 0
    %1516 = vmatmul.mubr.bf16.gmra.mxu0 %v375
    %v1517 = vpop.f32.mrf.mxu0
    %v1518 = vadd.f32 %v224, %v1517
    %v1519 = vpop.f32.mrf.mxu0
    %v1520 = vadd.f32 %v228, %v1519
    %v1521 = vpop.f32.mrf.mxu0
    %v1522 = vadd.f32 %v224, %v1521
    %v1523 = vpop.f32.mrf.mxu0
    %v1524 = vadd.f32 %v228, %v1523
    %1525 = vmatprep.mubr.bf16.mxu0 0
    %1526 = vmatmul.mubr.bf16.gmra.mxu0 %v376
    %v1527 = vpop.f32.mrf.mxu0
    %v1528 = vadd.f32 %v224, %v1527
    %v1529 = vpop.f32.mrf.mxu0
    %v1530 = vadd.f32 %v228, %v1529
    %v1531 = vpop.f32.mrf.mxu0
    %v1532 = vadd.f32 %v224, %v1531
    %v1533 = vpop.f32.mrf.mxu0
    %v1534 = vadd.f32 %v228, %v1533
    %1535 = vmatprep.mubr.bf16.mxu0 0
    %1536 = vmatmul.mubr.bf16.gmra.mxu0 %v377
    %v1537 = vpop.f32.mrf.mxu0
    %v1538 = vadd.f32 %v224, %v1537
    %v1539 = vpop.f32.mrf.mxu0
    %v1540 = vadd.f32 %v228, %v1539
    %v1541 = vpop.f32.mrf.mxu0
    %v1542 = vadd.f32 %v224, %v1541
    %v1543 = vpop.f32.mrf.mxu0
    %v1544 = vadd.f32 %v228, %v1543
    %1545 = vmatprep.mubr.bf16.mxu0 0
    %1546 = vmatmul.mubr.bf16.gmra.mxu0 %v378
    %v1547 = vpop.f32.mrf.mxu0
    %v1548 = vadd.f32 %v224, %v1547
    %v1549 = vpop.f32.mrf.mxu0
    %v1550 = vadd.f32 %v228, %v1549
    %v1551 = vpop.f32.mrf.mxu0
    %v1552 = vadd.f32 %v224, %v1551
    %v1553 = vpop.f32.mrf.mxu0
    %v1554 = vadd.f32 %v228, %v1553
    %1555 = vmatprep.mubr.bf16.mxu0 0
    %1556 = vmatmul.mubr.bf16.gmra.mxu0 %v379
    %v1557 = vpop.f32.mrf.mxu0
    %v1558 = vadd.f32 %v224, %v1557
    %v1559 = vpop.f32.mrf.mxu0
    %v1560 = vadd.f32 %v228, %v1559
    %v1561 = vpop.f32.mrf.mxu0
    %v1562 = vadd.f32 %v224, %v1561
    %v1563 = vpop.f32.mrf.mxu0
    %v1564 = vadd.f32 %v228, %v1563
    %1565 = vmatprep.mubr.bf16.mxu0 0
    %1566 = vmatmul.mubr.bf16.gmra.mxu0 %v380
    %v1567 = vpop.f32.mrf.mxu0
    %v1568 = vadd.f32 %v224, %v1567
    %v1569 = vpop.f32.mrf.mxu0
    %v1570 = vadd.f32 %v228, %v1569
    %v1571 = vpop.f32.mrf.mxu0
    %v1572 = vadd.f32 %v224, %v1571
    %v1573 = vpop.f32.mrf.mxu0
    %v1574 = vadd.f32 %v228, %v1573
    %1575 = vmatprep.mubr.bf16.mxu0 0
    %1576 = vmatmul.mubr.bf16.gmra.mxu0 %v381
    %v1577 = vpop.f32.mrf.mxu0
    %v1578 = vadd.f32 %v224, %v1577
    %v1579 = vpop.f32.mrf.mxu0
    %v1580 = vadd.f32 %v228, %v1579
    %v1581 = vpop.f32.mrf.mxu0
    %v1582 = vadd.f32 %v224, %v1581
    %v1583 = vpop.f32.mrf.mxu0
    %v1584 = vadd.f32 %v228, %v1583
    %1585 = vmatprep.mubr.bf16.mxu0 0
    %1586 = vmatmul.mubr.bf16.gmra.mxu0 %v382
    %v1587 = vpop.f32.mrf.mxu0
    %v1588 = vadd.f32 %v224, %v1587
    %v1589 = vpop.f32.mrf.mxu0
    %v1590 = vadd.f32 %v228, %v1589
    %v1591 = vpop.f32.mrf.mxu0
    %v1592 = vadd.f32 %v224, %v1591
    %v1593 = vpop.f32.mrf.mxu0
    %v1594 = vadd.f32 %v228, %v1593
    %1595 = vmatprep.mubr.bf16.mxu0 0
    %1596 = vmatmul.mubr.bf16.gmra.mxu0 %v383
    %v1597 = vpop.f32.mrf.mxu0
    %v1598 = vadd.f32 %v224, %v1597
    %v1599 = vpop.f32.mrf.mxu0
    %v1600 = vadd.f32 %v228, %v1599
    %v1601 = vpop.f32.mrf.mxu0
    %v1602 = vadd.f32 %v224, %v1601
    %v1603 = vpop.f32.mrf.mxu0
    %v1604 = vadd.f32 %v228, %v1603
    %1605 = vmatprep.mubr.bf16.mxu0 0
    %1606 = vmatmul.mubr.bf16.gmra.mxu0 %v384
    %v1607 = vpop.f32.mrf.mxu0
    %v1608 = vadd.f32 %v224, %v1607
    %v1609 = vpop.f32.mrf.mxu0
    %v1610 = vadd.f32 %v228, %v1609
    %v1611 = vpop.f32.mrf.mxu0
    %v1612 = vadd.f32 %v224, %v1611
    %v1613 = vpop.f32.mrf.mxu0
    %v1614 = vadd.f32 %v228, %v1613
    %1615 = vmatprep.mubr.bf16.mxu0 0
    %1616 = vmatmul.mubr.bf16.gmra.mxu0 %v385
    %v1617 = vpop.f32.mrf.mxu0
    %v1618 = vadd.f32 %v224, %v1617
    %v1619 = vpop.f32.mrf.mxu0
    %v1620 = vadd.f32 %v228, %v1619
    %v1621 = vpop.f32.mrf.mxu0
    %v1622 = vadd.f32 %v224, %v1621
    %v1623 = vpop.f32.mrf.mxu0
    %v1624 = vadd.f32 %v228, %v1623
    %1625 = vmatprep.mubr.bf16.mxu0 0
    %1626 = vmatmul.mubr.bf16.gmra.mxu0 %v386
    %v1627 = vpop.f32.mrf.mxu0
    %v1628 = vadd.f32 %v224, %v1627
    %v1629 = vpop.f32.mrf.mxu0
    %v1630 = vadd.f32 %v228, %v1629
    %v1631 = vpop.f32.mrf.mxu0
    %v1632 = vadd.f32 %v224, %v1631
    %v1633 = vpop.f32.mrf.mxu0
    %v1634 = vadd.f32 %v228, %v1633
    %1635 = vmatprep.mubr.bf16.mxu0 0
    %1636 = vmatmul.mubr.bf16.gmra.mxu0 %v387
    %v1637 = vpop.f32.mrf.mxu0
    %v1638 = vadd.f32 %v224, %v1637
    %v1639 = vpop.f32.mrf.mxu0
    %v1640 = vadd.f32 %v228, %v1639
    %v1641 = vpop.f32.mrf.mxu0
    %v1642 = vadd.f32 %v224, %v1641
    %v1643 = vpop.f32.mrf.mxu0
    %v1644 = vadd.f32 %v228, %v1643
    %1645 = vmatprep.mubr.bf16.mxu0 0
    %1646 = vmatmul.mubr.bf16.gmra.mxu0 %v388
    %v1647 = vpop.f32.mrf.mxu0
    %v1648 = vadd.f32 %v224, %v1647
    %v1649 = vpop.f32.mrf.mxu0
    %v1650 = vadd.f32 %v228, %v1649
    %v1651 = vpop.f32.mrf.mxu0
    %v1652 = vadd.f32 %v224, %v1651
    %v1653 = vpop.f32.mrf.mxu0
    %v1654 = vadd.f32 %v228, %v1653
    %1655 = vmatprep.mubr.bf16.mxu0 0
    %1656 = vmatmul.mubr.bf16.gmra.mxu0 %v389
    %v1657 = vpop.f32.mrf.mxu0
    %v1658 = vadd.f32 %v224, %v1657
    %v1659 = vpop.f32.mrf.mxu0
    %v1660 = vadd.f32 %v228, %v1659
    %v1661 = vpop.f32.mrf.mxu0
    %v1662 = vadd.f32 %v224, %v1661
    %v1663 = vpop.f32.mrf.mxu0
    %v1664 = vadd.f32 %v228, %v1663
    %1665 = vmatprep.mubr.bf16.mxu0 0
    %1666 = vmatmul.mubr.bf16.gmra.mxu0 %v390
    %v1667 = vpop.f32.mrf.mxu0
    %v1668 = vadd.f32 %v224, %v1667
    %v1669 = vpop.f32.mrf.mxu0
    %v1670 = vadd.f32 %v228, %v1669
    %v1671 = vpop.f32.mrf.mxu0
    %v1672 = vadd.f32 %v224, %v1671
    %v1673 = vpop.f32.mrf.mxu0
    %v1674 = vadd.f32 %v228, %v1673
    %1675 = vmatprep.mubr.bf16.mxu0 0
    %1676 = vmatmul.mubr.bf16.gmra.mxu0 %v391
    %v1677 = vpop.f32.mrf.mxu0
    %v1678 = vadd.f32 %v224, %v1677
    %v1679 = vpop.f32.mrf.mxu0
    %v1680 = vadd.f32 %v228, %v1679
    %v1681 = vpop.f32.mrf.mxu0
    %v1682 = vadd.f32 %v224, %v1681
    %v1683 = vpop.f32.mrf.mxu0
    %v1684 = vadd.f32 %v228, %v1683
    %1685 = vmatprep.mubr.bf16.mxu0 0
    %1686 = vmatmul.mubr.bf16.gmra.mxu0 %v392
    %v1687 = vpop.f32.mrf.mxu0
    %v1688 = vadd.f32 %v224, %v1687
    %v1689 = vpop.f32.mrf.mxu0
    %v1690 = vadd.f32 %v228, %v1689
    %v1691 = vpop.f32.mrf.mxu0
    %v1692 = vadd.f32 %v224, %v1691
    %v1693 = vpop.f32.mrf.mxu0
    %v1694 = vadd.f32 %v228, %v1693
    %1695 = vmatprep.mubr.bf16.mxu0 0
    %1696 = vmatmul.mubr.bf16.gmra.mxu0 %v393
    %v1697 = vpop.f32.mrf.mxu0
    %v1698 = vadd.f32 %v224, %v1697
    %v1699 = vpop.f32.mrf.mxu0
    %v1700 = vadd.f32 %v228, %v1699
    %v1701 = vpop.f32.mrf.mxu0
    %v1702 = vadd.f32 %v224, %v1701
    %v1703 = vpop.f32.mrf.mxu0
    %v1704 = vadd.f32 %v228, %v1703
    %1705 = vmatprep.mubr.bf16.mxu0 0
    %1706 = vmatmul.mubr.bf16.gmra.mxu0 %v394
    %v1707 = vpop.f32.mrf.mxu0
    %v1708 = vadd.f32 %v224, %v1707
    %v1709 = vpop.f32.mrf.mxu0
    %v1710 = vadd.f32 %v228, %v1709
    %v1711 = vpop.f32.mrf.mxu0
    %v1712 = vadd.f32 %v224, %v1711
    %v1713 = vpop.f32.mrf.mxu0
    %v1714 = vadd.f32 %v228, %v1713
    %1715 = vmatprep.mubr.bf16.mxu0 0
    %1716 = vmatmul.mubr.bf16.gmra.mxu0 %v395
    %v1717 = vpop.f32.mrf.mxu0
    %v1718 = vadd.f32 %v224, %v1717
    %v1719 = vpop.f32.mrf.mxu0
    %v1720 = vadd.f32 %v228, %v1719
    %v1721 = vpop.f32.mrf.mxu0
    %v1722 = vadd.f32 %v224, %v1721
    %v1723 = vpop.f32.mrf.mxu0
    %v1724 = vadd.f32 %v228, %v1723
    %1725 = vmatprep.mubr.bf16.mxu0 0
    %1726 = vmatmul.mubr.bf16.gmra.mxu0 %v396
    %v1727 = vpop.f32.mrf.mxu0
    %v1728 = vadd.f32 %v224, %v1727
    %v1729 = vpop.f32.mrf.mxu0
    %v1730 = vadd.f32 %v228, %v1729
    %v1731 = vpop.f32.mrf.mxu0
    %v1732 = vadd.f32 %v224, %v1731
    %v1733 = vpop.f32.mrf.mxu0
    %v1734 = vadd.f32 %v228, %v1733
    %1735 = vmatprep.mubr.bf16.mxu0 0
    %1736 = vmatmul.mubr.bf16.gmra.mxu0 %v397
    %v1737 = vpop.f32.mrf.mxu0
    %v1738 = vadd.f32 %v224, %v1737
    %v1739 = vpop.f32.mrf.mxu0
    %v1740 = vadd.f32 %v228, %v1739
    %v1741 = vpop.f32.mrf.mxu0
    %v1742 = vadd.f32 %v224, %v1741
    %v1743 = vpop.f32.mrf.mxu0
    %v1744 = vadd.f32 %v228, %v1743
    %1745 = vmatprep.mubr.bf16.mxu0 0
    %1746 = vmatmul.mubr.bf16.gmra.mxu0 %v398
    %v1747 = vpop.f32.mrf.mxu0
    %v1748 = vadd.f32 %v224, %v1747
    %v1749 = vpop.f32.mrf.mxu0
    %v1750 = vadd.f32 %v228, %v1749
    %v1751 = vpop.f32.mrf.mxu0
    %v1752 = vadd.f32 %v224, %v1751
    %v1753 = vpop.f32.mrf.mxu0
    %v1754 = vadd.f32 %v228, %v1753
    %1755 = vmatprep.mubr.bf16.mxu0 0
    %1756 = vmatmul.mubr.bf16.gmra.mxu0 %v399
    %v1757 = vpop.f32.mrf.mxu0
    %v1758 = vadd.f32 %v224, %v1757
    %v1759 = vpop.f32.mrf.mxu0
    %v1760 = vadd.f32 %v228, %v1759
    %v1761 = vpop.f32.mrf.mxu0
    %v1762 = vadd.f32 %v224, %v1761
    %v1763 = vpop.f32.mrf.mxu0
    %v1764 = vadd.f32 %v228, %v1763
    %1765 = vmatprep.mubr.bf16.mxu0 0
    %1766 = vmatmul.mubr.bf16.gmra.mxu0 %v400
    %v1767 = vpop.f32.mrf.mxu0
    %v1768 = vadd.f32 %v224, %v1767
    %v1769 = vpop.f32.mrf.mxu0
    %v1770 = vadd.f32 %v228, %v1769
    %v1771 = vpop.f32.mrf.mxu0
    %v1772 = vadd.f32 %v224, %v1771
    %v1773 = vpop.f32.mrf.mxu0
    %v1774 = vadd.f32 %v228, %v1773
    %1775 = vmatprep.mubr.bf16.mxu0 0
    %1776 = vmatmul.mubr.bf16.gmra.mxu0 %v401
    %v1777 = vpop.f32.mrf.mxu0
    %v1778 = vadd.f32 %v224, %v1777
    %v1779 = vpop.f32.mrf.mxu0
    %v1780 = vadd.f32 %v228, %v1779
    %v1781 = vpop.f32.mrf.mxu0
    %v1782 = vadd.f32 %v224, %v1781
    %v1783 = vpop.f32.mrf.mxu0
    %v1784 = vadd.f32 %v228, %v1783
    %1785 = vmatprep.mubr.bf16.mxu0 0
    %1786 = vmatmul.mubr.bf16.gmra.mxu0 %v402
    %v1787 = vpop.f32.mrf.mxu0
    %v1788 = vadd.f32 %v224, %v1787
    %v1789 = vpop.f32.mrf.mxu0
    %v1790 = vadd.f32 %v228, %v1789
    %v1791 = vpop.f32.mrf.mxu0
    %v1792 = vadd.f32 %v224, %v1791
    %v1793 = vpop.f32.mrf.mxu0
    %v1794 = vadd.f32 %v228, %v1793
    %1795 = vmatprep.mubr.bf16.mxu0 0
    %1796 = vmatmul.mubr.bf16.gmra.mxu0 %v403
    %v1797 = vpop.f32.mrf.mxu0
    %v1798 = vadd.f32 %v224, %v1797
    %v1799 = vpop.f32.mrf.mxu0
    %v1800 = vadd.f32 %v228, %v1799
    %v1801 = vpop.f32.mrf.mxu0
    %v1802 = vadd.f32 %v224, %v1801
    %v1803 = vpop.f32.mrf.mxu0
    %v1804 = vadd.f32 %v228, %v1803
    %1805 = vmatprep.mubr.bf16.mxu0 0
    %1806 = vmatmul.mubr.bf16.gmra.mxu0 %v404
    %v1807 = vpop.f32.mrf.mxu0
    %v1808 = vadd.f32 %v224, %v1807
    %v1809 = vpop.f32.mrf.mxu0
    %v1810 = vadd.f32 %v228, %v1809
    %v1811 = vpop.f32.mrf.mxu0
    %v1812 = vadd.f32 %v224, %v1811
    %v1813 = vpop.f32.mrf.mxu0
    %v1814 = vadd.f32 %v228, %v1813
    %1815 = vdwg.mxu0
    %1816 = vmatprep.subr.bf16.mxu0 %v692
    %1817 = vmatpush1.bf16.msra.mxu0 %v691
    %1818 = vmatprep.subr.bf16.mxu0 %v684
    %1819 = vmatpush1.bf16.msra.mxu0 %v683
    %1820 = vmatprep.subr.bf16.mxu0 %v676
    %1821 = vmatpush1.bf16.msra.mxu0 %v675
    %1822 = vmatprep.subr.bf16.mxu0 %v668
    %1823 = vmatpush1.bf16.msra.mxu0 %v667
    %1824 = vmatprep.subr.bf16.mxu0 %v660
    %1825 = vmatpush1.bf16.msra.mxu0 %v659
    %1826 = vmatprep.subr.bf16.mxu0 %v652
    %1827 = vmatpush1.bf16.msra.mxu0 %v651
    %1828 = vmatprep.subr.bf16.mxu0 %v644
    %1829 = vmatpush1.bf16.msra.mxu0 %v643
    %1830 = vmatprep.subr.bf16.mxu0 %v636
    %1831 = vmatpush1.bf16.msra.mxu0 %v635
    %1832 = vmatprep.subr.bf16.mxu0 0
    %1833 = vmatpush2.bf16.msra.mxu0 0
    %1834 = vmatprep.subr.bf16.mxu0 0
    %1835 = vmatpush2.bf16.msra.mxu0 0
    %1836 = vmatprep.subr.bf16.mxu0 0
    %1837 = vmatpush2.bf16.msra.mxu0 0
    %1838 = vmatprep.subr.bf16.mxu0 0
    %1839 = vmatpush2.bf16.msra.mxu0 0
    %1840 = vmatprep.subr.bf16.mxu0 0
    %1841 = vmatpush2.bf16.msra.mxu0 0
    %1842 = vmatprep.subr.bf16.mxu0 0
    %1843 = vmatpush2.bf16.msra.mxu0 0
    %1844 = vmatprep.subr.bf16.mxu0 0
    %1845 = vmatpush2.bf16.msra.mxu0 0
    %1846 = vmatprep.subr.bf16.mxu0 0
    %1847 = vmatpush2.bf16.msra.mxu0 0
    %1848 = vmatprep.mubr.bf16.mxu0 0
    %1849 = vmatmul.mubr.bf16.gmra.mxu0 %v373
    %v1850 = vpop.f32.mrf.mxu0
    %v1851 = vadd.f32 %v232, %v1850
    %v1852 = vpop.f32.mrf.mxu0
    %v1853 = vadd.f32 %v236, %v1852
    %v1854 = vpop.f32.mrf.mxu0
    %v1855 = vadd.f32 %v232, %v1854
    %v1856 = vpop.f32.mrf.mxu0
    %v1857 = vadd.f32 %v236, %v1856
    %1858 = vmatprep.mubr.bf16.mxu0 0
    %1859 = vmatmul.mubr.bf16.gmra.mxu0 %v374
    %v1860 = vpop.f32.mrf.mxu0
    %v1861 = vadd.f32 %v232, %v1860
    %v1862 = vpop.f32.mrf.mxu0
    %v1863 = vadd.f32 %v236, %v1862
    %v1864 = vpop.f32.mrf.mxu0
    %v1865 = vadd.f32 %v232, %v1864
    %v1866 = vpop.f32.mrf.mxu0
    %v1867 = vadd.f32 %v236, %v1866
    %1868 = vmatprep.mubr.bf16.mxu0 0
    %1869 = vmatmul.mubr.bf16.gmra.mxu0 %v375
    %v1870 = vpop.f32.mrf.mxu0
    %v1871 = vadd.f32 %v232, %v1870
    %v1872 = vpop.f32.mrf.mxu0
    %v1873 = vadd.f32 %v236, %v1872
    %v1874 = vpop.f32.mrf.mxu0
    %v1875 = vadd.f32 %v232, %v1874
    %v1876 = vpop.f32.mrf.mxu0
    %v1877 = vadd.f32 %v236, %v1876
    %1878 = vmatprep.mubr.bf16.mxu0 0
    %1879 = vmatmul.mubr.bf16.gmra.mxu0 %v376
    %v1880 = vpop.f32.mrf.mxu0
    %v1881 = vadd.f32 %v232, %v1880
    %v1882 = vpop.f32.mrf.mxu0
    %v1883 = vadd.f32 %v236, %v1882
    %v1884 = vpop.f32.mrf.mxu0
    %v1885 = vadd.f32 %v232, %v1884
    %v1886 = vpop.f32.mrf.mxu0
    %v1887 = vadd.f32 %v236, %v1886
    %1888 = vmatprep.mubr.bf16.mxu0 0
    %1889 = vmatmul.mubr.bf16.gmra.mxu0 %v377
    %v1890 = vpop.f32.mrf.mxu0
    %v1891 = vadd.f32 %v232, %v1890
    %v1892 = vpop.f32.mrf.mxu0
    %v1893 = vadd.f32 %v236, %v1892
    %v1894 = vpop.f32.mrf.mxu0
    %v1895 = vadd.f32 %v232, %v1894
    %v1896 = vpop.f32.mrf.mxu0
    %v1897 = vadd.f32 %v236, %v1896
    %1898 = vmatprep.mubr.bf16.mxu0 0
    %1899 = vmatmul.mubr.bf16.gmra.mxu0 %v378
    %v1900 = vpop.f32.mrf.mxu0
    %v1901 = vadd.f32 %v232, %v1900
    %v1902 = vpop.f32.mrf.mxu0
    %v1903 = vadd.f32 %v236, %v1902
    %v1904 = vpop.f32.mrf.mxu0
    %v1905 = vadd.f32 %v232, %v1904
    %v1906 = vpop.f32.mrf.mxu0
    %v1907 = vadd.f32 %v236, %v1906
    %1908 = vmatprep.mubr.bf16.mxu0 0
    %1909 = vmatmul.mubr.bf16.gmra.mxu0 %v379
    %v1910 = vpop.f32.mrf.mxu0
    %v1911 = vadd.f32 %v232, %v1910
    %v1912 = vpop.f32.mrf.mxu0
    %v1913 = vadd.f32 %v236, %v1912
    %v1914 = vpop.f32.mrf.mxu0
    %v1915 = vadd.f32 %v232, %v1914
    %v1916 = vpop.f32.mrf.mxu0
    %v1917 = vadd.f32 %v236, %v1916
    %1918 = vmatprep.mubr.bf16.mxu0 0
    %1919 = vmatmul.mubr.bf16.gmra.mxu0 %v380
    %v1920 = vpop.f32.mrf.mxu0
    %v1921 = vadd.f32 %v232, %v1920
    %v1922 = vpop.f32.mrf.mxu0
    %v1923 = vadd.f32 %v236, %v1922
    %v1924 = vpop.f32.mrf.mxu0
    %v1925 = vadd.f32 %v232, %v1924
    %v1926 = vpop.f32.mrf.mxu0
    %v1927 = vadd.f32 %v236, %v1926
    %1928 = vmatprep.mubr.bf16.mxu0 0
    %1929 = vmatmul.mubr.bf16.gmra.mxu0 %v381
    %v1930 = vpop.f32.mrf.mxu0
    %v1931 = vadd.f32 %v232, %v1930
    %v1932 = vpop.f32.mrf.mxu0
    %v1933 = vadd.f32 %v236, %v1932
    %v1934 = vpop.f32.mrf.mxu0
    %v1935 = vadd.f32 %v232, %v1934
    %v1936 = vpop.f32.mrf.mxu0
    %v1937 = vadd.f32 %v236, %v1936
    %1938 = vmatprep.mubr.bf16.mxu0 0
    %1939 = vmatmul.mubr.bf16.gmra.mxu0 %v382
    %v1940 = vpop.f32.mrf.mxu0
    %v1941 = vadd.f32 %v232, %v1940
    %v1942 = vpop.f32.mrf.mxu0
    %v1943 = vadd.f32 %v236, %v1942
    %v1944 = vpop.f32.mrf.mxu0
    %v1945 = vadd.f32 %v232, %v1944
    %v1946 = vpop.f32.mrf.mxu0
    %v1947 = vadd.f32 %v236, %v1946
    %1948 = vmatprep.mubr.bf16.mxu0 0
    %1949 = vmatmul.mubr.bf16.gmra.mxu0 %v383
    %v1950 = vpop.f32.mrf.mxu0
    %v1951 = vadd.f32 %v232, %v1950
    %v1952 = vpop.f32.mrf.mxu0
    %v1953 = vadd.f32 %v236, %v1952
    %v1954 = vpop.f32.mrf.mxu0
    %v1955 = vadd.f32 %v232, %v1954
    %v1956 = vpop.f32.mrf.mxu0
    %v1957 = vadd.f32 %v236, %v1956
    %1958 = vmatprep.mubr.bf16.mxu0 0
    %1959 = vmatmul.mubr.bf16.gmra.mxu0 %v384
    %v1960 = vpop.f32.mrf.mxu0
    %v1961 = vadd.f32 %v232, %v1960
    %v1962 = vpop.f32.mrf.mxu0
    %v1963 = vadd.f32 %v236, %v1962
    %v1964 = vpop.f32.mrf.mxu0
    %v1965 = vadd.f32 %v232, %v1964
    %v1966 = vpop.f32.mrf.mxu0
    %v1967 = vadd.f32 %v236, %v1966
    %1968 = vmatprep.mubr.bf16.mxu0 0
    %1969 = vmatmul.mubr.bf16.gmra.mxu0 %v385
    %v1970 = vpop.f32.mrf.mxu0
    %v1971 = vadd.f32 %v232, %v1970
    %v1972 = vpop.f32.mrf.mxu0
    %v1973 = vadd.f32 %v236, %v1972
    %v1974 = vpop.f32.mrf.mxu0
    %v1975 = vadd.f32 %v232, %v1974
    %v1976 = vpop.f32.mrf.mxu0
    %v1977 = vadd.f32 %v236, %v1976
    %1978 = vmatprep.mubr.bf16.mxu0 0
    %1979 = vmatmul.mubr.bf16.gmra.mxu0 %v386
    %v1980 = vpop.f32.mrf.mxu0
    %v1981 = vadd.f32 %v232, %v1980
    %v1982 = vpop.f32.mrf.mxu0
    %v1983 = vadd.f32 %v236, %v1982
    %v1984 = vpop.f32.mrf.mxu0
    %v1985 = vadd.f32 %v232, %v1984
    %v1986 = vpop.f32.mrf.mxu0
    %v1987 = vadd.f32 %v236, %v1986
    %1988 = vmatprep.mubr.bf16.mxu0 0
    %1989 = vmatmul.mubr.bf16.gmra.mxu0 %v387
    %v1990 = vpop.f32.mrf.mxu0
    %v1991 = vadd.f32 %v232, %v1990
    %v1992 = vpop.f32.mrf.mxu0
    %v1993 = vadd.f32 %v236, %v1992
    %v1994 = vpop.f32.mrf.mxu0
    %v1995 = vadd.f32 %v232, %v1994
    %v1996 = vpop.f32.mrf.mxu0
    %v1997 = vadd.f32 %v236, %v1996
    %1998 = vmatprep.mubr.bf16.mxu0 0
    %1999 = vmatmul.mubr.bf16.gmra.mxu0 %v388
    %v2000 = vpop.f32.mrf.mxu0
    %v2001 = vadd.f32 %v232, %v2000
    %v2002 = vpop.f32.mrf.mxu0
    %v2003 = vadd.f32 %v236, %v2002
    %v2004 = vpop.f32.mrf.mxu0
    %v2005 = vadd.f32 %v232, %v2004
    %v2006 = vpop.f32.mrf.mxu0
    %v2007 = vadd.f32 %v236, %v2006
    %2008 = vmatprep.mubr.bf16.mxu0 0
    %2009 = vmatmul.mubr.bf16.gmra.mxu0 %v389
    %v2010 = vpop.f32.mrf.mxu0
    %v2011 = vadd.f32 %v232, %v2010
    %v2012 = vpop.f32.mrf.mxu0
    %v2013 = vadd.f32 %v236, %v2012
    %v2014 = vpop.f32.mrf.mxu0
    %v2015 = vadd.f32 %v232, %v2014
    %v2016 = vpop.f32.mrf.mxu0
    %v2017 = vadd.f32 %v236, %v2016
    %2018 = vmatprep.mubr.bf16.mxu0 0
    %2019 = vmatmul.mubr.bf16.gmra.mxu0 %v390
    %v2020 = vpop.f32.mrf.mxu0
    %v2021 = vadd.f32 %v232, %v2020
    %v2022 = vpop.f32.mrf.mxu0
    %v2023 = vadd.f32 %v236, %v2022
    %v2024 = vpop.f32.mrf.mxu0
    %v2025 = vadd.f32 %v232, %v2024
    %v2026 = vpop.f32.mrf.mxu0
    %v2027 = vadd.f32 %v236, %v2026
    %2028 = vmatprep.mubr.bf16.mxu0 0
    %2029 = vmatmul.mubr.bf16.gmra.mxu0 %v391
    %v2030 = vpop.f32.mrf.mxu0
    %v2031 = vadd.f32 %v232, %v2030
    %v2032 = vpop.f32.mrf.mxu0
    %v2033 = vadd.f32 %v236, %v2032
    %v2034 = vpop.f32.mrf.mxu0
    %v2035 = vadd.f32 %v232, %v2034
    %v2036 = vpop.f32.mrf.mxu0
    %v2037 = vadd.f32 %v236, %v2036
    %2038 = vmatprep.mubr.bf16.mxu0 0
    %2039 = vmatmul.mubr.bf16.gmra.mxu0 %v392
    %v2040 = vpop.f32.mrf.mxu0
    %v2041 = vadd.f32 %v232, %v2040
    %v2042 = vpop.f32.mrf.mxu0
    %v2043 = vadd.f32 %v236, %v2042
    %v2044 = vpop.f32.mrf.mxu0
    %v2045 = vadd.f32 %v232, %v2044
    %v2046 = vpop.f32.mrf.mxu0
    %v2047 = vadd.f32 %v236, %v2046
    %2048 = vmatprep.mubr.bf16.mxu0 0
    %2049 = vmatmul.mubr.bf16.gmra.mxu0 %v393
    %v2050 = vpop.f32.mrf.mxu0
    %v2051 = vadd.f32 %v232, %v2050
    %v2052 = vpop.f32.mrf.mxu0
    %v2053 = vadd.f32 %v236, %v2052
    %v2054 = vpop.f32.mrf.mxu0
    %v2055 = vadd.f32 %v232, %v2054
    %v2056 = vpop.f32.mrf.mxu0
    %v2057 = vadd.f32 %v236, %v2056
    %2058 = vmatprep.mubr.bf16.mxu0 0
    %2059 = vmatmul.mubr.bf16.gmra.mxu0 %v394
    %v2060 = vpop.f32.mrf.mxu0
    %v2061 = vadd.f32 %v232, %v2060
    %v2062 = vpop.f32.mrf.mxu0
    %v2063 = vadd.f32 %v236, %v2062
    %v2064 = vpop.f32.mrf.mxu0
    %v2065 = vadd.f32 %v232, %v2064
    %v2066 = vpop.f32.mrf.mxu0
    %v2067 = vadd.f32 %v236, %v2066
    %2068 = vmatprep.mubr.bf16.mxu0 0
    %2069 = vmatmul.mubr.bf16.gmra.mxu0 %v395
    %v2070 = vpop.f32.mrf.mxu0
    %v2071 = vadd.f32 %v232, %v2070
    %v2072 = vpop.f32.mrf.mxu0
    %v2073 = vadd.f32 %v236, %v2072
    %v2074 = vpop.f32.mrf.mxu0
    %v2075 = vadd.f32 %v232, %v2074
    %v2076 = vpop.f32.mrf.mxu0
    %v2077 = vadd.f32 %v236, %v2076
    %2078 = vmatprep.mubr.bf16.mxu0 0
    %2079 = vmatmul.mubr.bf16.gmra.mxu0 %v396
    %v2080 = vpop.f32.mrf.mxu0
    %v2081 = vadd.f32 %v232, %v2080
    %v2082 = vpop.f32.mrf.mxu0
    %v2083 = vadd.f32 %v236, %v2082
    %v2084 = vpop.f32.mrf.mxu0
    %v2085 = vadd.f32 %v232, %v2084
    %v2086 = vpop.f32.mrf.mxu0
    %v2087 = vadd.f32 %v236, %v2086
    %2088 = vmatprep.mubr.bf16.mxu0 0
    %2089 = vmatmul.mubr.bf16.gmra.mxu0 %v397
    %v2090 = vpop.f32.mrf.mxu0
    %v2091 = vadd.f32 %v232, %v2090
    %v2092 = vpop.f32.mrf.mxu0
    %v2093 = vadd.f32 %v236, %v2092
    %v2094 = vpop.f32.mrf.mxu0
    %v2095 = vadd.f32 %v232, %v2094
    %v2096 = vpop.f32.mrf.mxu0
    %v2097 = vadd.f32 %v236, %v2096
    %2098 = vmatprep.mubr.bf16.mxu0 0
    %2099 = vmatmul.mubr.bf16.gmra.mxu0 %v398
    %v2100 = vpop.f32.mrf.mxu0
    %v2101 = vadd.f32 %v232, %v2100
    %v2102 = vpop.f32.mrf.mxu0
    %v2103 = vadd.f32 %v236, %v2102
    %v2104 = vpop.f32.mrf.mxu0
    %v2105 = vadd.f32 %v232, %v2104
    %v2106 = vpop.f32.mrf.mxu0
    %v2107 = vadd.f32 %v236, %v2106
    %2108 = vmatprep.mubr.bf16.mxu0 0
    %2109 = vmatmul.mubr.bf16.gmra.mxu0 %v399
    %v2110 = vpop.f32.mrf.mxu0
    %v2111 = vadd.f32 %v232, %v2110
    %v2112 = vpop.f32.mrf.mxu0
    %v2113 = vadd.f32 %v236, %v2112
    %v2114 = vpop.f32.mrf.mxu0
    %v2115 = vadd.f32 %v232, %v2114
    %v2116 = vpop.f32.mrf.mxu0
    %v2117 = vadd.f32 %v236, %v2116
    %2118 = vmatprep.mubr.bf16.mxu0 0
    %2119 = vmatmul.mubr.bf16.gmra.mxu0 %v400
    %v2120 = vpop.f32.mrf.mxu0
    %v2121 = vadd.f32 %v232, %v2120
    %v2122 = vpop.f32.mrf.mxu0
    %v2123 = vadd.f32 %v236, %v2122
    %v2124 = vpop.f32.mrf.mxu0
    %v2125 = vadd.f32 %v232, %v2124
    %v2126 = vpop.f32.mrf.mxu0
    %v2127 = vadd.f32 %v236, %v2126
    %2128 = vmatprep.mubr.bf16.mxu0 0
    %2129 = vmatmul.mubr.bf16.gmra.mxu0 %v401
    %v2130 = vpop.f32.mrf.mxu0
    %v2131 = vadd.f32 %v232, %v2130
    %v2132 = vpop.f32.mrf.mxu0
    %v2133 = vadd.f32 %v236, %v2132
    %v2134 = vpop.f32.mrf.mxu0
    %v2135 = vadd.f32 %v232, %v2134
    %v2136 = vpop.f32.mrf.mxu0
    %v2137 = vadd.f32 %v236, %v2136
    %2138 = vmatprep.mubr.bf16.mxu0 0
    %2139 = vmatmul.mubr.bf16.gmra.mxu0 %v402
    %v2140 = vpop.f32.mrf.mxu0
    %v2141 = vadd.f32 %v232, %v2140
    %v2142 = vpop.f32.mrf.mxu0
    %v2143 = vadd.f32 %v236, %v2142
    %v2144 = vpop.f32.mrf.mxu0
    %v2145 = vadd.f32 %v232, %v2144
    %v2146 = vpop.f32.mrf.mxu0
    %v2147 = vadd.f32 %v236, %v2146
    %2148 = vmatprep.mubr.bf16.mxu0 0
    %2149 = vmatmul.mubr.bf16.gmra.mxu0 %v403
    %v2150 = vpop.f32.mrf.mxu0
    %v2151 = vadd.f32 %v232, %v2150
    %v2152 = vpop.f32.mrf.mxu0
    %v2153 = vadd.f32 %v236, %v2152
    %v2154 = vpop.f32.mrf.mxu0
    %v2155 = vadd.f32 %v232, %v2154
    %v2156 = vpop.f32.mrf.mxu0
    %v2157 = vadd.f32 %v236, %v2156
    %2158 = vmatprep.mubr.bf16.mxu0 0
    %2159 = vmatmul.mubr.bf16.gmra.mxu0 %v404
    %v2160 = vpop.f32.mrf.mxu0
    %v2161 = vadd.f32 %v232, %v2160
    %v2162 = vpop.f32.mrf.mxu0
    %v2163 = vadd.f32 %v236, %v2162
    %v2164 = vpop.f32.mrf.mxu0
    %v2165 = vadd.f32 %v232, %v2164
    %v2166 = vpop.f32.mrf.mxu0
    %v2167 = vadd.f32 %v236, %v2166
    %2168 = vdwg.mxu0
    %v2169 = vmax.f32 %v792, 0.0
    %v2170 = vmax.f32 %v794, 0.0
    %v2171 = vmax.f32 %v1145, 0.0
    %v2172 = vmax.f32 %v1147, 0.0
    %v2173 = vmax.f32 %v1498, 0.0
    %v2174 = vmax.f32 %v1500, 0.0
    %v2175 = vmax.f32 %v1851, 0.0
    %v2176 = vmax.f32 %v1853, 0.0
    %v2177 = vmax.f32 %v796, 0.0
    %v2178 = vmax.f32 %v798, 0.0
    %v2179 = vmax.f32 %v1149, 0.0
    %v2180 = vmax.f32 %v1151, 0.0
    %v2181 = vmax.f32 %v1502, 0.0
    %v2182 = vmax.f32 %v1504, 0.0
    %v2183 = vmax.f32 %v1855, 0.0
    %v2184 = vmax.f32 %v1857, 0.0
    %v2185 = vmax.f32 %v802, 0.0
    %v2186 = vmax.f32 %v804, 0.0
    %v2187 = vmax.f32 %v1155, 0.0
    %v2188 = vmax.f32 %v1157, 0.0
    %v2189 = vmax.f32 %v1508, 0.0
    %v2190 = vmax.f32 %v1510, 0.0
    %v2191 = vmax.f32 %v1861, 0.0
    %v2192 = vmax.f32 %v1863, 0.0
    %v2193 = vmax.f32 %v806, 0.0
    %v2194 = vmax.f32 %v808, 0.0
    %v2195 = vmax.f32 %v1159, 0.0
    %v2196 = vmax.f32 %v1161, 0.0
    %v2197 = vmax.f32 %v1512, 0.0
    %v2198 = vmax.f32 %v1514, 0.0
    %v2199 = vmax.f32 %v1865, 0.0
    %v2200 = vmax.f32 %v1867, 0.0
    %v2201 = vmax.f32 %v812, 0.0
    %v2202 = vmax.f32 %v814, 0.0
    %v2203 = vmax.f32 %v1165, 0.0
    %v2204 = vmax.f32 %v1167, 0.0
    %v2205 = vmax.f32 %v1518, 0.0
    %v2206 = vmax.f32 %v1520, 0.0
    %v2207 = vmax.f32 %v1871, 0.0
    %v2208 = vmax.f32 %v1873, 0.0
    %v2209 = vmax.f32 %v816, 0.0
    %v2210 = vmax.f32 %v818, 0.0
    %v2211 = vmax.f32 %v1169, 0.0
    %v2212 = vmax.f32 %v1171, 0.0
    %v2213 = vmax.f32 %v1522, 0.0
    %v2214 = vmax.f32 %v1524, 0.0
    %v2215 = vmax.f32 %v1875, 0.0
    %v2216 = vmax.f32 %v1877, 0.0
    %v2217 = vmax.f32 %v822, 0.0
    %v2218 = vmax.f32 %v824, 0.0
    %v2219 = vmax.f32 %v1175, 0.0
    %v2220 = vmax.f32 %v1177, 0.0
    %v2221 = vmax.f32 %v1528, 0.0
    %v2222 = vmax.f32 %v1530, 0.0
    %v2223 = vmax.f32 %v1881, 0.0
    %v2224 = vmax.f32 %v1883, 0.0
    %v2225 = vmax.f32 %v826, 0.0
    %v2226 = vmax.f32 %v828, 0.0
    %v2227 = vmax.f32 %v1179, 0.0
    %v2228 = vmax.f32 %v1181, 0.0
    %v2229 = vmax.f32 %v1532, 0.0
    %v2230 = vmax.f32 %v1534, 0.0
    %v2231 = vmax.f32 %v1885, 0.0
    %v2232 = vmax.f32 %v1887, 0.0
    %v2233 = vmax.f32 %v832, 0.0
    %v2234 = vmax.f32 %v834, 0.0
    %v2235 = vmax.f32 %v1185, 0.0
    %v2236 = vmax.f32 %v1187, 0.0
    %v2237 = vmax.f32 %v1538, 0.0
    %v2238 = vmax.f32 %v1540, 0.0
    %v2239 = vmax.f32 %v1891, 0.0
    %v2240 = vmax.f32 %v1893, 0.0
    %v2241 = vmax.f32 %v836, 0.0
    %v2242 = vmax.f32 %v838, 0.0
    %v2243 = vmax.f32 %v1189, 0.0
    %v2244 = vmax.f32 %v1191, 0.0
    %v2245 = vmax.f32 %v1542, 0.0
    %v2246 = vmax.f32 %v1544, 0.0
    %v2247 = vmax.f32 %v1895, 0.0
    %v2248 = vmax.f32 %v1897, 0.0
    %v2249 = vmax.f32 %v842, 0.0
    %v2250 = vmax.f32 %v844, 0.0
    %v2251 = vmax.f32 %v1195, 0.0
    %v2252 = vmax.f32 %v1197, 0.0
    %v2253 = vmax.f32 %v1548, 0.0
    %v2254 = vmax.f32 %v1550, 0.0
    %v2255 = vmax.f32 %v1901, 0.0
    %v2256 = vmax.f32 %v1903, 0.0
    %v2257 = vmax.f32 %v846, 0.0
    %v2258 = vmax.f32 %v848, 0.0
    %v2259 = vmax.f32 %v1199, 0.0
    %v2260 = vmax.f32 %v1201, 0.0
    %v2261 = vmax.f32 %v1552, 0.0
    %v2262 = vmax.f32 %v1554, 0.0
    %v2263 = vmax.f32 %v1905, 0.0
    %v2264 = vmax.f32 %v1907, 0.0
    %v2265 = vmax.f32 %v852, 0.0
    %v2266 = vmax.f32 %v854, 0.0
    %v2267 = vmax.f32 %v1205, 0.0
    %v2268 = vmax.f32 %v1207, 0.0
    %v2269 = vmax.f32 %v1558, 0.0
    %v2270 = vmax.f32 %v1560, 0.0
    %v2271 = vmax.f32 %v1911, 0.0
    %v2272 = vmax.f32 %v1913, 0.0
    %v2273 = vmax.f32 %v856, 0.0
    %v2274 = vmax.f32 %v858, 0.0
    %v2275 = vmax.f32 %v1209, 0.0
    %v2276 = vmax.f32 %v1211, 0.0
    %v2277 = vmax.f32 %v1562, 0.0
    %v2278 = vmax.f32 %v1564, 0.0
    %v2279 = vmax.f32 %v1915, 0.0
    %v2280 = vmax.f32 %v1917, 0.0
    %v2281 = vmax.f32 %v862, 0.0
    %v2282 = vmax.f32 %v864, 0.0
    %v2283 = vmax.f32 %v1215, 0.0
    %v2284 = vmax.f32 %v1217, 0.0
    %v2285 = vmax.f32 %v1568, 0.0
    %v2286 = vmax.f32 %v1570, 0.0
    %v2287 = vmax.f32 %v1921, 0.0
    %v2288 = vmax.f32 %v1923, 0.0
    %v2289 = vmax.f32 %v866, 0.0
    %v2290 = vmax.f32 %v868, 0.0
    %v2291 = vmax.f32 %v1219, 0.0
    %v2292 = vmax.f32 %v1221, 0.0
    %v2293 = vmax.f32 %v1572, 0.0
    %v2294 = vmax.f32 %v1574, 0.0
    %v2295 = vmax.f32 %v1925, 0.0
    %v2296 = vmax.f32 %v1927, 0.0
    %v2297 = vmax.f32 %v872, 0.0
    %v2298 = vmax.f32 %v874, 0.0
    %v2299 = vmax.f32 %v1225, 0.0
    %v2300 = vmax.f32 %v1227, 0.0
    %v2301 = vmax.f32 %v1578, 0.0
    %v2302 = vmax.f32 %v1580, 0.0
    %v2303 = vmax.f32 %v1931, 0.0
    %v2304 = vmax.f32 %v1933, 0.0
    %v2305 = vmax.f32 %v876, 0.0
    %v2306 = vmax.f32 %v878, 0.0
    %v2307 = vmax.f32 %v1229, 0.0
    %v2308 = vmax.f32 %v1231, 0.0
    %v2309 = vmax.f32 %v1582, 0.0
    %v2310 = vmax.f32 %v1584, 0.0
    %v2311 = vmax.f32 %v1935, 0.0
    %v2312 = vmax.f32 %v1937, 0.0
    %v2313 = vmax.f32 %v882, 0.0
    %v2314 = vmax.f32 %v884, 0.0
    %v2315 = vmax.f32 %v1235, 0.0
    %v2316 = vmax.f32 %v1237, 0.0
    %v2317 = vmax.f32 %v1588, 0.0
    %v2318 = vmax.f32 %v1590, 0.0
    %v2319 = vmax.f32 %v1941, 0.0
    %v2320 = vmax.f32 %v1943, 0.0
    %v2321 = vmax.f32 %v886, 0.0
    %v2322 = vmax.f32 %v888, 0.0
    %v2323 = vmax.f32 %v1239, 0.0
    %v2324 = vmax.f32 %v1241, 0.0
    %v2325 = vmax.f32 %v1592, 0.0
    %v2326 = vmax.f32 %v1594, 0.0
    %v2327 = vmax.f32 %v1945, 0.0
    %v2328 = vmax.f32 %v1947, 0.0
    %v2329 = vmax.f32 %v892, 0.0
    %v2330 = vmax.f32 %v894, 0.0
    %v2331 = vmax.f32 %v1245, 0.0
    %v2332 = vmax.f32 %v1247, 0.0
    %v2333 = vmax.f32 %v1598, 0.0
    %v2334 = vmax.f32 %v1600, 0.0
    %v2335 = vmax.f32 %v1951, 0.0
    %v2336 = vmax.f32 %v1953, 0.0
    %v2337 = vmax.f32 %v896, 0.0
    %v2338 = vmax.f32 %v898, 0.0
    %v2339 = vmax.f32 %v1249, 0.0
    %v2340 = vmax.f32 %v1251, 0.0
    %v2341 = vmax.f32 %v1602, 0.0
    %v2342 = vmax.f32 %v1604, 0.0
    %v2343 = vmax.f32 %v1955, 0.0
    %v2344 = vmax.f32 %v1957, 0.0
    %v2345 = vmax.f32 %v902, 0.0
    %v2346 = vmax.f32 %v904, 0.0
    %v2347 = vmax.f32 %v1255, 0.0
    %v2348 = vmax.f32 %v1257, 0.0
    %v2349 = vmax.f32 %v1608, 0.0
    %v2350 = vmax.f32 %v1610, 0.0
    %v2351 = vmax.f32 %v1961, 0.0
    %v2352 = vmax.f32 %v1963, 0.0
    %v2353 = vmax.f32 %v906, 0.0
    %v2354 = vmax.f32 %v908, 0.0
    %v2355 = vmax.f32 %v1259, 0.0
    %v2356 = vmax.f32 %v1261, 0.0
    %v2357 = vmax.f32 %v1612, 0.0
    %v2358 = vmax.f32 %v1614, 0.0
    %v2359 = vmax.f32 %v1965, 0.0
    %v2360 = vmax.f32 %v1967, 0.0
    %v2361 = vmax.f32 %v912, 0.0
    %v2362 = vmax.f32 %v914, 0.0
    %v2363 = vmax.f32 %v1265, 0.0
    %v2364 = vmax.f32 %v1267, 0.0
    %v2365 = vmax.f32 %v1618, 0.0
    %v2366 = vmax.f32 %v1620, 0.0
    %v2367 = vmax.f32 %v1971, 0.0
    %v2368 = vmax.f32 %v1973, 0.0
    %v2369 = vmax.f32 %v916, 0.0
    %v2370 = vmax.f32 %v918, 0.0
    %v2371 = vmax.f32 %v1269, 0.0
    %v2372 = vmax.f32 %v1271, 0.0
    %v2373 = vmax.f32 %v1622, 0.0
    %v2374 = vmax.f32 %v1624, 0.0
    %v2375 = vmax.f32 %v1975, 0.0
    %v2376 = vmax.f32 %v1977, 0.0
    %v2377 = vmax.f32 %v922, 0.0
    %v2378 = vmax.f32 %v924, 0.0
    %v2379 = vmax.f32 %v1275, 0.0
    %v2380 = vmax.f32 %v1277, 0.0
    %v2381 = vmax.f32 %v1628, 0.0
    %v2382 = vmax.f32 %v1630, 0.0
    %v2383 = vmax.f32 %v1981, 0.0
    %v2384 = vmax.f32 %v1983, 0.0
    %v2385 = vmax.f32 %v926, 0.0
    %v2386 = vmax.f32 %v928, 0.0
    %v2387 = vmax.f32 %v1279, 0.0
    %v2388 = vmax.f32 %v1281, 0.0
    %v2389 = vmax.f32 %v1632, 0.0
    %v2390 = vmax.f32 %v1634, 0.0
    %v2391 = vmax.f32 %v1985, 0.0
    %v2392 = vmax.f32 %v1987, 0.0
    %v2393 = vmax.f32 %v932, 0.0
    %v2394 = vmax.f32 %v934, 0.0
    %v2395 = vmax.f32 %v1285, 0.0
    %v2396 = vmax.f32 %v1287, 0.0
    %v2397 = vmax.f32 %v1638, 0.0
    %v2398 = vmax.f32 %v1640, 0.0
    %v2399 = vmax.f32 %v1991, 0.0
    %v2400 = vmax.f32 %v1993, 0.0
    %v2401 = vmax.f32 %v936, 0.0
    %v2402 = vmax.f32 %v938, 0.0
    %v2403 = vmax.f32 %v1289, 0.0
    %v2404 = vmax.f32 %v1291, 0.0
    %v2405 = vmax.f32 %v1642, 0.0
    %v2406 = vmax.f32 %v1644, 0.0
    %v2407 = vmax.f32 %v1995, 0.0
    %v2408 = vmax.f32 %v1997, 0.0
    %v2409 = vmax.f32 %v942, 0.0
    %v2410 = vmax.f32 %v944, 0.0
    %v2411 = vmax.f32 %v1295, 0.0
    %v2412 = vmax.f32 %v1297, 0.0
    %v2413 = vmax.f32 %v1648, 0.0
    %v2414 = vmax.f32 %v1650, 0.0
    %v2415 = vmax.f32 %v2001, 0.0
    %v2416 = vmax.f32 %v2003, 0.0
    %v2417 = vmax.f32 %v946, 0.0
    %v2418 = vmax.f32 %v948, 0.0
    %v2419 = vmax.f32 %v1299, 0.0
    %v2420 = vmax.f32 %v1301, 0.0
    %v2421 = vmax.f32 %v1652, 0.0
    %v2422 = vmax.f32 %v1654, 0.0
    %v2423 = vmax.f32 %v2005, 0.0
    %v2424 = vmax.f32 %v2007, 0.0
    %v2425 = vmax.f32 %v952, 0.0
    %v2426 = vmax.f32 %v954, 0.0
    %v2427 = vmax.f32 %v1305, 0.0
    %v2428 = vmax.f32 %v1307, 0.0
    %v2429 = vmax.f32 %v1658, 0.0
    %v2430 = vmax.f32 %v1660, 0.0
    %v2431 = vmax.f32 %v2011, 0.0
    %v2432 = vmax.f32 %v2013, 0.0
    %v2433 = vmax.f32 %v956, 0.0
    %v2434 = vmax.f32 %v958, 0.0
    %v2435 = vmax.f32 %v1309, 0.0
    %v2436 = vmax.f32 %v1311, 0.0
    %v2437 = vmax.f32 %v1662, 0.0
    %v2438 = vmax.f32 %v1664, 0.0
    %v2439 = vmax.f32 %v2015, 0.0
    %v2440 = vmax.f32 %v2017, 0.0
    %v2441 = vmax.f32 %v962, 0.0
    %v2442 = vmax.f32 %v964, 0.0
    %v2443 = vmax.f32 %v1315, 0.0
    %v2444 = vmax.f32 %v1317, 0.0
    %v2445 = vmax.f32 %v1668, 0.0
    %v2446 = vmax.f32 %v1670, 0.0
    %v2447 = vmax.f32 %v2021, 0.0
    %v2448 = vmax.f32 %v2023, 0.0
    %v2449 = vmax.f32 %v966, 0.0
    %v2450 = vmax.f32 %v968, 0.0
    %v2451 = vmax.f32 %v1319, 0.0
    %v2452 = vmax.f32 %v1321, 0.0
    %v2453 = vmax.f32 %v1672, 0.0
    %v2454 = vmax.f32 %v1674, 0.0
    %v2455 = vmax.f32 %v2025, 0.0
    %v2456 = vmax.f32 %v2027, 0.0
    %v2457 = vmax.f32 %v972, 0.0
    %v2458 = vmax.f32 %v974, 0.0
    %v2459 = vmax.f32 %v1325, 0.0
    %v2460 = vmax.f32 %v1327, 0.0
    %v2461 = vmax.f32 %v1678, 0.0
    %v2462 = vmax.f32 %v1680, 0.0
    %v2463 = vmax.f32 %v2031, 0.0
    %v2464 = vmax.f32 %v2033, 0.0
    %v2465 = vmax.f32 %v976, 0.0
    %v2466 = vmax.f32 %v978, 0.0
    %v2467 = vmax.f32 %v1329, 0.0
    %v2468 = vmax.f32 %v1331, 0.0
    %v2469 = vmax.f32 %v1682, 0.0
    %v2470 = vmax.f32 %v1684, 0.0
    %v2471 = vmax.f32 %v2035, 0.0
    %v2472 = vmax.f32 %v2037, 0.0
    %v2473 = vmax.f32 %v982, 0.0
    %v2474 = vmax.f32 %v984, 0.0
    %v2475 = vmax.f32 %v1335, 0.0
    %v2476 = vmax.f32 %v1337, 0.0
    %v2477 = vmax.f32 %v1688, 0.0
    %v2478 = vmax.f32 %v1690, 0.0
    %v2479 = vmax.f32 %v2041, 0.0
    %v2480 = vmax.f32 %v2043, 0.0
    %v2481 = vmax.f32 %v986, 0.0
    %v2482 = vmax.f32 %v988, 0.0
    %v2483 = vmax.f32 %v1339, 0.0
    %v2484 = vmax.f32 %v1341, 0.0
    %v2485 = vmax.f32 %v1692, 0.0
    %v2486 = vmax.f32 %v1694, 0.0
    %v2487 = vmax.f32 %v2045, 0.0
    %v2488 = vmax.f32 %v2047, 0.0
    %v2489 = vmax.f32 %v992, 0.0
    %v2490 = vmax.f32 %v994, 0.0
    %v2491 = vmax.f32 %v1345, 0.0
    %v2492 = vmax.f32 %v1347, 0.0
    %v2493 = vmax.f32 %v1698, 0.0
    %v2494 = vmax.f32 %v1700, 0.0
    %v2495 = vmax.f32 %v2051, 0.0
    %v2496 = vmax.f32 %v2053, 0.0
    %v2497 = vmax.f32 %v996, 0.0
    %v2498 = vmax.f32 %v998, 0.0
    %v2499 = vmax.f32 %v1349, 0.0
    %v2500 = vmax.f32 %v1351, 0.0
    %v2501 = vmax.f32 %v1702, 0.0
    %v2502 = vmax.f32 %v1704, 0.0
    %v2503 = vmax.f32 %v2055, 0.0
    %v2504 = vmax.f32 %v2057, 0.0
    %v2505 = vmax.f32 %v1002, 0.0
    %v2506 = vmax.f32 %v1004, 0.0
    %v2507 = vmax.f32 %v1355, 0.0
    %v2508 = vmax.f32 %v1357, 0.0
    %v2509 = vmax.f32 %v1708, 0.0
    %v2510 = vmax.f32 %v1710, 0.0
    %v2511 = vmax.f32 %v2061, 0.0
    %v2512 = vmax.f32 %v2063, 0.0
    %v2513 = vmax.f32 %v1006, 0.0
    %v2514 = vmax.f32 %v1008, 0.0
    %v2515 = vmax.f32 %v1359, 0.0
    %v2516 = vmax.f32 %v1361, 0.0
    %v2517 = vmax.f32 %v1712, 0.0
    %v2518 = vmax.f32 %v1714, 0.0
    %v2519 = vmax.f32 %v2065, 0.0
    %v2520 = vmax.f32 %v2067, 0.0
    %v2521 = vmax.f32 %v1012, 0.0
    %v2522 = vmax.f32 %v1014, 0.0
    %v2523 = vmax.f32 %v1365, 0.0
    %v2524 = vmax.f32 %v1367, 0.0
    %v2525 = vmax.f32 %v1718, 0.0
    %v2526 = vmax.f32 %v1720, 0.0
    %v2527 = vmax.f32 %v2071, 0.0
    %v2528 = vmax.f32 %v2073, 0.0
    %v2529 = vmax.f32 %v1016, 0.0
    %v2530 = vmax.f32 %v1018, 0.0
    %v2531 = vmax.f32 %v1369, 0.0
    %v2532 = vmax.f32 %v1371, 0.0
    %v2533 = vmax.f32 %v1722, 0.0
    %v2534 = vmax.f32 %v1724, 0.0
    %v2535 = vmax.f32 %v2075, 0.0
    %v2536 = vmax.f32 %v2077, 0.0
    %v2537 = vmax.f32 %v1022, 0.0
    %v2538 = vmax.f32 %v1024, 0.0
    %v2539 = vmax.f32 %v1375, 0.0
    %v2540 = vmax.f32 %v1377, 0.0
    %v2541 = vmax.f32 %v1728, 0.0
    %v2542 = vmax.f32 %v1730, 0.0
    %v2543 = vmax.f32 %v2081, 0.0
    %v2544 = vmax.f32 %v2083, 0.0
    %v2545 = vmax.f32 %v1026, 0.0
    %v2546 = vmax.f32 %v1028, 0.0
    %v2547 = vmax.f32 %v1379, 0.0
    %v2548 = vmax.f32 %v1381, 0.0
    %v2549 = vmax.f32 %v1732, 0.0
    %v2550 = vmax.f32 %v1734, 0.0
    %v2551 = vmax.f32 %v2085, 0.0
    %v2552 = vmax.f32 %v2087, 0.0
    %v2553 = vmax.f32 %v1032, 0.0
    %v2554 = vmax.f32 %v1034, 0.0
    %v2555 = vmax.f32 %v1385, 0.0
    %v2556 = vmax.f32 %v1387, 0.0
    %v2557 = vmax.f32 %v1738, 0.0
    %v2558 = vmax.f32 %v1740, 0.0
    %v2559 = vmax.f32 %v2091, 0.0
    %v2560 = vmax.f32 %v2093, 0.0
    %v2561 = vmax.f32 %v1036, 0.0
    %v2562 = vmax.f32 %v1038, 0.0
    %v2563 = vmax.f32 %v1389, 0.0
    %v2564 = vmax.f32 %v1391, 0.0
    %v2565 = vmax.f32 %v1742, 0.0
    %v2566 = vmax.f32 %v1744, 0.0
    %v2567 = vmax.f32 %v2095, 0.0
    %v2568 = vmax.f32 %v2097, 0.0
    %v2569 = vmax.f32 %v1042, 0.0
    %v2570 = vmax.f32 %v1044, 0.0
    %v2571 = vmax.f32 %v1395, 0.0
    %v2572 = vmax.f32 %v1397, 0.0
    %v2573 = vmax.f32 %v1748, 0.0
    %v2574 = vmax.f32 %v1750, 0.0
    %v2575 = vmax.f32 %v2101, 0.0
    %v2576 = vmax.f32 %v2103, 0.0
    %v2577 = vmax.f32 %v1046, 0.0
    %v2578 = vmax.f32 %v1048, 0.0
    %v2579 = vmax.f32 %v1399, 0.0
    %v2580 = vmax.f32 %v1401, 0.0
    %v2581 = vmax.f32 %v1752, 0.0
    %v2582 = vmax.f32 %v1754, 0.0
    %v2583 = vmax.f32 %v2105, 0.0
    %v2584 = vmax.f32 %v2107, 0.0
    %v2585 = vmax.f32 %v1052, 0.0
    %v2586 = vmax.f32 %v1054, 0.0
    %v2587 = vmax.f32 %v1405, 0.0
    %v2588 = vmax.f32 %v1407, 0.0
    %v2589 = vmax.f32 %v1758, 0.0
    %v2590 = vmax.f32 %v1760, 0.0
    %v2591 = vmax.f32 %v2111, 0.0
    %v2592 = vmax.f32 %v2113, 0.0
    %v2593 = vmax.f32 %v1056, 0.0
    %v2594 = vmax.f32 %v1058, 0.0
    %v2595 = vmax.f32 %v1409, 0.0
    %v2596 = vmax.f32 %v1411, 0.0
    %v2597 = vmax.f32 %v1762, 0.0
    %v2598 = vmax.f32 %v1764, 0.0
    %v2599 = vmax.f32 %v2115, 0.0
    %v2600 = vmax.f32 %v2117, 0.0
    %v2601 = vmax.f32 %v1062, 0.0
    %v2602 = vmax.f32 %v1064, 0.0
    %v2603 = vmax.f32 %v1415, 0.0
    %v2604 = vmax.f32 %v1417, 0.0
    %v2605 = vmax.f32 %v1768, 0.0
    %v2606 = vmax.f32 %v1770, 0.0
    %v2607 = vmax.f32 %v2121, 0.0
    %v2608 = vmax.f32 %v2123, 0.0
    %v2609 = vmax.f32 %v1066, 0.0
    %v2610 = vmax.f32 %v1068, 0.0
    %v2611 = vmax.f32 %v1419, 0.0
    %v2612 = vmax.f32 %v1421, 0.0
    %v2613 = vmax.f32 %v1772, 0.0
    %v2614 = vmax.f32 %v1774, 0.0
    %v2615 = vmax.f32 %v2125, 0.0
    %v2616 = vmax.f32 %v2127, 0.0
    %v2617 = vmax.f32 %v1072, 0.0
    %v2618 = vmax.f32 %v1074, 0.0
    %v2619 = vmax.f32 %v1425, 0.0
    %v2620 = vmax.f32 %v1427, 0.0
    %v2621 = vmax.f32 %v1778, 0.0
    %v2622 = vmax.f32 %v1780, 0.0
    %v2623 = vmax.f32 %v2131, 0.0
    %v2624 = vmax.f32 %v2133, 0.0
    %v2625 = vmax.f32 %v1076, 0.0
    %v2626 = vmax.f32 %v1078, 0.0
    %v2627 = vmax.f32 %v1429, 0.0
    %v2628 = vmax.f32 %v1431, 0.0
    %v2629 = vmax.f32 %v1782, 0.0
    %v2630 = vmax.f32 %v1784, 0.0
    %v2631 = vmax.f32 %v2135, 0.0
    %v2632 = vmax.f32 %v2137, 0.0
    %v2633 = vmax.f32 %v1082, 0.0
    %v2634 = vmax.f32 %v1084, 0.0
    %v2635 = vmax.f32 %v1435, 0.0
    %v2636 = vmax.f32 %v1437, 0.0
    %v2637 = vmax.f32 %v1788, 0.0
    %v2638 = vmax.f32 %v1790, 0.0
    %v2639 = vmax.f32 %v2141, 0.0
    %v2640 = vmax.f32 %v2143, 0.0
    %v2641 = vmax.f32 %v1086, 0.0
    %v2642 = vmax.f32 %v1088, 0.0
    %v2643 = vmax.f32 %v1439, 0.0
    %v2644 = vmax.f32 %v1441, 0.0
    %v2645 = vmax.f32 %v1792, 0.0
    %v2646 = vmax.f32 %v1794, 0.0
    %v2647 = vmax.f32 %v2145, 0.0
    %v2648 = vmax.f32 %v2147, 0.0
    %v2649 = vmax.f32 %v1092, 0.0
    %v2650 = vmax.f32 %v1094, 0.0
    %v2651 = vmax.f32 %v1445, 0.0
    %v2652 = vmax.f32 %v1447, 0.0
    %v2653 = vmax.f32 %v1798, 0.0
    %v2654 = vmax.f32 %v1800, 0.0
    %v2655 = vmax.f32 %v2151, 0.0
    %v2656 = vmax.f32 %v2153, 0.0
    %v2657 = vmax.f32 %v1096, 0.0
    %v2658 = vmax.f32 %v1098, 0.0
    %v2659 = vmax.f32 %v1449, 0.0
    %v2660 = vmax.f32 %v1451, 0.0
    %v2661 = vmax.f32 %v1802, 0.0
    %v2662 = vmax.f32 %v1804, 0.0
    %v2663 = vmax.f32 %v2155, 0.0
    %v2664 = vmax.f32 %v2157, 0.0
    %v2665 = vmax.f32 %v1102, 0.0
    %v2666 = vmax.f32 %v1104, 0.0
    %v2667 = vmax.f32 %v1455, 0.0
    %v2668 = vmax.f32 %v1457, 0.0
    %v2669 = vmax.f32 %v1808, 0.0
    %v2670 = vmax.f32 %v1810, 0.0
    %v2671 = vmax.f32 %v2161, 0.0
    %v2672 = vmax.f32 %v2163, 0.0
    %v2673 = vmax.f32 %v1106, 0.0
    %v2674 = vmax.f32 %v1108, 0.0
    %v2675 = vmax.f32 %v1459, 0.0
    %v2676 = vmax.f32 %v1461, 0.0
    %v2677 = vmax.f32 %v1812, 0.0
    %v2678 = vmax.f32 %v1814, 0.0
    %v2679 = vmax.f32 %v2165, 0.0
    %v2680 = vmax.f32 %v2167, 0.0
    %v2681 = vpack.c.bf16 %v2177, %v2169
    %v2682 = vpack.c.bf16 %v2178, %v2170
    %v2683 = vpack.c.bf16 %v2179, %v2171
    %v2684 = vpack.c.bf16 %v2180, %v2172
    %v2685 = vpack.c.bf16 %v2181, %v2173
    %v2686 = vpack.c.bf16 %v2182, %v2174
    %v2687 = vpack.c.bf16 %v2183, %v2175
    %v2688 = vpack.c.bf16 %v2184, %v2176
    %v2689 = vpack.c.bf16 %v2193, %v2185
    %v2690 = vpack.c.bf16 %v2194, %v2186
    %v2691 = vpack.c.bf16 %v2195, %v2187
    %v2692 = vpack.c.bf16 %v2196, %v2188
    %v2693 = vpack.c.bf16 %v2197, %v2189
    %v2694 = vpack.c.bf16 %v2198, %v2190
    %v2695 = vpack.c.bf16 %v2199, %v2191
    %v2696 = vpack.c.bf16 %v2200, %v2192
    %v2697 = vpack.c.bf16 %v2209, %v2201
    %v2698 = vpack.c.bf16 %v2210, %v2202
    %v2699 = vpack.c.bf16 %v2211, %v2203
    %v2700 = vpack.c.bf16 %v2212, %v2204
    %v2701 = vpack.c.bf16 %v2213, %v2205
    %v2702 = vpack.c.bf16 %v2214, %v2206
    %v2703 = vpack.c.bf16 %v2215, %v2207
    %v2704 = vpack.c.bf16 %v2216, %v2208
    %v2705 = vpack.c.bf16 %v2225, %v2217
    %v2706 = vpack.c.bf16 %v2226, %v2218
    %v2707 = vpack.c.bf16 %v2227, %v2219
    %v2708 = vpack.c.bf16 %v2228, %v2220
    %v2709 = vpack.c.bf16 %v2229, %v2221
    %v2710 = vpack.c.bf16 %v2230, %v2222
    %v2711 = vpack.c.bf16 %v2231, %v2223
    %v2712 = vpack.c.bf16 %v2232, %v2224
    %v2713 = vpack.c.bf16 %v2241, %v2233
    %v2714 = vpack.c.bf16 %v2242, %v2234
    %v2715 = vpack.c.bf16 %v2243, %v2235
    %v2716 = vpack.c.bf16 %v2244, %v2236
    %v2717 = vpack.c.bf16 %v2245, %v2237
    %v2718 = vpack.c.bf16 %v2246, %v2238
    %v2719 = vpack.c.bf16 %v2247, %v2239
    %v2720 = vpack.c.bf16 %v2248, %v2240
    %v2721 = vpack.c.bf16 %v2257, %v2249
    %v2722 = vpack.c.bf16 %v2258, %v2250
    %v2723 = vpack.c.bf16 %v2259, %v2251
    %v2724 = vpack.c.bf16 %v2260, %v2252
    %v2725 = vpack.c.bf16 %v2261, %v2253
    %v2726 = vpack.c.bf16 %v2262, %v2254
    %v2727 = vpack.c.bf16 %v2263, %v2255
    %v2728 = vpack.c.bf16 %v2264, %v2256
    %v2729 = vpack.c.bf16 %v2273, %v2265
    %v2730 = vpack.c.bf16 %v2274, %v2266
    %v2731 = vpack.c.bf16 %v2275, %v2267
    %v2732 = vpack.c.bf16 %v2276, %v2268
    %v2733 = vpack.c.bf16 %v2277, %v2269
    %v2734 = vpack.c.bf16 %v2278, %v2270
    %v2735 = vpack.c.bf16 %v2279, %v2271
    %v2736 = vpack.c.bf16 %v2280, %v2272
    %v2737 = vpack.c.bf16 %v2289, %v2281
    %v2738 = vpack.c.bf16 %v2290, %v2282
    %v2739 = vpack.c.bf16 %v2291, %v2283
    %v2740 = vpack.c.bf16 %v2292, %v2284
    %v2741 = vpack.c.bf16 %v2293, %v2285
    %v2742 = vpack.c.bf16 %v2294, %v2286
    %v2743 = vpack.c.bf16 %v2295, %v2287
    %v2744 = vpack.c.bf16 %v2296, %v2288
    %v2745 = vpack.c.bf16 %v2305, %v2297
    %v2746 = vpack.c.bf16 %v2306, %v2298
    %v2747 = vpack.c.bf16 %v2307, %v2299
    %v2748 = vpack.c.bf16 %v2308, %v2300
    %v2749 = vpack.c.bf16 %v2309, %v2301
    %v2750 = vpack.c.bf16 %v2310, %v2302
    %v2751 = vpack.c.bf16 %v2311, %v2303
    %v2752 = vpack.c.bf16 %v2312, %v2304
    %v2753 = vpack.c.bf16 %v2321, %v2313
    %v2754 = vpack.c.bf16 %v2322, %v2314
    %v2755 = vpack.c.bf16 %v2323, %v2315
    %v2756 = vpack.c.bf16 %v2324, %v2316
    %v2757 = vpack.c.bf16 %v2325, %v2317
    %v2758 = vpack.c.bf16 %v2326, %v2318
    %v2759 = vpack.c.bf16 %v2327, %v2319
    %v2760 = vpack.c.bf16 %v2328, %v2320
    %v2761 = vpack.c.bf16 %v2337, %v2329
    %v2762 = vpack.c.bf16 %v2338, %v2330
    %v2763 = vpack.c.bf16 %v2339, %v2331
    %v2764 = vpack.c.bf16 %v2340, %v2332
    %v2765 = vpack.c.bf16 %v2341, %v2333
    %v2766 = vpack.c.bf16 %v2342, %v2334
    %v2767 = vpack.c.bf16 %v2343, %v2335
    %v2768 = vpack.c.bf16 %v2344, %v2336
    %v2769 = vpack.c.bf16 %v2353, %v2345
    %v2770 = vpack.c.bf16 %v2354, %v2346
    %v2771 = vpack.c.bf16 %v2355, %v2347
    %v2772 = vpack.c.bf16 %v2356, %v2348
    %v2773 = vpack.c.bf16 %v2357, %v2349
    %v2774 = vpack.c.bf16 %v2358, %v2350
    %v2775 = vpack.c.bf16 %v2359, %v2351
    %v2776 = vpack.c.bf16 %v2360, %v2352
    %v2777 = vpack.c.bf16 %v2369, %v2361
    %v2778 = vpack.c.bf16 %v2370, %v2362
    %v2779 = vpack.c.bf16 %v2371, %v2363
    %v2780 = vpack.c.bf16 %v2372, %v2364
    %v2781 = vpack.c.bf16 %v2373, %v2365
    %v2782 = vpack.c.bf16 %v2374, %v2366
    %v2783 = vpack.c.bf16 %v2375, %v2367
    %v2784 = vpack.c.bf16 %v2376, %v2368
    %v2785 = vpack.c.bf16 %v2385, %v2377
    %v2786 = vpack.c.bf16 %v2386, %v2378
    %v2787 = vpack.c.bf16 %v2387, %v2379
    %v2788 = vpack.c.bf16 %v2388, %v2380
    %v2789 = vpack.c.bf16 %v2389, %v2381
    %v2790 = vpack.c.bf16 %v2390, %v2382
    %v2791 = vpack.c.bf16 %v2391, %v2383
    %v2792 = vpack.c.bf16 %v2392, %v2384
    %v2793 = vpack.c.bf16 %v2401, %v2393
    %v2794 = vpack.c.bf16 %v2402, %v2394
    %v2795 = vpack.c.bf16 %v2403, %v2395
    %v2796 = vpack.c.bf16 %v2404, %v2396
    %v2797 = vpack.c.bf16 %v2405, %v2397
    %v2798 = vpack.c.bf16 %v2406, %v2398
    %v2799 = vpack.c.bf16 %v2407, %v2399
    %v2800 = vpack.c.bf16 %v2408, %v2400
    %v2801 = vpack.c.bf16 %v2417, %v2409
    %v2802 = vpack.c.bf16 %v2418, %v2410
    %v2803 = vpack.c.bf16 %v2419, %v2411
    %v2804 = vpack.c.bf16 %v2420, %v2412
    %v2805 = vpack.c.bf16 %v2421, %v2413
    %v2806 = vpack.c.bf16 %v2422, %v2414
    %v2807 = vpack.c.bf16 %v2423, %v2415
    %v2808 = vpack.c.bf16 %v2424, %v2416
    %v2809 = vpack.c.bf16 %v2433, %v2425
    %v2810 = vpack.c.bf16 %v2434, %v2426
    %v2811 = vpack.c.bf16 %v2435, %v2427
    %v2812 = vpack.c.bf16 %v2436, %v2428
    %v2813 = vpack.c.bf16 %v2437, %v2429
    %v2814 = vpack.c.bf16 %v2438, %v2430
    %v2815 = vpack.c.bf16 %v2439, %v2431
    %v2816 = vpack.c.bf16 %v2440, %v2432
    %v2817 = vpack.c.bf16 %v2449, %v2441
    %v2818 = vpack.c.bf16 %v2450, %v2442
    %v2819 = vpack.c.bf16 %v2451, %v2443
    %v2820 = vpack.c.bf16 %v2452, %v2444
    %v2821 = vpack.c.bf16 %v2453, %v2445
    %v2822 = vpack.c.bf16 %v2454, %v2446
    %v2823 = vpack.c.bf16 %v2455, %v2447
    %v2824 = vpack.c.bf16 %v2456, %v2448
    %v2825 = vpack.c.bf16 %v2465, %v2457
    %v2826 = vpack.c.bf16 %v2466, %v2458
    %v2827 = vpack.c.bf16 %v2467, %v2459
    %v2828 = vpack.c.bf16 %v2468, %v2460
    %v2829 = vpack.c.bf16 %v2469, %v2461
    %v2830 = vpack.c.bf16 %v2470, %v2462
    %v2831 = vpack.c.bf16 %v2471, %v2463
    %v2832 = vpack.c.bf16 %v2472, %v2464
    %v2833 = vpack.c.bf16 %v2481, %v2473
    %v2834 = vpack.c.bf16 %v2482, %v2474
    %v2835 = vpack.c.bf16 %v2483, %v2475
    %v2836 = vpack.c.bf16 %v2484, %v2476
    %v2837 = vpack.c.bf16 %v2485, %v2477
    %v2838 = vpack.c.bf16 %v2486, %v2478
    %v2839 = vpack.c.bf16 %v2487, %v2479
    %v2840 = vpack.c.bf16 %v2488, %v2480
    %v2841 = vpack.c.bf16 %v2497, %v2489
    %v2842 = vpack.c.bf16 %v2498, %v2490
    %v2843 = vpack.c.bf16 %v2499, %v2491
    %v2844 = vpack.c.bf16 %v2500, %v2492
    %v2845 = vpack.c.bf16 %v2501, %v2493
    %v2846 = vpack.c.bf16 %v2502, %v2494
    %v2847 = vpack.c.bf16 %v2503, %v2495
    %v2848 = vpack.c.bf16 %v2504, %v2496
    %v2849 = vpack.c.bf16 %v2513, %v2505
    %v2850 = vpack.c.bf16 %v2514, %v2506
    %v2851 = vpack.c.bf16 %v2515, %v2507
    %v2852 = vpack.c.bf16 %v2516, %v2508
    %v2853 = vpack.c.bf16 %v2517, %v2509
    %v2854 = vpack.c.bf16 %v2518, %v2510
    %v2855 = vpack.c.bf16 %v2519, %v2511
    %v2856 = vpack.c.bf16 %v2520, %v2512
    %v2857 = vpack.c.bf16 %v2529, %v2521
    %v2858 = vpack.c.bf16 %v2530, %v2522
    %v2859 = vpack.c.bf16 %v2531, %v2523
    %v2860 = vpack.c.bf16 %v2532, %v2524
    %v2861 = vpack.c.bf16 %v2533, %v2525
    %v2862 = vpack.c.bf16 %v2534, %v2526
    %v2863 = vpack.c.bf16 %v2535, %v2527
    %v2864 = vpack.c.bf16 %v2536, %v2528
    %v2865 = vpack.c.bf16 %v2545, %v2537
    %v2866 = vpack.c.bf16 %v2546, %v2538
    %v2867 = vpack.c.bf16 %v2547, %v2539
    %v2868 = vpack.c.bf16 %v2548, %v2540
    %v2869 = vpack.c.bf16 %v2549, %v2541
    %v2870 = vpack.c.bf16 %v2550, %v2542
    %v2871 = vpack.c.bf16 %v2551, %v2543
    %v2872 = vpack.c.bf16 %v2552, %v2544
    %v2873 = vpack.c.bf16 %v2561, %v2553
    %v2874 = vpack.c.bf16 %v2562, %v2554
    %v2875 = vpack.c.bf16 %v2563, %v2555
    %v2876 = vpack.c.bf16 %v2564, %v2556
    %v2877 = vpack.c.bf16 %v2565, %v2557
    %v2878 = vpack.c.bf16 %v2566, %v2558
    %v2879 = vpack.c.bf16 %v2567, %v2559
    %v2880 = vpack.c.bf16 %v2568, %v2560
    %v2881 = vpack.c.bf16 %v2577, %v2569
    %v2882 = vpack.c.bf16 %v2578, %v2570
    %v2883 = vpack.c.bf16 %v2579, %v2571
    %v2884 = vpack.c.bf16 %v2580, %v2572
    %v2885 = vpack.c.bf16 %v2581, %v2573
    %v2886 = vpack.c.bf16 %v2582, %v2574
    %v2887 = vpack.c.bf16 %v2583, %v2575
    %v2888 = vpack.c.bf16 %v2584, %v2576
    %v2889 = vpack.c.bf16 %v2593, %v2585
    %v2890 = vpack.c.bf16 %v2594, %v2586
    %v2891 = vpack.c.bf16 %v2595, %v2587
    %v2892 = vpack.c.bf16 %v2596, %v2588
    %v2893 = vpack.c.bf16 %v2597, %v2589
    %v2894 = vpack.c.bf16 %v2598, %v2590
    %v2895 = vpack.c.bf16 %v2599, %v2591
    %v2896 = vpack.c.bf16 %v2600, %v2592
    %v2897 = vpack.c.bf16 %v2609, %v2601
    %v2898 = vpack.c.bf16 %v2610, %v2602
    %v2899 = vpack.c.bf16 %v2611, %v2603
    %v2900 = vpack.c.bf16 %v2612, %v2604
    %v2901 = vpack.c.bf16 %v2613, %v2605
    %v2902 = vpack.c.bf16 %v2614, %v2606
    %v2903 = vpack.c.bf16 %v2615, %v2607
    %v2904 = vpack.c.bf16 %v2616, %v2608
    %v2905 = vpack.c.bf16 %v2625, %v2617
    %v2906 = vpack.c.bf16 %v2626, %v2618
    %v2907 = vpack.c.bf16 %v2627, %v2619
    %v2908 = vpack.c.bf16 %v2628, %v2620
    %v2909 = vpack.c.bf16 %v2629, %v2621
    %v2910 = vpack.c.bf16 %v2630, %v2622
    %v2911 = vpack.c.bf16 %v2631, %v2623
    %v2912 = vpack.c.bf16 %v2632, %v2624
    %v2913 = vpack.c.bf16 %v2641, %v2633
    %v2914 = vpack.c.bf16 %v2642, %v2634
    %v2915 = vpack.c.bf16 %v2643, %v2635
    %v2916 = vpack.c.bf16 %v2644, %v2636
    %v2917 = vpack.c.bf16 %v2645, %v2637
    %v2918 = vpack.c.bf16 %v2646, %v2638
    %v2919 = vpack.c.bf16 %v2647, %v2639
    %v2920 = vpack.c.bf16 %v2648, %v2640
    %v2921 = vpack.c.bf16 %v2657, %v2649
    %v2922 = vpack.c.bf16 %v2658, %v2650
    %v2923 = vpack.c.bf16 %v2659, %v2651
    %v2924 = vpack.c.bf16 %v2660, %v2652
    %v2925 = vpack.c.bf16 %v2661, %v2653
    %v2926 = vpack.c.bf16 %v2662, %v2654
    %v2927 = vpack.c.bf16 %v2663, %v2655
    %v2928 = vpack.c.bf16 %v2664, %v2656
    %v2929 = vpack.c.bf16 %v2673, %v2665
    %v2930 = vpack.c.bf16 %v2674, %v2666
    %v2931 = vpack.c.bf16 %v2675, %v2667
    %v2932 = vpack.c.bf16 %v2676, %v2668
    %v2933 = vpack.c.bf16 %v2677, %v2669
    %v2934 = vpack.c.bf16 %v2678, %v2670
    %v2935 = vpack.c.bf16 %v2679, %v2671
    %v2936 = vpack.c.bf16 %v2680, %v2672
    %v2937 = vld [vmem:[#allocation8] sm:$0xf]
    %v2938 = vld [vmem:[#allocation8 + $0x4] sm:$0xf]
    %v2939 = vld [vmem:[#allocation8 + $0x8] sm:$0xf]
    %v2940 = vld [vmem:[#allocation8 + $0xc] sm:$0xf]
    %v2941 = vld [vmem:[#allocation8 + $0x10] sm:$0xf]
    %v2942 = vld [vmem:[#allocation8 + $0x14] sm:$0xf]
    %v2943 = vld [vmem:[#allocation8 + $0x18] sm:$0xf]
    %v2944 = vld [vmem:[#allocation8 + $0x1c] sm:$0xf]
    %v2945 = vld [vmem:[#allocation8 + $0x20] sm:$0xf]
    %v2946 = vld [vmem:[#allocation8 + $0x24] sm:$0xf]
    %v2947 = vld [vmem:[#allocation8 + $0x28] sm:$0xf]
    %v2948 = vld [vmem:[#allocation8 + $0x2c] sm:$0xf]
    %v2949 = vld [vmem:[#allocation8 + $0x30] sm:$0xf]
    %v2950 = vld [vmem:[#allocation8 + $0x34] sm:$0xf]
    %v2951 = vld [vmem:[#allocation8 + $0x38] sm:$0xf]
    %v2952 = vld [vmem:[#allocation8 + $0x3c] sm:$0xf]
    %v2953 = vld [vmem:[#allocation8 + $0x40] sm:$0xf]
    %v2954 = vld [vmem:[#allocation8 + $0x44] sm:$0xf]
    %v2955 = vld [vmem:[#allocation8 + $0x48] sm:$0xf]
    %v2956 = vld [vmem:[#allocation8 + $0x4c] sm:$0xf]
    %v2957 = vld [vmem:[#allocation8 + $0x50] sm:$0xf]
    %v2958 = vld [vmem:[#allocation8 + $0x54] sm:$0xf]
    %v2959 = vld [vmem:[#allocation8 + $0x58] sm:$0xf]
    %v2960 = vld [vmem:[#allocation8 + $0x5c] sm:$0xf]
    %v2961 = vld [vmem:[#allocation8 + $0x60] sm:$0xf]
    %v2962 = vld [vmem:[#allocation8 + $0x64] sm:$0xf]
    %v2963 = vld [vmem:[#allocation8 + $0x68] sm:$0xf]
    %v2964 = vld [vmem:[#allocation8 + $0x6c] sm:$0xf]
    %v2965 = vld [vmem:[#allocation8 + $0x70] sm:$0xf]
    %v2966 = vld [vmem:[#allocation8 + $0x74] sm:$0xf]
    %v2967 = vld [vmem:[#allocation8 + $0x78] sm:$0xf]
    %v2968 = vld [vmem:[#allocation8 + $0x7c] sm:$0xf]
    %v2969 = vld [vmem:[#allocation8 + $0x80] sm:$0xf]
    %v2970 = vld [vmem:[#allocation8 + $0x84] sm:$0xf]
    %v2971 = vld [vmem:[#allocation8 + $0x88] sm:$0xf]
    %v2972 = vld [vmem:[#allocation8 + $0x8c] sm:$0xf]
    %v2973 = vld [vmem:[#allocation8 + $0x90] sm:$0xf]
    %v2974 = vld [vmem:[#allocation8 + $0x94] sm:$0xf]
    %v2975 = vld [vmem:[#allocation8 + $0x98] sm:$0xf]
    %v2976 = vld [vmem:[#allocation8 + $0x9c] sm:$0xf]
    %v2977 = vld [vmem:[#allocation8 + $0xa0] sm:$0xf]
    %v2978 = vld [vmem:[#allocation8 + $0xa4] sm:$0xf]
    %v2979 = vld [vmem:[#allocation8 + $0xa8] sm:$0xf]
    %v2980 = vld [vmem:[#allocation8 + $0xac] sm:$0xf]
    %v2981 = vld [vmem:[#allocation8 + $0xb0] sm:$0xf]
    %v2982 = vld [vmem:[#allocation8 + $0xb4] sm:$0xf]
    %v2983 = vld [vmem:[#allocation8 + $0xb8] sm:$0xf]
    %v2984 = vld [vmem:[#allocation8 + $0xbc] sm:$0xf]
    %v2985 = vld [vmem:[#allocation8 + $0xc0] sm:$0xf]
    %v2986 = vld [vmem:[#allocation8 + $0xc4] sm:$0xf]
    %v2987 = vld [vmem:[#allocation8 + $0xc8] sm:$0xf]
    %v2988 = vld [vmem:[#allocation8 + $0xcc] sm:$0xf]
    %v2989 = vld [vmem:[#allocation8 + $0xd0] sm:$0xf]
    %v2990 = vld [vmem:[#allocation8 + $0xd4] sm:$0xf]
    %v2991 = vld [vmem:[#allocation8 + $0xd8] sm:$0xf]
    %v2992 = vld [vmem:[#allocation8 + $0xdc] sm:$0xf]
    %v2993 = vld [vmem:[#allocation8 + $0xe0] sm:$0xf]
    %v2994 = vld [vmem:[#allocation8 + $0xe4] sm:$0xf]
    %v2995 = vld [vmem:[#allocation8 + $0xe8] sm:$0xf]
    %v2996 = vld [vmem:[#allocation8 + $0xec] sm:$0xf]
    %v2997 = vld [vmem:[#allocation8 + $0xf0] sm:$0xf]
    %v2998 = vld [vmem:[#allocation8 + $0xf4] sm:$0xf]
    %v2999 = vld [vmem:[#allocation8 + $0xf8] sm:$0xf]
    %v3000 = vld [vmem:[#allocation8 + $0xfc] sm:$0xf]
    %v3001 = vld [vmem:[#allocation8 + $0x100] sm:$0xf]
    %v3002 = vld [vmem:[#allocation8 + $0x104] sm:$0xf]
    %v3003 = vld [vmem:[#allocation8 + $0x108] sm:$0xf]
    %v3004 = vld [vmem:[#allocation8 + $0x10c] sm:$0xf]
    %v3005 = vld [vmem:[#allocation8 + $0x110] sm:$0xf]
    %v3006 = vld [vmem:[#allocation8 + $0x114] sm:$0xf]
    %v3007 = vld [vmem:[#allocation8 + $0x118] sm:$0xf]
    %v3008 = vld [vmem:[#allocation8 + $0x11c] sm:$0xf]
    %v3009 = vld [vmem:[#allocation8 + $0x120] sm:$0xf]
    %v3010 = vld [vmem:[#allocation8 + $0x124] sm:$0xf]
    %v3011 = vld [vmem:[#allocation8 + $0x128] sm:$0xf]
    %v3012 = vld [vmem:[#allocation8 + $0x12c] sm:$0xf]
    %v3013 = vld [vmem:[#allocation8 + $0x130] sm:$0xf]
    %v3014 = vld [vmem:[#allocation8 + $0x134] sm:$0xf]
    %v3015 = vld [vmem:[#allocation8 + $0x138] sm:$0xf]
    %v3016 = vld [vmem:[#allocation8 + $0x13c] sm:$0xf]
    %v3017 = vld [vmem:[#allocation8 + $0x140] sm:$0xf]
    %v3018 = vld [vmem:[#allocation8 + $0x144] sm:$0xf]
    %v3019 = vld [vmem:[#allocation8 + $0x148] sm:$0xf]
    %v3020 = vld [vmem:[#allocation8 + $0x14c] sm:$0xf]
    %v3021 = vld [vmem:[#allocation8 + $0x150] sm:$0xf]
    %v3022 = vld [vmem:[#allocation8 + $0x154] sm:$0xf]
    %v3023 = vld [vmem:[#allocation8 + $0x158] sm:$0xf]
    %v3024 = vld [vmem:[#allocation8 + $0x15c] sm:$0xf]
    %v3025 = vld [vmem:[#allocation8 + $0x160] sm:$0xf]
    %v3026 = vld [vmem:[#allocation8 + $0x164] sm:$0xf]
    %v3027 = vld [vmem:[#allocation8 + $0x168] sm:$0xf]
    %v3028 = vld [vmem:[#allocation8 + $0x16c] sm:$0xf]
    %v3029 = vld [vmem:[#allocation8 + $0x170] sm:$0xf]
    %v3030 = vld [vmem:[#allocation8 + $0x174] sm:$0xf]
    %v3031 = vld [vmem:[#allocation8 + $0x178] sm:$0xf]
    %v3032 = vld [vmem:[#allocation8 + $0x17c] sm:$0xf]
    %v3033 = vld [vmem:[#allocation8 + $0x180] sm:$0xf]
    %v3034 = vld [vmem:[#allocation8 + $0x184] sm:$0xf]
    %v3035 = vld [vmem:[#allocation8 + $0x188] sm:$0xf]
    %v3036 = vld [vmem:[#allocation8 + $0x18c] sm:$0xf]
    %v3037 = vld [vmem:[#allocation8 + $0x190] sm:$0xf]
    %v3038 = vld [vmem:[#allocation8 + $0x194] sm:$0xf]
    %v3039 = vld [vmem:[#allocation8 + $0x198] sm:$0xf]
    %v3040 = vld [vmem:[#allocation8 + $0x19c] sm:$0xf]
    %v3041 = vld [vmem:[#allocation8 + $0x1a0] sm:$0xf]
    %v3042 = vld [vmem:[#allocation8 + $0x1a4] sm:$0xf]
    %v3043 = vld [vmem:[#allocation8 + $0x1a8] sm:$0xf]
    %v3044 = vld [vmem:[#allocation8 + $0x1ac] sm:$0xf]
    %v3045 = vld [vmem:[#allocation8 + $0x1b0] sm:$0xf]
    %v3046 = vld [vmem:[#allocation8 + $0x1b4] sm:$0xf]
    %v3047 = vld [vmem:[#allocation8 + $0x1b8] sm:$0xf]
    %v3048 = vld [vmem:[#allocation8 + $0x1bc] sm:$0xf]
    %v3049 = vld [vmem:[#allocation8 + $0x1c0] sm:$0xf]
    %v3050 = vld [vmem:[#allocation8 + $0x1c4] sm:$0xf]
    %v3051 = vld [vmem:[#allocation8 + $0x1c8] sm:$0xf]
    %v3052 = vld [vmem:[#allocation8 + $0x1cc] sm:$0xf]
    %v3053 = vld [vmem:[#allocation8 + $0x1d0] sm:$0xf]
    %v3054 = vld [vmem:[#allocation8 + $0x1d4] sm:$0xf]
    %v3055 = vld [vmem:[#allocation8 + $0x1d8] sm:$0xf]
    %v3056 = vld [vmem:[#allocation8 + $0x1dc] sm:$0xf]
    %v3057 = vld [vmem:[#allocation8 + $0x1e0] sm:$0xf]
    %v3058 = vld [vmem:[#allocation8 + $0x1e4] sm:$0xf]
    %v3059 = vld [vmem:[#allocation8 + $0x1e8] sm:$0xf]
    %v3060 = vld [vmem:[#allocation8 + $0x1ec] sm:$0xf]
    %v3061 = vld [vmem:[#allocation8 + $0x1f0] sm:$0xf]
    %v3062 = vld [vmem:[#allocation8 + $0x1f4] sm:$0xf]
    %v3063 = vld [vmem:[#allocation8 + $0x1f8] sm:$0xf]
    %v3064 = vld [vmem:[#allocation8 + $0x1fc] sm:$0xf]
    %v3065 = vld [vmem:[%s4] sm:$0x1]
    %v3067 = vlaneseq
    %v3068 = vshrl.u32 %v3067, 7
    %v3069 = vsub.s32 0, %v3068
    %v3070 = vrot.slane %v3065, %v3069
    %v3200 = vunpack.c.l.b16 %v2937
    %v3201 = vunpack.c.l.b16 %v2938
    %v3202 = vunpack.c.l.b16 %v2939
    %v3203 = vunpack.c.l.b16 %v2940
    %v3204 = vunpack.c.l.b16 %v2941
    %v3205 = vunpack.c.l.b16 %v2942
    %v3206 = vunpack.c.l.b16 %v2943
    %v3207 = vunpack.c.l.b16 %v2944
    %v3208 = vunpack.c.l.b16 %v2945
    %v3209 = vunpack.c.l.b16 %v2946
    %v3210 = vunpack.c.l.b16 %v2947
    %v3211 = vunpack.c.l.b16 %v2948
    %v3212 = vunpack.c.l.b16 %v2949
    %v3213 = vunpack.c.l.b16 %v2950
    %v3214 = vunpack.c.l.b16 %v2951
    %v3215 = vunpack.c.l.b16 %v2952
    %v3216 = vunpack.c.l.b16 %v2953
    %v3217 = vunpack.c.l.b16 %v2954
    %v3218 = vunpack.c.l.b16 %v2955
    %v3219 = vunpack.c.l.b16 %v2956
    %v3220 = vunpack.c.l.b16 %v2957
    %v3221 = vunpack.c.l.b16 %v2958
    %v3222 = vunpack.c.l.b16 %v2959
    %v3223 = vunpack.c.l.b16 %v2960
    %v3224 = vunpack.c.l.b16 %v2961
    %v3225 = vunpack.c.l.b16 %v2962
    %v3226 = vunpack.c.l.b16 %v2963
    %v3227 = vunpack.c.l.b16 %v2964
    %v3228 = vunpack.c.l.b16 %v2965
    %v3229 = vunpack.c.l.b16 %v2966
    %v3230 = vunpack.c.l.b16 %v2967
    %v3231 = vunpack.c.l.b16 %v2968
    %v3232 = vunpack.c.l.b16 %v2969
    %v3233 = vunpack.c.l.b16 %v2970
    %v3234 = vunpack.c.l.b16 %v2971
    %v3235 = vunpack.c.l.b16 %v2972
    %v3236 = vunpack.c.l.b16 %v2973
    %v3237 = vunpack.c.l.b16 %v2974
    %v3238 = vunpack.c.l.b16 %v2975
    %v3239 = vunpack.c.l.b16 %v2976
    %v3240 = vunpack.c.l.b16 %v2977
    %v3241 = vunpack.c.l.b16 %v2978
    %v3242 = vunpack.c.l.b16 %v2979
    %v3243 = vunpack.c.l.b16 %v2980
    %v3244 = vunpack.c.l.b16 %v2981
    %v3245 = vunpack.c.l.b16 %v2982
    %v3246 = vunpack.c.l.b16 %v2983
    %v3247 = vunpack.c.l.b16 %v2984
    %v3248 = vunpack.c.l.b16 %v2985
    %v3249 = vunpack.c.l.b16 %v2986
    %v3250 = vunpack.c.l.b16 %v2987
    %v3251 = vunpack.c.l.b16 %v2988
    %v3252 = vunpack.c.l.b16 %v2989
    %v3253 = vunpack.c.l.b16 %v2990
    %v3254 = vunpack.c.l.b16 %v2991
    %v3255 = vunpack.c.l.b16 %v2992
    %v3256 = vunpack.c.l.b16 %v2993
    %v3257 = vunpack.c.l.b16 %v2994
    %v3258 = vunpack.c.l.b16 %v2995
    %v3259 = vunpack.c.l.b16 %v2996
    %v3260 = vunpack.c.l.b16 %v2997
    %v3261 = vunpack.c.l.b16 %v2998
    %v3262 = vunpack.c.l.b16 %v2999
    %v3263 = vunpack.c.l.b16 %v3000
    %v3264 = vunpack.c.l.b16 %v3001
    %v3265 = vunpack.c.l.b16 %v3002
    %v3266 = vunpack.c.l.b16 %v3003
    %v3267 = vunpack.c.l.b16 %v3004
    %v3268 = vunpack.c.l.b16 %v3005
    %v3269 = vunpack.c.l.b16 %v3006
    %v3270 = vunpack.c.l.b16 %v3007
    %v3271 = vunpack.c.l.b16 %v3008
    %v3272 = vunpack.c.l.b16 %v3009
    %v3273 = vunpack.c.l.b16 %v3010
    %v3274 = vunpack.c.l.b16 %v3011
    %v3275 = vunpack.c.l.b16 %v3012
    %v3276 = vunpack.c.l.b16 %v3013
    %v3277 = vunpack.c.l.b16 %v3014
    %v3278 = vunpack.c.l.b16 %v3015
    %v3279 = vunpack.c.l.b16 %v3016
    %v3280 = vunpack.c.l.b16 %v3017
    %v3281 = vunpack.c.l.b16 %v3018
    %v3282 = vunpack.c.l.b16 %v3019
    %v3283 = vunpack.c.l.b16 %v3020
    %v3284 = vunpack.c.l.b16 %v3021
    %v3285 = vunpack.c.l.b16 %v3022
    %v3286 = vunpack.c.l.b16 %v3023
    %v3287 = vunpack.c.l.b16 %v3024
    %v3288 = vunpack.c.l.b16 %v3025
    %v3289 = vunpack.c.l.b16 %v3026
    %v3290 = vunpack.c.l.b16 %v3027
    %v3291 = vunpack.c.l.b16 %v3028
    %v3292 = vunpack.c.l.b16 %v3029
    %v3293 = vunpack.c.l.b16 %v3030
    %v3294 = vunpack.c.l.b16 %v3031
    %v3295 = vunpack.c.l.b16 %v3032
    %v3296 = vunpack.c.l.b16 %v3033
    %v3297 = vunpack.c.l.b16 %v3034
    %v3298 = vunpack.c.l.b16 %v3035
    %v3299 = vunpack.c.l.b16 %v3036
    %v3300 = vunpack.c.l.b16 %v3037
    %v3301 = vunpack.c.l.b16 %v3038
    %v3302 = vunpack.c.l.b16 %v3039
    %v3303 = vunpack.c.l.b16 %v3040
    %v3304 = vunpack.c.l.b16 %v3041
    %v3305 = vunpack.c.l.b16 %v3042
    %v3306 = vunpack.c.l.b16 %v3043
    %v3307 = vunpack.c.l.b16 %v3044
    %v3308 = vunpack.c.l.b16 %v3045
    %v3309 = vunpack.c.l.b16 %v3046
    %v3310 = vunpack.c.l.b16 %v3047
    %v3311 = vunpack.c.l.b16 %v3048
    %v3312 = vunpack.c.l.b16 %v3049
    %v3313 = vunpack.c.l.b16 %v3050
    %v3314 = vunpack.c.l.b16 %v3051
    %v3315 = vunpack.c.l.b16 %v3052
    %v3316 = vunpack.c.l.b16 %v3053
    %v3317 = vunpack.c.l.b16 %v3054
    %v3318 = vunpack.c.l.b16 %v3055
    %v3319 = vunpack.c.l.b16 %v3056
    %v3320 = vunpack.c.l.b16 %v3057
    %v3321 = vunpack.c.l.b16 %v3058
    %v3322 = vunpack.c.l.b16 %v3059
    %v3323 = vunpack.c.l.b16 %v3060
    %v3324 = vunpack.c.l.b16 %v3061
    %v3325 = vunpack.c.l.b16 %v3062
    %v3326 = vunpack.c.l.b16 %v3063
    %v3327 = vunpack.c.l.b16 %v3064
    %v3328 = vpack.c.b16 %v3201, %v3200
    %v3329 = vpack.c.b16 %v3203, %v3202
    %v3330 = vpack.c.b16 %v3205, %v3204
    %v3331 = vpack.c.b16 %v3207, %v3206
    %v3332 = vpack.c.b16 %v3209, %v3208
    %v3333 = vpack.c.b16 %v3211, %v3210
    %v3334 = vpack.c.b16 %v3213, %v3212
    %v3335 = vpack.c.b16 %v3215, %v3214
    %v3336 = vpack.c.b16 %v3217, %v3216
    %v3337 = vpack.c.b16 %v3219, %v3218
    %v3338 = vpack.c.b16 %v3221, %v3220
    %v3339 = vpack.c.b16 %v3223, %v3222
    %v3340 = vpack.c.b16 %v3225, %v3224
    %v3341 = vpack.c.b16 %v3227, %v3226
    %v3342 = vpack.c.b16 %v3229, %v3228
    %v3343 = vpack.c.b16 %v3231, %v3230
    %v3344 = vpack.c.b16 %v3233, %v3232
    %v3345 = vpack.c.b16 %v3235, %v3234
    %v3346 = vpack.c.b16 %v3237, %v3236
    %v3347 = vpack.c.b16 %v3239, %v3238
    %v3348 = vpack.c.b16 %v3241, %v3240
    %v3349 = vpack.c.b16 %v3243, %v3242
    %v3350 = vpack.c.b16 %v3245, %v3244
    %v3351 = vpack.c.b16 %v3247, %v3246
    %v3352 = vpack.c.b16 %v3249, %v3248
    %v3353 = vpack.c.b16 %v3251, %v3250
    %v3354 = vpack.c.b16 %v3253, %v3252
    %v3355 = vpack.c.b16 %v3255, %v3254
    %v3356 = vpack.c.b16 %v3257, %v3256
    %v3357 = vpack.c.b16 %v3259, %v3258
    %v3358 = vpack.c.b16 %v3261, %v3260
    %v3359 = vpack.c.b16 %v3263, %v3262
    %v3360 = vpack.c.b16 %v3265, %v3264
    %v3361 = vpack.c.b16 %v3267, %v3266
    %v3362 = vpack.c.b16 %v3269, %v3268
    %v3363 = vpack.c.b16 %v3271, %v3270
    %v3364 = vpack.c.b16 %v3273, %v3272
    %v3365 = vpack.c.b16 %v3275, %v3274
    %v3366 = vpack.c.b16 %v3277, %v3276
    %v3367 = vpack.c.b16 %v3279, %v3278
    %v3368 = vpack.c.b16 %v3281, %v3280
    %v3369 = vpack.c.b16 %v3283, %v3282
    %v3370 = vpack.c.b16 %v3285, %v3284
    %v3371 = vpack.c.b16 %v3287, %v3286
    %v3372 = vpack.c.b16 %v3289, %v3288
    %v3373 = vpack.c.b16 %v3291, %v3290
    %v3374 = vpack.c.b16 %v3293, %v3292
    %v3375 = vpack.c.b16 %v3295, %v3294
    %v3376 = vpack.c.b16 %v3297, %v3296
    %v3377 = vpack.c.b16 %v3299, %v3298
    %v3378 = vpack.c.b16 %v3301, %v3300
    %v3379 = vpack.c.b16 %v3303, %v3302
    %v3380 = vpack.c.b16 %v3305, %v3304
    %v3381 = vpack.c.b16 %v3307, %v3306
    %v3382 = vpack.c.b16 %v3309, %v3308
    %v3383 = vpack.c.b16 %v3311, %v3310
    %v3384 = vpack.c.b16 %v3313, %v3312
    %v3385 = vpack.c.b16 %v3315, %v3314
    %v3386 = vpack.c.b16 %v3317, %v3316
    %v3387 = vpack.c.b16 %v3319, %v3318
    %v3388 = vpack.c.b16 %v3321, %v3320
    %v3389 = vpack.c.b16 %v3323, %v3322
    %v3390 = vpack.c.b16 %v3325, %v3324
    %v3391 = vpack.c.b16 %v3327, %v3326
    %3456 = vmatprep.subr.bf16.mxu0 0
    %3457 = vmatpush1.bf16.msra.mxu0 %v3335
    %3458 = vmatprep.subr.bf16.mxu0 0
    %3459 = vmatpush1.bf16.msra.mxu0 %v3334
    %3460 = vmatprep.subr.bf16.mxu0 0
    %3461 = vmatpush1.bf16.msra.mxu0 %v3333
    %3462 = vmatprep.subr.bf16.mxu0 0
    %3463 = vmatpush1.bf16.msra.mxu0 %v3332
    %3464 = vmatprep.subr.bf16.mxu0 0
    %3465 = vmatpush1.bf16.msra.mxu0 %v3331
    %3466 = vmatprep.subr.bf16.mxu0 0
    %3467 = vmatpush1.bf16.msra.mxu0 %v3330
    %3468 = vmatprep.subr.bf16.mxu0 0
    %3469 = vmatpush1.bf16.msra.mxu0 %v3329
    %3470 = vmatprep.subr.bf16.mxu0 0
    %3471 = vmatpush1.bf16.msra.mxu0 %v3328
    %3472 = vmatprep.subr.bf16.mxu0 0
    %3473 = vmatpush2.bf16.msra.mxu0 %v3343
    %3474 = vmatprep.subr.bf16.mxu0 0
    %3475 = vmatpush2.bf16.msra.mxu0 %v3342
    %3476 = vmatprep.subr.bf16.mxu0 0
    %3477 = vmatpush2.bf16.msra.mxu0 %v3341
    %3478 = vmatprep.subr.bf16.mxu0 0
    %3479 = vmatpush2.bf16.msra.mxu0 %v3340
    %3480 = vmatprep.subr.bf16.mxu0 0
    %3481 = vmatpush2.bf16.msra.mxu0 %v3339
    %3482 = vmatprep.subr.bf16.mxu0 0
    %3483 = vmatpush2.bf16.msra.mxu0 %v3338
    %3484 = vmatprep.subr.bf16.mxu0 0
    %3485 = vmatpush2.bf16.msra.mxu0 %v3337
    %3486 = vmatprep.subr.bf16.mxu0 0
    %3487 = vmatpush2.bf16.msra.mxu0 %v3336
    %3488 = vmatprep.mubr.bf16.mxu0 %v2682
    %3489 = vmatmul.mubr.bf16.gmra.mxu0 %v2681
    %v3490 = vpop.f32.mrf.mxu0
    %v3491 = vadd.f32 %v3070, %v3490
    %v3492 = vpop.f32.mrf.mxu0
    %v3493 = vpop.f32.mrf.mxu0
    %v3494 = vadd.f32 %v3070, %v3493
    %v3495 = vpop.f32.mrf.mxu0
    %3496 = vmatprep.mubr.bf16.mxu0 %v2690
    %3497 = vmatmul.mubr.bf16.gmra.mxu0 %v2689
    %v3498 = vpop.f32.mrf.mxu0
    %v3499 = vadd.f32 %v3070, %v3498
    %v3500 = vpop.f32.mrf.mxu0
    %v3501 = vpop.f32.mrf.mxu0
    %v3502 = vadd.f32 %v3070, %v3501
    %v3503 = vpop.f32.mrf.mxu0
    %3504 = vmatprep.mubr.bf16.mxu0 %v2698
    %3505 = vmatmul.mubr.bf16.gmra.mxu0 %v2697
    %v3506 = vpop.f32.mrf.mxu0
    %v3507 = vadd.f32 %v3070, %v3506
    %v3508 = vpop.f32.mrf.mxu0
    %v3509 = vpop.f32.mrf.mxu0
    %v3510 = vadd.f32 %v3070, %v3509
    %v3511 = vpop.f32.mrf.mxu0
    %3512 = vmatprep.mubr.bf16.mxu0 %v2706
    %3513 = vmatmul.mubr.bf16.gmra.mxu0 %v2705
    %v3514 = vpop.f32.mrf.mxu0
    %v3515 = vadd.f32 %v3070, %v3514
    %v3516 = vpop.f32.mrf.mxu0
    %v3517 = vpop.f32.mrf.mxu0
    %v3518 = vadd.f32 %v3070, %v3517
    %v3519 = vpop.f32.mrf.mxu0
    %3520 = vmatprep.mubr.bf16.mxu0 %v2714
    %3521 = vmatmul.mubr.bf16.gmra.mxu0 %v2713
    %v3522 = vpop.f32.mrf.mxu0
    %v3523 = vadd.f32 %v3070, %v3522
    %v3524 = vpop.f32.mrf.mxu0
    %v3525 = vpop.f32.mrf.mxu0
    %v3526 = vadd.f32 %v3070, %v3525
    %v3527 = vpop.f32.mrf.mxu0
    %3528 = vmatprep.mubr.bf16.mxu0 %v2722
    %3529 = vmatmul.mubr.bf16.gmra.mxu0 %v2721
    %v3530 = vpop.f32.mrf.mxu0
    %v3531 = vadd.f32 %v3070, %v3530
    %v3532 = vpop.f32.mrf.mxu0
    %v3533 = vpop.f32.mrf.mxu0
    %v3534 = vadd.f32 %v3070, %v3533
    %v3535 = vpop.f32.mrf.mxu0
    %3536 = vmatprep.mubr.bf16.mxu0 %v2730
    %3537 = vmatmul.mubr.bf16.gmra.mxu0 %v2729
    %v3538 = vpop.f32.mrf.mxu0
    %v3539 = vadd.f32 %v3070, %v3538
    %v3540 = vpop.f32.mrf.mxu0
    %v3541 = vpop.f32.mrf.mxu0
    %v3542 = vadd.f32 %v3070, %v3541
    %v3543 = vpop.f32.mrf.mxu0
    %3544 = vmatprep.mubr.bf16.mxu0 %v2738
    %3545 = vmatmul.mubr.bf16.gmra.mxu0 %v2737
    %v3546 = vpop.f32.mrf.mxu0
    %v3547 = vadd.f32 %v3070, %v3546
    %v3548 = vpop.f32.mrf.mxu0
    %v3549 = vpop.f32.mrf.mxu0
    %v3550 = vadd.f32 %v3070, %v3549
    %v3551 = vpop.f32.mrf.mxu0
    %3552 = vmatprep.mubr.bf16.mxu0 %v2746
    %3553 = vmatmul.mubr.bf16.gmra.mxu0 %v2745
    %v3554 = vpop.f32.mrf.mxu0
    %v3555 = vadd.f32 %v3070, %v3554
    %v3556 = vpop.f32.mrf.mxu0
    %v3557 = vpop.f32.mrf.mxu0
    %v3558 = vadd.f32 %v3070, %v3557
    %v3559 = vpop.f32.mrf.mxu0
    %3560 = vmatprep.mubr.bf16.mxu0 %v2754
    %3561 = vmatmul.mubr.bf16.gmra.mxu0 %v2753
    %v3562 = vpop.f32.mrf.mxu0
    %v3563 = vadd.f32 %v3070, %v3562
    %v3564 = vpop.f32.mrf.mxu0
    %v3565 = vpop.f32.mrf.mxu0
    %v3566 = vadd.f32 %v3070, %v3565
    %v3567 = vpop.f32.mrf.mxu0
    %3568 = vmatprep.mubr.bf16.mxu0 %v2762
    %3569 = vmatmul.mubr.bf16.gmra.mxu0 %v2761
    %v3570 = vpop.f32.mrf.mxu0
    %v3571 = vadd.f32 %v3070, %v3570
    %v3572 = vpop.f32.mrf.mxu0
    %v3573 = vpop.f32.mrf.mxu0
    %v3574 = vadd.f32 %v3070, %v3573
    %v3575 = vpop.f32.mrf.mxu0
    %3576 = vmatprep.mubr.bf16.mxu0 %v2770
    %3577 = vmatmul.mubr.bf16.gmra.mxu0 %v2769
    %v3578 = vpop.f32.mrf.mxu0
    %v3579 = vadd.f32 %v3070, %v3578
    %v3580 = vpop.f32.mrf.mxu0
    %v3581 = vpop.f32.mrf.mxu0
    %v3582 = vadd.f32 %v3070, %v3581
    %v3583 = vpop.f32.mrf.mxu0
    %3584 = vmatprep.mubr.bf16.mxu0 %v2778
    %3585 = vmatmul.mubr.bf16.gmra.mxu0 %v2777
    %v3586 = vpop.f32.mrf.mxu0
    %v3587 = vadd.f32 %v3070, %v3586
    %v3588 = vpop.f32.mrf.mxu0
    %v3589 = vpop.f32.mrf.mxu0
    %v3590 = vadd.f32 %v3070, %v3589
    %v3591 = vpop.f32.mrf.mxu0
    %3592 = vmatprep.mubr.bf16.mxu0 %v2786
    %3593 = vmatmul.mubr.bf16.gmra.mxu0 %v2785
    %v3594 = vpop.f32.mrf.mxu0
    %v3595 = vadd.f32 %v3070, %v3594
    %v3596 = vpop.f32.mrf.mxu0
    %v3597 = vpop.f32.mrf.mxu0
    %v3598 = vadd.f32 %v3070, %v3597
    %v3599 = vpop.f32.mrf.mxu0
    %3600 = vmatprep.mubr.bf16.mxu0 %v2794
    %3601 = vmatmul.mubr.bf16.gmra.mxu0 %v2793
    %v3602 = vpop.f32.mrf.mxu0
    %v3603 = vadd.f32 %v3070, %v3602
    %v3604 = vpop.f32.mrf.mxu0
    %v3605 = vpop.f32.mrf.mxu0
    %v3606 = vadd.f32 %v3070, %v3605
    %v3607 = vpop.f32.mrf.mxu0
    %3608 = vmatprep.mubr.bf16.mxu0 %v2802
    %3609 = vmatmul.mubr.bf16.gmra.mxu0 %v2801
    %v3610 = vpop.f32.mrf.mxu0
    %v3611 = vadd.f32 %v3070, %v3610
    %v3612 = vpop.f32.mrf.mxu0
    %v3613 = vpop.f32.mrf.mxu0
    %v3614 = vadd.f32 %v3070, %v3613
    %v3615 = vpop.f32.mrf.mxu0
    %3616 = vmatprep.mubr.bf16.mxu0 %v2810
    %3617 = vmatmul.mubr.bf16.gmra.mxu0 %v2809
    %v3618 = vpop.f32.mrf.mxu0
    %v3619 = vadd.f32 %v3070, %v3618
    %v3620 = vpop.f32.mrf.mxu0
    %v3621 = vpop.f32.mrf.mxu0
    %v3622 = vadd.f32 %v3070, %v3621
    %v3623 = vpop.f32.mrf.mxu0
    %3624 = vmatprep.mubr.bf16.mxu0 %v2818
    %3625 = vmatmul.mubr.bf16.gmra.mxu0 %v2817
    %v3626 = vpop.f32.mrf.mxu0
    %v3627 = vadd.f32 %v3070, %v3626
    %v3628 = vpop.f32.mrf.mxu0
    %v3629 = vpop.f32.mrf.mxu0
    %v3630 = vadd.f32 %v3070, %v3629
    %v3631 = vpop.f32.mrf.mxu0
    %3632 = vmatprep.mubr.bf16.mxu0 %v2826
    %3633 = vmatmul.mubr.bf16.gmra.mxu0 %v2825
    %v3634 = vpop.f32.mrf.mxu0
    %v3635 = vadd.f32 %v3070, %v3634
    %v3636 = vpop.f32.mrf.mxu0
    %v3637 = vpop.f32.mrf.mxu0
    %v3638 = vadd.f32 %v3070, %v3637
    %v3639 = vpop.f32.mrf.mxu0
    %3640 = vmatprep.mubr.bf16.mxu0 %v2834
    %3641 = vmatmul.mubr.bf16.gmra.mxu0 %v2833
    %v3642 = vpop.f32.mrf.mxu0
    %v3643 = vadd.f32 %v3070, %v3642
    %v3644 = vpop.f32.mrf.mxu0
    %v3645 = vpop.f32.mrf.mxu0
    %v3646 = vadd.f32 %v3070, %v3645
    %v3647 = vpop.f32.mrf.mxu0
    %3648 = vmatprep.mubr.bf16.mxu0 %v2842
    %3649 = vmatmul.mubr.bf16.gmra.mxu0 %v2841
    %v3650 = vpop.f32.mrf.mxu0
    %v3651 = vadd.f32 %v3070, %v3650
    %v3652 = vpop.f32.mrf.mxu0
    %v3653 = vpop.f32.mrf.mxu0
    %v3654 = vadd.f32 %v3070, %v3653
    %v3655 = vpop.f32.mrf.mxu0
    %3656 = vmatprep.mubr.bf16.mxu0 %v2850
    %3657 = vmatmul.mubr.bf16.gmra.mxu0 %v2849
    %v3658 = vpop.f32.mrf.mxu0
    %v3659 = vadd.f32 %v3070, %v3658
    %v3660 = vpop.f32.mrf.mxu0
    %v3661 = vpop.f32.mrf.mxu0
    %v3662 = vadd.f32 %v3070, %v3661
    %v3663 = vpop.f32.mrf.mxu0
    %3664 = vmatprep.mubr.bf16.mxu0 %v2858
    %3665 = vmatmul.mubr.bf16.gmra.mxu0 %v2857
    %v3666 = vpop.f32.mrf.mxu0
    %v3667 = vadd.f32 %v3070, %v3666
    %v3668 = vpop.f32.mrf.mxu0
    %v3669 = vpop.f32.mrf.mxu0
    %v3670 = vadd.f32 %v3070, %v3669
    %v3671 = vpop.f32.mrf.mxu0
    %3672 = vmatprep.mubr.bf16.mxu0 %v2866
    %3673 = vmatmul.mubr.bf16.gmra.mxu0 %v2865
    %v3674 = vpop.f32.mrf.mxu0
    %v3675 = vadd.f32 %v3070, %v3674
    %v3676 = vpop.f32.mrf.mxu0
    %v3677 = vpop.f32.mrf.mxu0
    %v3678 = vadd.f32 %v3070, %v3677
    %v3679 = vpop.f32.mrf.mxu0
    %3680 = vmatprep.mubr.bf16.mxu0 %v2874
    %3681 = vmatmul.mubr.bf16.gmra.mxu0 %v2873
    %v3682 = vpop.f32.mrf.mxu0
    %v3683 = vadd.f32 %v3070, %v3682
    %v3684 = vpop.f32.mrf.mxu0
    %v3685 = vpop.f32.mrf.mxu0
    %v3686 = vadd.f32 %v3070, %v3685
    %v3687 = vpop.f32.mrf.mxu0
    %3688 = vmatprep.mubr.bf16.mxu0 %v2882
    %3689 = vmatmul.mubr.bf16.gmra.mxu0 %v2881
    %v3690 = vpop.f32.mrf.mxu0
    %v3691 = vadd.f32 %v3070, %v3690
    %v3692 = vpop.f32.mrf.mxu0
    %v3693 = vpop.f32.mrf.mxu0
    %v3694 = vadd.f32 %v3070, %v3693
    %v3695 = vpop.f32.mrf.mxu0
    %3696 = vmatprep.mubr.bf16.mxu0 %v2890
    %3697 = vmatmul.mubr.bf16.gmra.mxu0 %v2889
    %v3698 = vpop.f32.mrf.mxu0
    %v3699 = vadd.f32 %v3070, %v3698
    %v3700 = vpop.f32.mrf.mxu0
    %v3701 = vpop.f32.mrf.mxu0
    %v3702 = vadd.f32 %v3070, %v3701
    %v3703 = vpop.f32.mrf.mxu0
    %3704 = vmatprep.mubr.bf16.mxu0 %v2898
    %3705 = vmatmul.mubr.bf16.gmra.mxu0 %v2897
    %v3706 = vpop.f32.mrf.mxu0
    %v3707 = vadd.f32 %v3070, %v3706
    %v3708 = vpop.f32.mrf.mxu0
    %v3709 = vpop.f32.mrf.mxu0
    %v3710 = vadd.f32 %v3070, %v3709
    %v3711 = vpop.f32.mrf.mxu0
    %3712 = vmatprep.mubr.bf16.mxu0 %v2906
    %3713 = vmatmul.mubr.bf16.gmra.mxu0 %v2905
    %v3714 = vpop.f32.mrf.mxu0
    %v3715 = vadd.f32 %v3070, %v3714
    %v3716 = vpop.f32.mrf.mxu0
    %v3717 = vpop.f32.mrf.mxu0
    %v3718 = vadd.f32 %v3070, %v3717
    %v3719 = vpop.f32.mrf.mxu0
    %3720 = vmatprep.mubr.bf16.mxu0 %v2914
    %3721 = vmatmul.mubr.bf16.gmra.mxu0 %v2913
    %v3722 = vpop.f32.mrf.mxu0
    %v3723 = vadd.f32 %v3070, %v3722
    %v3724 = vpop.f32.mrf.mxu0
    %v3725 = vpop.f32.mrf.mxu0
    %v3726 = vadd.f32 %v3070, %v3725
    %v3727 = vpop.f32.mrf.mxu0
    %3728 = vmatprep.mubr.bf16.mxu0 %v2922
    %3729 = vmatmul.mubr.bf16.gmra.mxu0 %v2921
    %v3730 = vpop.f32.mrf.mxu0
    %v3731 = vadd.f32 %v3070, %v3730
    %v3732 = vpop.f32.mrf.mxu0
    %v3733 = vpop.f32.mrf.mxu0
    %v3734 = vadd.f32 %v3070, %v3733
    %v3735 = vpop.f32.mrf.mxu0
    %3736 = vmatprep.mubr.bf16.mxu0 %v2930
    %3737 = vmatmul.mubr.bf16.gmra.mxu0 %v2929
    %v3738 = vpop.f32.mrf.mxu0
    %v3739 = vadd.f32 %v3070, %v3738
    %v3740 = vpop.f32.mrf.mxu0
    %v3741 = vpop.f32.mrf.mxu0
    %v3742 = vadd.f32 %v3070, %v3741
    %v3743 = vpop.f32.mrf.mxu0
    %3744 = vdwg.mxu0
    %3745 = vmatprep.subr.bf16.mxu0 0
    %3746 = vmatpush1.bf16.msra.mxu0 %v3351
    %3747 = vmatprep.subr.bf16.mxu0 0
    %3748 = vmatpush1.bf16.msra.mxu0 %v3350
    %3749 = vmatprep.subr.bf16.mxu0 0
    %3750 = vmatpush1.bf16.msra.mxu0 %v3349
    %3751 = vmatprep.subr.bf16.mxu0 0
    %3752 = vmatpush1.bf16.msra.mxu0 %v3348
    %3753 = vmatprep.subr.bf16.mxu0 0
    %3754 = vmatpush1.bf16.msra.mxu0 %v3347
    %3755 = vmatprep.subr.bf16.mxu0 0
    %3756 = vmatpush1.bf16.msra.mxu0 %v3346
    %3757 = vmatprep.subr.bf16.mxu0 0
    %3758 = vmatpush1.bf16.msra.mxu0 %v3345
    %3759 = vmatprep.subr.bf16.mxu0 0
    %3760 = vmatpush1.bf16.msra.mxu0 %v3344
    %3761 = vmatprep.subr.bf16.mxu0 0
    %3762 = vmatpush2.bf16.msra.mxu0 %v3359
    %3763 = vmatprep.subr.bf16.mxu0 0
    %3764 = vmatpush2.bf16.msra.mxu0 %v3358
    %3765 = vmatprep.subr.bf16.mxu0 0
    %3766 = vmatpush2.bf16.msra.mxu0 %v3357
    %3767 = vmatprep.subr.bf16.mxu0 0
    %3768 = vmatpush2.bf16.msra.mxu0 %v3356
    %3769 = vmatprep.subr.bf16.mxu0 0
    %3770 = vmatpush2.bf16.msra.mxu0 %v3355
    %3771 = vmatprep.subr.bf16.mxu0 0
    %3772 = vmatpush2.bf16.msra.mxu0 %v3354
    %3773 = vmatprep.subr.bf16.mxu0 0
    %3774 = vmatpush2.bf16.msra.mxu0 %v3353
    %3775 = vmatprep.subr.bf16.mxu0 0
    %3776 = vmatpush2.bf16.msra.mxu0 %v3352
    %3777 = vmatprep.mubr.bf16.mxu0 %v2684
    %3778 = vmatmul.mubr.bf16.gmra.mxu0 %v2683
    %v3779 = vpop.f32.mrf.mxu0
    %v3780 = vadd.f32 %v3491, %v3779
    %v3781 = vpop.f32.mrf.mxu0
    %v3782 = vpop.f32.mrf.mxu0
    %v3783 = vadd.f32 %v3494, %v3782
    %v3784 = vpop.f32.mrf.mxu0
    %3785 = vmatprep.mubr.bf16.mxu0 %v2692
    %3786 = vmatmul.mubr.bf16.gmra.mxu0 %v2691
    %v3787 = vpop.f32.mrf.mxu0
    %v3788 = vadd.f32 %v3499, %v3787
    %v3789 = vpop.f32.mrf.mxu0
    %v3790 = vpop.f32.mrf.mxu0
    %v3791 = vadd.f32 %v3502, %v3790
    %v3792 = vpop.f32.mrf.mxu0
    %3793 = vmatprep.mubr.bf16.mxu0 %v2700
    %3794 = vmatmul.mubr.bf16.gmra.mxu0 %v2699
    %v3795 = vpop.f32.mrf.mxu0
    %v3796 = vadd.f32 %v3507, %v3795
    %v3797 = vpop.f32.mrf.mxu0
    %v3798 = vpop.f32.mrf.mxu0
    %v3799 = vadd.f32 %v3510, %v3798
    %v3800 = vpop.f32.mrf.mxu0
    %3801 = vmatprep.mubr.bf16.mxu0 %v2708
    %3802 = vmatmul.mubr.bf16.gmra.mxu0 %v2707
    %v3803 = vpop.f32.mrf.mxu0
    %v3804 = vadd.f32 %v3515, %v3803
    %v3805 = vpop.f32.mrf.mxu0
    %v3806 = vpop.f32.mrf.mxu0
    %v3807 = vadd.f32 %v3518, %v3806
    %v3808 = vpop.f32.mrf.mxu0
    %3809 = vmatprep.mubr.bf16.mxu0 %v2716
    %3810 = vmatmul.mubr.bf16.gmra.mxu0 %v2715
    %v3811 = vpop.f32.mrf.mxu0
    %v3812 = vadd.f32 %v3523, %v3811
    %v3813 = vpop.f32.mrf.mxu0
    %v3814 = vpop.f32.mrf.mxu0
    %v3815 = vadd.f32 %v3526, %v3814
    %v3816 = vpop.f32.mrf.mxu0
    %3817 = vmatprep.mubr.bf16.mxu0 %v2724
    %3818 = vmatmul.mubr.bf16.gmra.mxu0 %v2723
    %v3819 = vpop.f32.mrf.mxu0
    %v3820 = vadd.f32 %v3531, %v3819
    %v3821 = vpop.f32.mrf.mxu0
    %v3822 = vpop.f32.mrf.mxu0
    %v3823 = vadd.f32 %v3534, %v3822
    %v3824 = vpop.f32.mrf.mxu0
    %3825 = vmatprep.mubr.bf16.mxu0 %v2732
    %3826 = vmatmul.mubr.bf16.gmra.mxu0 %v2731
    %v3827 = vpop.f32.mrf.mxu0
    %v3828 = vadd.f32 %v3539, %v3827
    %v3829 = vpop.f32.mrf.mxu0
    %v3830 = vpop.f32.mrf.mxu0
    %v3831 = vadd.f32 %v3542, %v3830
    %v3832 = vpop.f32.mrf.mxu0
    %3833 = vmatprep.mubr.bf16.mxu0 %v2740
    %3834 = vmatmul.mubr.bf16.gmra.mxu0 %v2739
    %v3835 = vpop.f32.mrf.mxu0
    %v3836 = vadd.f32 %v3547, %v3835
    %v3837 = vpop.f32.mrf.mxu0
    %v3838 = vpop.f32.mrf.mxu0
    %v3839 = vadd.f32 %v3550, %v3838
    %v3840 = vpop.f32.mrf.mxu0
    %3841 = vmatprep.mubr.bf16.mxu0 %v2748
    %3842 = vmatmul.mubr.bf16.gmra.mxu0 %v2747
    %v3843 = vpop.f32.mrf.mxu0
    %v3844 = vadd.f32 %v3555, %v3843
    %v3845 = vpop.f32.mrf.mxu0
    %v3846 = vpop.f32.mrf.mxu0
    %v3847 = vadd.f32 %v3558, %v3846
    %v3848 = vpop.f32.mrf.mxu0
    %3849 = vmatprep.mubr.bf16.mxu0 %v2756
    %3850 = vmatmul.mubr.bf16.gmra.mxu0 %v2755
    %v3851 = vpop.f32.mrf.mxu0
    %v3852 = vadd.f32 %v3563, %v3851
    %v3853 = vpop.f32.mrf.mxu0
    %v3854 = vpop.f32.mrf.mxu0
    %v3855 = vadd.f32 %v3566, %v3854
    %v3856 = vpop.f32.mrf.mxu0
    %3857 = vmatprep.mubr.bf16.mxu0 %v2764
    %3858 = vmatmul.mubr.bf16.gmra.mxu0 %v2763
    %v3859 = vpop.f32.mrf.mxu0
    %v3860 = vadd.f32 %v3571, %v3859
    %v3861 = vpop.f32.mrf.mxu0
    %v3862 = vpop.f32.mrf.mxu0
    %v3863 = vadd.f32 %v3574, %v3862
    %v3864 = vpop.f32.mrf.mxu0
    %3865 = vmatprep.mubr.bf16.mxu0 %v2772
    %3866 = vmatmul.mubr.bf16.gmra.mxu0 %v2771
    %v3867 = vpop.f32.mrf.mxu0
    %v3868 = vadd.f32 %v3579, %v3867
    %v3869 = vpop.f32.mrf.mxu0
    %v3870 = vpop.f32.mrf.mxu0
    %v3871 = vadd.f32 %v3582, %v3870
    %v3872 = vpop.f32.mrf.mxu0
    %3873 = vmatprep.mubr.bf16.mxu0 %v2780
    %3874 = vmatmul.mubr.bf16.gmra.mxu0 %v2779
    %v3875 = vpop.f32.mrf.mxu0
    %v3876 = vadd.f32 %v3587, %v3875
    %v3877 = vpop.f32.mrf.mxu0
    %v3878 = vpop.f32.mrf.mxu0
    %v3879 = vadd.f32 %v3590, %v3878
    %v3880 = vpop.f32.mrf.mxu0
    %3881 = vmatprep.mubr.bf16.mxu0 %v2788
    %3882 = vmatmul.mubr.bf16.gmra.mxu0 %v2787
    %v3883 = vpop.f32.mrf.mxu0
    %v3884 = vadd.f32 %v3595, %v3883
    %v3885 = vpop.f32.mrf.mxu0
    %v3886 = vpop.f32.mrf.mxu0
    %v3887 = vadd.f32 %v3598, %v3886
    %v3888 = vpop.f32.mrf.mxu0
    %3889 = vmatprep.mubr.bf16.mxu0 %v2796
    %3890 = vmatmul.mubr.bf16.gmra.mxu0 %v2795
    %v3891 = vpop.f32.mrf.mxu0
    %v3892 = vadd.f32 %v3603, %v3891
    %v3893 = vpop.f32.mrf.mxu0
    %v3894 = vpop.f32.mrf.mxu0
    %v3895 = vadd.f32 %v3606, %v3894
    %v3896 = vpop.f32.mrf.mxu0
    %3897 = vmatprep.mubr.bf16.mxu0 %v2804
    %3898 = vmatmul.mubr.bf16.gmra.mxu0 %v2803
    %v3899 = vpop.f32.mrf.mxu0
    %v3900 = vadd.f32 %v3611, %v3899
    %v3901 = vpop.f32.mrf.mxu0
    %v3902 = vpop.f32.mrf.mxu0
    %v3903 = vadd.f32 %v3614, %v3902
    %v3904 = vpop.f32.mrf.mxu0
    %3905 = vmatprep.mubr.bf16.mxu0 %v2812
    %3906 = vmatmul.mubr.bf16.gmra.mxu0 %v2811
    %v3907 = vpop.f32.mrf.mxu0
    %v3908 = vadd.f32 %v3619, %v3907
    %v3909 = vpop.f32.mrf.mxu0
    %v3910 = vpop.f32.mrf.mxu0
    %v3911 = vadd.f32 %v3622, %v3910
    %v3912 = vpop.f32.mrf.mxu0
    %3913 = vmatprep.mubr.bf16.mxu0 %v2820
    %3914 = vmatmul.mubr.bf16.gmra.mxu0 %v2819
    %v3915 = vpop.f32.mrf.mxu0
    %v3916 = vadd.f32 %v3627, %v3915
    %v3917 = vpop.f32.mrf.mxu0
    %v3918 = vpop.f32.mrf.mxu0
    %v3919 = vadd.f32 %v3630, %v3918
    %v3920 = vpop.f32.mrf.mxu0
    %3921 = vmatprep.mubr.bf16.mxu0 %v2828
    %3922 = vmatmul.mubr.bf16.gmra.mxu0 %v2827
    %v3923 = vpop.f32.mrf.mxu0
    %v3924 = vadd.f32 %v3635, %v3923
    %v3925 = vpop.f32.mrf.mxu0
    %v3926 = vpop.f32.mrf.mxu0
    %v3927 = vadd.f32 %v3638, %v3926
    %v3928 = vpop.f32.mrf.mxu0
    %3929 = vmatprep.mubr.bf16.mxu0 %v2836
    %3930 = vmatmul.mubr.bf16.gmra.mxu0 %v2835
    %v3931 = vpop.f32.mrf.mxu0
    %v3932 = vadd.f32 %v3643, %v3931
    %v3933 = vpop.f32.mrf.mxu0
    %v3934 = vpop.f32.mrf.mxu0
    %v3935 = vadd.f32 %v3646, %v3934
    %v3936 = vpop.f32.mrf.mxu0
    %3937 = vmatprep.mubr.bf16.mxu0 %v2844
    %3938 = vmatmul.mubr.bf16.gmra.mxu0 %v2843
    %v3939 = vpop.f32.mrf.mxu0
    %v3940 = vadd.f32 %v3651, %v3939
    %v3941 = vpop.f32.mrf.mxu0
    %v3942 = vpop.f32.mrf.mxu0
    %v3943 = vadd.f32 %v3654, %v3942
    %v3944 = vpop.f32.mrf.mxu0
    %3945 = vmatprep.mubr.bf16.mxu0 %v2852
    %3946 = vmatmul.mubr.bf16.gmra.mxu0 %v2851
    %v3947 = vpop.f32.mrf.mxu0
    %v3948 = vadd.f32 %v3659, %v3947
    %v3949 = vpop.f32.mrf.mxu0
    %v3950 = vpop.f32.mrf.mxu0
    %v3951 = vadd.f32 %v3662, %v3950
    %v3952 = vpop.f32.mrf.mxu0
    %3953 = vmatprep.mubr.bf16.mxu0 %v2860
    %3954 = vmatmul.mubr.bf16.gmra.mxu0 %v2859
    %v3955 = vpop.f32.mrf.mxu0
    %v3956 = vadd.f32 %v3667, %v3955
    %v3957 = vpop.f32.mrf.mxu0
    %v3958 = vpop.f32.mrf.mxu0
    %v3959 = vadd.f32 %v3670, %v3958
    %v3960 = vpop.f32.mrf.mxu0
    %3961 = vmatprep.mubr.bf16.mxu0 %v2868
    %3962 = vmatmul.mubr.bf16.gmra.mxu0 %v2867
    %v3963 = vpop.f32.mrf.mxu0
    %v3964 = vadd.f32 %v3675, %v3963
    %v3965 = vpop.f32.mrf.mxu0
    %v3966 = vpop.f32.mrf.mxu0
    %v3967 = vadd.f32 %v3678, %v3966
    %v3968 = vpop.f32.mrf.mxu0
    %3969 = vmatprep.mubr.bf16.mxu0 %v2876
    %3970 = vmatmul.mubr.bf16.gmra.mxu0 %v2875
    %v3971 = vpop.f32.mrf.mxu0
    %v3972 = vadd.f32 %v3683, %v3971
    %v3973 = vpop.f32.mrf.mxu0
    %v3974 = vpop.f32.mrf.mxu0
    %v3975 = vadd.f32 %v3686, %v3974
    %v3976 = vpop.f32.mrf.mxu0
    %3977 = vmatprep.mubr.bf16.mxu0 %v2884
    %3978 = vmatmul.mubr.bf16.gmra.mxu0 %v2883
    %v3979 = vpop.f32.mrf.mxu0
    %v3980 = vadd.f32 %v3691, %v3979
    %v3981 = vpop.f32.mrf.mxu0
    %v3982 = vpop.f32.mrf.mxu0
    %v3983 = vadd.f32 %v3694, %v3982
    %v3984 = vpop.f32.mrf.mxu0
    %3985 = vmatprep.mubr.bf16.mxu0 %v2892
    %3986 = vmatmul.mubr.bf16.gmra.mxu0 %v2891
    %v3987 = vpop.f32.mrf.mxu0
    %v3988 = vadd.f32 %v3699, %v3987
    %v3989 = vpop.f32.mrf.mxu0
    %v3990 = vpop.f32.mrf.mxu0
    %v3991 = vadd.f32 %v3702, %v3990
    %v3992 = vpop.f32.mrf.mxu0
    %3993 = vmatprep.mubr.bf16.mxu0 %v2900
    %3994 = vmatmul.mubr.bf16.gmra.mxu0 %v2899
    %v3995 = vpop.f32.mrf.mxu0
    %v3996 = vadd.f32 %v3707, %v3995
    %v3997 = vpop.f32.mrf.mxu0
    %v3998 = vpop.f32.mrf.mxu0
    %v3999 = vadd.f32 %v3710, %v3998
    %v4000 = vpop.f32.mrf.mxu0
    %4001 = vmatprep.mubr.bf16.mxu0 %v2908
    %4002 = vmatmul.mubr.bf16.gmra.mxu0 %v2907
    %v4003 = vpop.f32.mrf.mxu0
    %v4004 = vadd.f32 %v3715, %v4003
    %v4005 = vpop.f32.mrf.mxu0
    %v4006 = vpop.f32.mrf.mxu0
    %v4007 = vadd.f32 %v3718, %v4006
    %v4008 = vpop.f32.mrf.mxu0
    %4009 = vmatprep.mubr.bf16.mxu0 %v2916
    %4010 = vmatmul.mubr.bf16.gmra.mxu0 %v2915
    %v4011 = vpop.f32.mrf.mxu0
    %v4012 = vadd.f32 %v3723, %v4011
    %v4013 = vpop.f32.mrf.mxu0
    %v4014 = vpop.f32.mrf.mxu0
    %v4015 = vadd.f32 %v3726, %v4014
    %v4016 = vpop.f32.mrf.mxu0
    %4017 = vmatprep.mubr.bf16.mxu0 %v2924
    %4018 = vmatmul.mubr.bf16.gmra.mxu0 %v2923
    %v4019 = vpop.f32.mrf.mxu0
    %v4020 = vadd.f32 %v3731, %v4019
    %v4021 = vpop.f32.mrf.mxu0
    %v4022 = vpop.f32.mrf.mxu0
    %v4023 = vadd.f32 %v3734, %v4022
    %v4024 = vpop.f32.mrf.mxu0
    %4025 = vmatprep.mubr.bf16.mxu0 %v2932
    %4026 = vmatmul.mubr.bf16.gmra.mxu0 %v2931
    %v4027 = vpop.f32.mrf.mxu0
    %v4028 = vadd.f32 %v3739, %v4027
    %v4029 = vpop.f32.mrf.mxu0
    %v4030 = vpop.f32.mrf.mxu0
    %v4031 = vadd.f32 %v3742, %v4030
    %v4032 = vpop.f32.mrf.mxu0
    %4033 = vdwg.mxu0
    %4034 = vmatprep.subr.bf16.mxu0 0
    %4035 = vmatpush1.bf16.msra.mxu0 %v3367
    %4036 = vmatprep.subr.bf16.mxu0 0
    %4037 = vmatpush1.bf16.msra.mxu0 %v3366
    %4038 = vmatprep.subr.bf16.mxu0 0
    %4039 = vmatpush1.bf16.msra.mxu0 %v3365
    %4040 = vmatprep.subr.bf16.mxu0 0
    %4041 = vmatpush1.bf16.msra.mxu0 %v3364
    %4042 = vmatprep.subr.bf16.mxu0 0
    %4043 = vmatpush1.bf16.msra.mxu0 %v3363
    %4044 = vmatprep.subr.bf16.mxu0 0
    %4045 = vmatpush1.bf16.msra.mxu0 %v3362
    %4046 = vmatprep.subr.bf16.mxu0 0
    %4047 = vmatpush1.bf16.msra.mxu0 %v3361
    %4048 = vmatprep.subr.bf16.mxu0 0
    %4049 = vmatpush1.bf16.msra.mxu0 %v3360
    %4050 = vmatprep.subr.bf16.mxu0 0
    %4051 = vmatpush2.bf16.msra.mxu0 %v3375
    %4052 = vmatprep.subr.bf16.mxu0 0
    %4053 = vmatpush2.bf16.msra.mxu0 %v3374
    %4054 = vmatprep.subr.bf16.mxu0 0
    %4055 = vmatpush2.bf16.msra.mxu0 %v3373
    %4056 = vmatprep.subr.bf16.mxu0 0
    %4057 = vmatpush2.bf16.msra.mxu0 %v3372
    %4058 = vmatprep.subr.bf16.mxu0 0
    %4059 = vmatpush2.bf16.msra.mxu0 %v3371
    %4060 = vmatprep.subr.bf16.mxu0 0
    %4061 = vmatpush2.bf16.msra.mxu0 %v3370
    %4062 = vmatprep.subr.bf16.mxu0 0
    %4063 = vmatpush2.bf16.msra.mxu0 %v3369
    %4064 = vmatprep.subr.bf16.mxu0 0
    %4065 = vmatpush2.bf16.msra.mxu0 %v3368
    %4066 = vmatprep.mubr.bf16.mxu0 %v2686
    %4067 = vmatmul.mubr.bf16.gmra.mxu0 %v2685
    %v4068 = vpop.f32.mrf.mxu0
    %v4069 = vadd.f32 %v3780, %v4068
    %v4070 = vpop.f32.mrf.mxu0
    %v4071 = vpop.f32.mrf.mxu0
    %v4072 = vadd.f32 %v3783, %v4071
    %v4073 = vpop.f32.mrf.mxu0
    %4074 = vmatprep.mubr.bf16.mxu0 %v2694
    %4075 = vmatmul.mubr.bf16.gmra.mxu0 %v2693
    %v4076 = vpop.f32.mrf.mxu0
    %v4077 = vadd.f32 %v3788, %v4076
    %v4078 = vpop.f32.mrf.mxu0
    %v4079 = vpop.f32.mrf.mxu0
    %v4080 = vadd.f32 %v3791, %v4079
    %v4081 = vpop.f32.mrf.mxu0
    %4082 = vmatprep.mubr.bf16.mxu0 %v2702
    %4083 = vmatmul.mubr.bf16.gmra.mxu0 %v2701
    %v4084 = vpop.f32.mrf.mxu0
    %v4085 = vadd.f32 %v3796, %v4084
    %v4086 = vpop.f32.mrf.mxu0
    %v4087 = vpop.f32.mrf.mxu0
    %v4088 = vadd.f32 %v3799, %v4087
    %v4089 = vpop.f32.mrf.mxu0
    %4090 = vmatprep.mubr.bf16.mxu0 %v2710
    %4091 = vmatmul.mubr.bf16.gmra.mxu0 %v2709
    %v4092 = vpop.f32.mrf.mxu0
    %v4093 = vadd.f32 %v3804, %v4092
    %v4094 = vpop.f32.mrf.mxu0
    %v4095 = vpop.f32.mrf.mxu0
    %v4096 = vadd.f32 %v3807, %v4095
    %v4097 = vpop.f32.mrf.mxu0
    %4098 = vmatprep.mubr.bf16.mxu0 %v2718
    %4099 = vmatmul.mubr.bf16.gmra.mxu0 %v2717
    %v4100 = vpop.f32.mrf.mxu0
    %v4101 = vadd.f32 %v3812, %v4100
    %v4102 = vpop.f32.mrf.mxu0
    %v4103 = vpop.f32.mrf.mxu0
    %v4104 = vadd.f32 %v3815, %v4103
    %v4105 = vpop.f32.mrf.mxu0
    %4106 = vmatprep.mubr.bf16.mxu0 %v2726
    %4107 = vmatmul.mubr.bf16.gmra.mxu0 %v2725
    %v4108 = vpop.f32.mrf.mxu0
    %v4109 = vadd.f32 %v3820, %v4108
    %v4110 = vpop.f32.mrf.mxu0
    %v4111 = vpop.f32.mrf.mxu0
    %v4112 = vadd.f32 %v3823, %v4111
    %v4113 = vpop.f32.mrf.mxu0
    %4114 = vmatprep.mubr.bf16.mxu0 %v2734
    %4115 = vmatmul.mubr.bf16.gmra.mxu0 %v2733
    %v4116 = vpop.f32.mrf.mxu0
    %v4117 = vadd.f32 %v3828, %v4116
    %v4118 = vpop.f32.mrf.mxu0
    %v4119 = vpop.f32.mrf.mxu0
    %v4120 = vadd.f32 %v3831, %v4119
    %v4121 = vpop.f32.mrf.mxu0
    %4122 = vmatprep.mubr.bf16.mxu0 %v2742
    %4123 = vmatmul.mubr.bf16.gmra.mxu0 %v2741
    %v4124 = vpop.f32.mrf.mxu0
    %v4125 = vadd.f32 %v3836, %v4124
    %v4126 = vpop.f32.mrf.mxu0
    %v4127 = vpop.f32.mrf.mxu0
    %v4128 = vadd.f32 %v3839, %v4127
    %v4129 = vpop.f32.mrf.mxu0
    %4130 = vmatprep.mubr.bf16.mxu0 %v2750
    %4131 = vmatmul.mubr.bf16.gmra.mxu0 %v2749
    %v4132 = vpop.f32.mrf.mxu0
    %v4133 = vadd.f32 %v3844, %v4132
    %v4134 = vpop.f32.mrf.mxu0
    %v4135 = vpop.f32.mrf.mxu0
    %v4136 = vadd.f32 %v3847, %v4135
    %v4137 = vpop.f32.mrf.mxu0
    %4138 = vmatprep.mubr.bf16.mxu0 %v2758
    %4139 = vmatmul.mubr.bf16.gmra.mxu0 %v2757
    %v4140 = vpop.f32.mrf.mxu0
    %v4141 = vadd.f32 %v3852, %v4140
    %v4142 = vpop.f32.mrf.mxu0
    %v4143 = vpop.f32.mrf.mxu0
    %v4144 = vadd.f32 %v3855, %v4143
    %v4145 = vpop.f32.mrf.mxu0
    %4146 = vmatprep.mubr.bf16.mxu0 %v2766
    %4147 = vmatmul.mubr.bf16.gmra.mxu0 %v2765
    %v4148 = vpop.f32.mrf.mxu0
    %v4149 = vadd.f32 %v3860, %v4148
    %v4150 = vpop.f32.mrf.mxu0
    %v4151 = vpop.f32.mrf.mxu0
    %v4152 = vadd.f32 %v3863, %v4151
    %v4153 = vpop.f32.mrf.mxu0
    %4154 = vmatprep.mubr.bf16.mxu0 %v2774
    %4155 = vmatmul.mubr.bf16.gmra.mxu0 %v2773
    %v4156 = vpop.f32.mrf.mxu0
    %v4157 = vadd.f32 %v3868, %v4156
    %v4158 = vpop.f32.mrf.mxu0
    %v4159 = vpop.f32.mrf.mxu0
    %v4160 = vadd.f32 %v3871, %v4159
    %v4161 = vpop.f32.mrf.mxu0
    %4162 = vmatprep.mubr.bf16.mxu0 %v2782
    %4163 = vmatmul.mubr.bf16.gmra.mxu0 %v2781
    %v4164 = vpop.f32.mrf.mxu0
    %v4165 = vadd.f32 %v3876, %v4164
    %v4166 = vpop.f32.mrf.mxu0
    %v4167 = vpop.f32.mrf.mxu0
    %v4168 = vadd.f32 %v3879, %v4167
    %v4169 = vpop.f32.mrf.mxu0
    %4170 = vmatprep.mubr.bf16.mxu0 %v2790
    %4171 = vmatmul.mubr.bf16.gmra.mxu0 %v2789
    %v4172 = vpop.f32.mrf.mxu0
    %v4173 = vadd.f32 %v3884, %v4172
    %v4174 = vpop.f32.mrf.mxu0
    %v4175 = vpop.f32.mrf.mxu0
    %v4176 = vadd.f32 %v3887, %v4175
    %v4177 = vpop.f32.mrf.mxu0
    %4178 = vmatprep.mubr.bf16.mxu0 %v2798
    %4179 = vmatmul.mubr.bf16.gmra.mxu0 %v2797
    %v4180 = vpop.f32.mrf.mxu0
    %v4181 = vadd.f32 %v3892, %v4180
    %v4182 = vpop.f32.mrf.mxu0
    %v4183 = vpop.f32.mrf.mxu0
    %v4184 = vadd.f32 %v3895, %v4183
    %v4185 = vpop.f32.mrf.mxu0
    %4186 = vmatprep.mubr.bf16.mxu0 %v2806
    %4187 = vmatmul.mubr.bf16.gmra.mxu0 %v2805
    %v4188 = vpop.f32.mrf.mxu0
    %v4189 = vadd.f32 %v3900, %v4188
    %v4190 = vpop.f32.mrf.mxu0
    %v4191 = vpop.f32.mrf.mxu0
    %v4192 = vadd.f32 %v3903, %v4191
    %v4193 = vpop.f32.mrf.mxu0
    %4194 = vmatprep.mubr.bf16.mxu0 %v2814
    %4195 = vmatmul.mubr.bf16.gmra.mxu0 %v2813
    %v4196 = vpop.f32.mrf.mxu0
    %v4197 = vadd.f32 %v3908, %v4196
    %v4198 = vpop.f32.mrf.mxu0
    %v4199 = vpop.f32.mrf.mxu0
    %v4200 = vadd.f32 %v3911, %v4199
    %v4201 = vpop.f32.mrf.mxu0
    %4202 = vmatprep.mubr.bf16.mxu0 %v2822
    %4203 = vmatmul.mubr.bf16.gmra.mxu0 %v2821
    %v4204 = vpop.f32.mrf.mxu0
    %v4205 = vadd.f32 %v3916, %v4204
    %v4206 = vpop.f32.mrf.mxu0
    %v4207 = vpop.f32.mrf.mxu0
    %v4208 = vadd.f32 %v3919, %v4207
    %v4209 = vpop.f32.mrf.mxu0
    %4210 = vmatprep.mubr.bf16.mxu0 %v2830
    %4211 = vmatmul.mubr.bf16.gmra.mxu0 %v2829
    %v4212 = vpop.f32.mrf.mxu0
    %v4213 = vadd.f32 %v3924, %v4212
    %v4214 = vpop.f32.mrf.mxu0
    %v4215 = vpop.f32.mrf.mxu0
    %v4216 = vadd.f32 %v3927, %v4215
    %v4217 = vpop.f32.mrf.mxu0
    %4218 = vmatprep.mubr.bf16.mxu0 %v2838
    %4219 = vmatmul.mubr.bf16.gmra.mxu0 %v2837
    %v4220 = vpop.f32.mrf.mxu0
    %v4221 = vadd.f32 %v3932, %v4220
    %v4222 = vpop.f32.mrf.mxu0
    %v4223 = vpop.f32.mrf.mxu0
    %v4224 = vadd.f32 %v3935, %v4223
    %v4225 = vpop.f32.mrf.mxu0
    %4226 = vmatprep.mubr.bf16.mxu0 %v2846
    %4227 = vmatmul.mubr.bf16.gmra.mxu0 %v2845
    %v4228 = vpop.f32.mrf.mxu0
    %v4229 = vadd.f32 %v3940, %v4228
    %v4230 = vpop.f32.mrf.mxu0
    %v4231 = vpop.f32.mrf.mxu0
    %v4232 = vadd.f32 %v3943, %v4231
    %v4233 = vpop.f32.mrf.mxu0
    %4234 = vmatprep.mubr.bf16.mxu0 %v2854
    %4235 = vmatmul.mubr.bf16.gmra.mxu0 %v2853
    %v4236 = vpop.f32.mrf.mxu0
    %v4237 = vadd.f32 %v3948, %v4236
    %v4238 = vpop.f32.mrf.mxu0
    %v4239 = vpop.f32.mrf.mxu0
    %v4240 = vadd.f32 %v3951, %v4239
    %v4241 = vpop.f32.mrf.mxu0
    %4242 = vmatprep.mubr.bf16.mxu0 %v2862
    %4243 = vmatmul.mubr.bf16.gmra.mxu0 %v2861
    %v4244 = vpop.f32.mrf.mxu0
    %v4245 = vadd.f32 %v3956, %v4244
    %v4246 = vpop.f32.mrf.mxu0
    %v4247 = vpop.f32.mrf.mxu0
    %v4248 = vadd.f32 %v3959, %v4247
    %v4249 = vpop.f32.mrf.mxu0
    %4250 = vmatprep.mubr.bf16.mxu0 %v2870
    %4251 = vmatmul.mubr.bf16.gmra.mxu0 %v2869
    %v4252 = vpop.f32.mrf.mxu0
    %v4253 = vadd.f32 %v3964, %v4252
    %v4254 = vpop.f32.mrf.mxu0
    %v4255 = vpop.f32.mrf.mxu0
    %v4256 = vadd.f32 %v3967, %v4255
    %v4257 = vpop.f32.mrf.mxu0
    %4258 = vmatprep.mubr.bf16.mxu0 %v2878
    %4259 = vmatmul.mubr.bf16.gmra.mxu0 %v2877
    %v4260 = vpop.f32.mrf.mxu0
    %v4261 = vadd.f32 %v3972, %v4260
    %v4262 = vpop.f32.mrf.mxu0
    %v4263 = vpop.f32.mrf.mxu0
    %v4264 = vadd.f32 %v3975, %v4263
    %v4265 = vpop.f32.mrf.mxu0
    %4266 = vmatprep.mubr.bf16.mxu0 %v2886
    %4267 = vmatmul.mubr.bf16.gmra.mxu0 %v2885
    %v4268 = vpop.f32.mrf.mxu0
    %v4269 = vadd.f32 %v3980, %v4268
    %v4270 = vpop.f32.mrf.mxu0
    %v4271 = vpop.f32.mrf.mxu0
    %v4272 = vadd.f32 %v3983, %v4271
    %v4273 = vpop.f32.mrf.mxu0
    %4274 = vmatprep.mubr.bf16.mxu0 %v2894
    %4275 = vmatmul.mubr.bf16.gmra.mxu0 %v2893
    %v4276 = vpop.f32.mrf.mxu0
    %v4277 = vadd.f32 %v3988, %v4276
    %v4278 = vpop.f32.mrf.mxu0
    %v4279 = vpop.f32.mrf.mxu0
    %v4280 = vadd.f32 %v3991, %v4279
    %v4281 = vpop.f32.mrf.mxu0
    %4282 = vmatprep.mubr.bf16.mxu0 %v2902
    %4283 = vmatmul.mubr.bf16.gmra.mxu0 %v2901
    %v4284 = vpop.f32.mrf.mxu0
    %v4285 = vadd.f32 %v3996, %v4284
    %v4286 = vpop.f32.mrf.mxu0
    %v4287 = vpop.f32.mrf.mxu0
    %v4288 = vadd.f32 %v3999, %v4287
    %v4289 = vpop.f32.mrf.mxu0
    %4290 = vmatprep.mubr.bf16.mxu0 %v2910
    %4291 = vmatmul.mubr.bf16.gmra.mxu0 %v2909
    %v4292 = vpop.f32.mrf.mxu0
    %v4293 = vadd.f32 %v4004, %v4292
    %v4294 = vpop.f32.mrf.mxu0
    %v4295 = vpop.f32.mrf.mxu0
    %v4296 = vadd.f32 %v4007, %v4295
    %v4297 = vpop.f32.mrf.mxu0
    %4298 = vmatprep.mubr.bf16.mxu0 %v2918
    %4299 = vmatmul.mubr.bf16.gmra.mxu0 %v2917
    %v4300 = vpop.f32.mrf.mxu0
    %v4301 = vadd.f32 %v4012, %v4300
    %v4302 = vpop.f32.mrf.mxu0
    %v4303 = vpop.f32.mrf.mxu0
    %v4304 = vadd.f32 %v4015, %v4303
    %v4305 = vpop.f32.mrf.mxu0
    %4306 = vmatprep.mubr.bf16.mxu0 %v2926
    %4307 = vmatmul.mubr.bf16.gmra.mxu0 %v2925
    %v4308 = vpop.f32.mrf.mxu0
    %v4309 = vadd.f32 %v4020, %v4308
    %v4310 = vpop.f32.mrf.mxu0
    %v4311 = vpop.f32.mrf.mxu0
    %v4312 = vadd.f32 %v4023, %v4311
    %v4313 = vpop.f32.mrf.mxu0
    %4314 = vmatprep.mubr.bf16.mxu0 %v2934
    %4315 = vmatmul.mubr.bf16.gmra.mxu0 %v2933
    %v4316 = vpop.f32.mrf.mxu0
    %v4317 = vadd.f32 %v4028, %v4316
    %v4318 = vpop.f32.mrf.mxu0
    %v4319 = vpop.f32.mrf.mxu0
    %v4320 = vadd.f32 %v4031, %v4319
    %v4321 = vpop.f32.mrf.mxu0
    %4322 = vdwg.mxu0
    %4323 = vmatprep.subr.bf16.mxu0 0
    %4324 = vmatpush1.bf16.msra.mxu0 %v3383
    %4325 = vmatprep.subr.bf16.mxu0 0
    %4326 = vmatpush1.bf16.msra.mxu0 %v3382
    %4327 = vmatprep.subr.bf16.mxu0 0
    %4328 = vmatpush1.bf16.msra.mxu0 %v3381
    %4329 = vmatprep.subr.bf16.mxu0 0
    %4330 = vmatpush1.bf16.msra.mxu0 %v3380
    %4331 = vmatprep.subr.bf16.mxu0 0
    %4332 = vmatpush1.bf16.msra.mxu0 %v3379
    %4333 = vmatprep.subr.bf16.mxu0 0
    %4334 = vmatpush1.bf16.msra.mxu0 %v3378
    %4335 = vmatprep.subr.bf16.mxu0 0
    %4336 = vmatpush1.bf16.msra.mxu0 %v3377
    %4337 = vmatprep.subr.bf16.mxu0 0
    %4338 = vmatpush1.bf16.msra.mxu0 %v3376
    %4339 = vmatprep.subr.bf16.mxu0 0
    %4340 = vmatpush2.bf16.msra.mxu0 %v3391
    %4341 = vmatprep.subr.bf16.mxu0 0
    %4342 = vmatpush2.bf16.msra.mxu0 %v3390
    %4343 = vmatprep.subr.bf16.mxu0 0
    %4344 = vmatpush2.bf16.msra.mxu0 %v3389
    %4345 = vmatprep.subr.bf16.mxu0 0
    %4346 = vmatpush2.bf16.msra.mxu0 %v3388
    %4347 = vmatprep.subr.bf16.mxu0 0
    %4348 = vmatpush2.bf16.msra.mxu0 %v3387
    %4349 = vmatprep.subr.bf16.mxu0 0
    %4350 = vmatpush2.bf16.msra.mxu0 %v3386
    %4351 = vmatprep.subr.bf16.mxu0 0
    %4352 = vmatpush2.bf16.msra.mxu0 %v3385
    %4353 = vmatprep.subr.bf16.mxu0 0
    %4354 = vmatpush2.bf16.msra.mxu0 %v3384
    %4355 = vmatprep.mubr.bf16.mxu0 %v2688
    %4356 = vmatmul.mubr.bf16.gmra.mxu0 %v2687
    %v4357 = vpop.f32.mrf.mxu0
    %v4358 = vadd.f32 %v4069, %v4357
    %v4359 = vpop.f32.mrf.mxu0
    %v4360 = vpop.f32.mrf.mxu0
    %v4361 = vadd.f32 %v4072, %v4360
    %v4362 = vpop.f32.mrf.mxu0
    %4363 = vmatprep.mubr.bf16.mxu0 %v2696
    %4364 = vmatmul.mubr.bf16.gmra.mxu0 %v2695
    %v4365 = vpop.f32.mrf.mxu0
    %v4366 = vadd.f32 %v4077, %v4365
    %v4367 = vpop.f32.mrf.mxu0
    %v4368 = vpop.f32.mrf.mxu0
    %v4369 = vadd.f32 %v4080, %v4368
    %v4370 = vpop.f32.mrf.mxu0
    %4371 = vmatprep.mubr.bf16.mxu0 %v2704
    %4372 = vmatmul.mubr.bf16.gmra.mxu0 %v2703
    %v4373 = vpop.f32.mrf.mxu0
    %v4374 = vadd.f32 %v4085, %v4373
    %v4375 = vpop.f32.mrf.mxu0
    %v4376 = vpop.f32.mrf.mxu0
    %v4377 = vadd.f32 %v4088, %v4376
    %v4378 = vpop.f32.mrf.mxu0
    %4379 = vmatprep.mubr.bf16.mxu0 %v2712
    %4380 = vmatmul.mubr.bf16.gmra.mxu0 %v2711
    %v4381 = vpop.f32.mrf.mxu0
    %v4382 = vadd.f32 %v4093, %v4381
    %v4383 = vpop.f32.mrf.mxu0
    %v4384 = vpop.f32.mrf.mxu0
    %v4385 = vadd.f32 %v4096, %v4384
    %v4386 = vpop.f32.mrf.mxu0
    %4387 = vmatprep.mubr.bf16.mxu0 %v2720
    %4388 = vmatmul.mubr.bf16.gmra.mxu0 %v2719
    %v4389 = vpop.f32.mrf.mxu0
    %v4390 = vadd.f32 %v4101, %v4389
    %v4391 = vpop.f32.mrf.mxu0
    %v4392 = vpop.f32.mrf.mxu0
    %v4393 = vadd.f32 %v4104, %v4392
    %v4394 = vpop.f32.mrf.mxu0
    %4395 = vmatprep.mubr.bf16.mxu0 %v2728
    %4396 = vmatmul.mubr.bf16.gmra.mxu0 %v2727
    %v4397 = vpop.f32.mrf.mxu0
    %v4398 = vadd.f32 %v4109, %v4397
    %v4399 = vpop.f32.mrf.mxu0
    %v4400 = vpop.f32.mrf.mxu0
    %v4401 = vadd.f32 %v4112, %v4400
    %v4402 = vpop.f32.mrf.mxu0
    %4403 = vmatprep.mubr.bf16.mxu0 %v2736
    %4404 = vmatmul.mubr.bf16.gmra.mxu0 %v2735
    %v4405 = vpop.f32.mrf.mxu0
    %v4406 = vadd.f32 %v4117, %v4405
    %v4407 = vpop.f32.mrf.mxu0
    %v4408 = vpop.f32.mrf.mxu0
    %v4409 = vadd.f32 %v4120, %v4408
    %v4410 = vpop.f32.mrf.mxu0
    %4411 = vmatprep.mubr.bf16.mxu0 %v2744
    %4412 = vmatmul.mubr.bf16.gmra.mxu0 %v2743
    %v4413 = vpop.f32.mrf.mxu0
    %v4414 = vadd.f32 %v4125, %v4413
    %v4415 = vpop.f32.mrf.mxu0
    %v4416 = vpop.f32.mrf.mxu0
    %v4417 = vadd.f32 %v4128, %v4416
    %v4418 = vpop.f32.mrf.mxu0
    %4419 = vmatprep.mubr.bf16.mxu0 %v2752
    %4420 = vmatmul.mubr.bf16.gmra.mxu0 %v2751
    %v4421 = vpop.f32.mrf.mxu0
    %v4422 = vadd.f32 %v4133, %v4421
    %v4423 = vpop.f32.mrf.mxu0
    %v4424 = vpop.f32.mrf.mxu0
    %v4425 = vadd.f32 %v4136, %v4424
    %v4426 = vpop.f32.mrf.mxu0
    %4427 = vmatprep.mubr.bf16.mxu0 %v2760
    %4428 = vmatmul.mubr.bf16.gmra.mxu0 %v2759
    %v4429 = vpop.f32.mrf.mxu0
    %v4430 = vadd.f32 %v4141, %v4429
    %v4431 = vpop.f32.mrf.mxu0
    %v4432 = vpop.f32.mrf.mxu0
    %v4433 = vadd.f32 %v4144, %v4432
    %v4434 = vpop.f32.mrf.mxu0
    %4435 = vmatprep.mubr.bf16.mxu0 %v2768
    %4436 = vmatmul.mubr.bf16.gmra.mxu0 %v2767
    %v4437 = vpop.f32.mrf.mxu0
    %v4438 = vadd.f32 %v4149, %v4437
    %v4439 = vpop.f32.mrf.mxu0
    %v4440 = vpop.f32.mrf.mxu0
    %v4441 = vadd.f32 %v4152, %v4440
    %v4442 = vpop.f32.mrf.mxu0
    %4443 = vmatprep.mubr.bf16.mxu0 %v2776
    %4444 = vmatmul.mubr.bf16.gmra.mxu0 %v2775
    %v4445 = vpop.f32.mrf.mxu0
    %v4446 = vadd.f32 %v4157, %v4445
    %v4447 = vpop.f32.mrf.mxu0
    %v4448 = vpop.f32.mrf.mxu0
    %v4449 = vadd.f32 %v4160, %v4448
    %v4450 = vpop.f32.mrf.mxu0
    %4451 = vmatprep.mubr.bf16.mxu0 %v2784
    %4452 = vmatmul.mubr.bf16.gmra.mxu0 %v2783
    %v4453 = vpop.f32.mrf.mxu0
    %v4454 = vadd.f32 %v4165, %v4453
    %v4455 = vpop.f32.mrf.mxu0
    %v4456 = vpop.f32.mrf.mxu0
    %v4457 = vadd.f32 %v4168, %v4456
    %v4458 = vpop.f32.mrf.mxu0
    %4459 = vmatprep.mubr.bf16.mxu0 %v2792
    %4460 = vmatmul.mubr.bf16.gmra.mxu0 %v2791
    %v4461 = vpop.f32.mrf.mxu0
    %v4462 = vadd.f32 %v4173, %v4461
    %v4463 = vpop.f32.mrf.mxu0
    %v4464 = vpop.f32.mrf.mxu0
    %v4465 = vadd.f32 %v4176, %v4464
    %v4466 = vpop.f32.mrf.mxu0
    %4467 = vmatprep.mubr.bf16.mxu0 %v2800
    %4468 = vmatmul.mubr.bf16.gmra.mxu0 %v2799
    %v4469 = vpop.f32.mrf.mxu0
    %v4470 = vadd.f32 %v4181, %v4469
    %v4471 = vpop.f32.mrf.mxu0
    %v4472 = vpop.f32.mrf.mxu0
    %v4473 = vadd.f32 %v4184, %v4472
    %v4474 = vpop.f32.mrf.mxu0
    %4475 = vmatprep.mubr.bf16.mxu0 %v2808
    %4476 = vmatmul.mubr.bf16.gmra.mxu0 %v2807
    %v4477 = vpop.f32.mrf.mxu0
    %v4478 = vadd.f32 %v4189, %v4477
    %v4479 = vpop.f32.mrf.mxu0
    %v4480 = vpop.f32.mrf.mxu0
    %v4481 = vadd.f32 %v4192, %v4480
    %v4482 = vpop.f32.mrf.mxu0
    %4483 = vmatprep.mubr.bf16.mxu0 %v2816
    %4484 = vmatmul.mubr.bf16.gmra.mxu0 %v2815
    %v4485 = vpop.f32.mrf.mxu0
    %v4486 = vadd.f32 %v4197, %v4485
    %v4487 = vpop.f32.mrf.mxu0
    %v4488 = vpop.f32.mrf.mxu0
    %v4489 = vadd.f32 %v4200, %v4488
    %v4490 = vpop.f32.mrf.mxu0
    %4491 = vmatprep.mubr.bf16.mxu0 %v2824
    %4492 = vmatmul.mubr.bf16.gmra.mxu0 %v2823
    %v4493 = vpop.f32.mrf.mxu0
    %v4494 = vadd.f32 %v4205, %v4493
    %v4495 = vpop.f32.mrf.mxu0
    %v4496 = vpop.f32.mrf.mxu0
    %v4497 = vadd.f32 %v4208, %v4496
    %v4498 = vpop.f32.mrf.mxu0
    %4499 = vmatprep.mubr.bf16.mxu0 %v2832
    %4500 = vmatmul.mubr.bf16.gmra.mxu0 %v2831
    %v4501 = vpop.f32.mrf.mxu0
    %v4502 = vadd.f32 %v4213, %v4501
    %v4503 = vpop.f32.mrf.mxu0
    %v4504 = vpop.f32.mrf.mxu0
    %v4505 = vadd.f32 %v4216, %v4504
    %v4506 = vpop.f32.mrf.mxu0
    %4507 = vmatprep.mubr.bf16.mxu0 %v2840
    %4508 = vmatmul.mubr.bf16.gmra.mxu0 %v2839
    %v4509 = vpop.f32.mrf.mxu0
    %v4510 = vadd.f32 %v4221, %v4509
    %v4511 = vpop.f32.mrf.mxu0
    %v4512 = vpop.f32.mrf.mxu0
    %v4513 = vadd.f32 %v4224, %v4512
    %v4514 = vpop.f32.mrf.mxu0
    %4515 = vmatprep.mubr.bf16.mxu0 %v2848
    %4516 = vmatmul.mubr.bf16.gmra.mxu0 %v2847
    %v4517 = vpop.f32.mrf.mxu0
    %v4518 = vadd.f32 %v4229, %v4517
    %v4519 = vpop.f32.mrf.mxu0
    %v4520 = vpop.f32.mrf.mxu0
    %v4521 = vadd.f32 %v4232, %v4520
    %v4522 = vpop.f32.mrf.mxu0
    %4523 = vmatprep.mubr.bf16.mxu0 %v2856
    %4524 = vmatmul.mubr.bf16.gmra.mxu0 %v2855
    %v4525 = vpop.f32.mrf.mxu0
    %v4526 = vadd.f32 %v4237, %v4525
    %v4527 = vpop.f32.mrf.mxu0
    %v4528 = vpop.f32.mrf.mxu0
    %v4529 = vadd.f32 %v4240, %v4528
    %v4530 = vpop.f32.mrf.mxu0
    %4531 = vmatprep.mubr.bf16.mxu0 %v2864
    %4532 = vmatmul.mubr.bf16.gmra.mxu0 %v2863
    %v4533 = vpop.f32.mrf.mxu0
    %v4534 = vadd.f32 %v4245, %v4533
    %v4535 = vpop.f32.mrf.mxu0
    %v4536 = vpop.f32.mrf.mxu0
    %v4537 = vadd.f32 %v4248, %v4536
    %v4538 = vpop.f32.mrf.mxu0
    %4539 = vmatprep.mubr.bf16.mxu0 %v2872
    %4540 = vmatmul.mubr.bf16.gmra.mxu0 %v2871
    %v4541 = vpop.f32.mrf.mxu0
    %v4542 = vadd.f32 %v4253, %v4541
    %v4543 = vpop.f32.mrf.mxu0
    %v4544 = vpop.f32.mrf.mxu0
    %v4545 = vadd.f32 %v4256, %v4544
    %v4546 = vpop.f32.mrf.mxu0
    %4547 = vmatprep.mubr.bf16.mxu0 %v2880
    %4548 = vmatmul.mubr.bf16.gmra.mxu0 %v2879
    %v4549 = vpop.f32.mrf.mxu0
    %v4550 = vadd.f32 %v4261, %v4549
    %v4551 = vpop.f32.mrf.mxu0
    %v4552 = vpop.f32.mrf.mxu0
    %v4553 = vadd.f32 %v4264, %v4552
    %v4554 = vpop.f32.mrf.mxu0
    %4555 = vmatprep.mubr.bf16.mxu0 %v2888
    %4556 = vmatmul.mubr.bf16.gmra.mxu0 %v2887
    %v4557 = vpop.f32.mrf.mxu0
    %v4558 = vadd.f32 %v4269, %v4557
    %v4559 = vpop.f32.mrf.mxu0
    %v4560 = vpop.f32.mrf.mxu0
    %v4561 = vadd.f32 %v4272, %v4560
    %v4562 = vpop.f32.mrf.mxu0
    %4563 = vmatprep.mubr.bf16.mxu0 %v2896
    %4564 = vmatmul.mubr.bf16.gmra.mxu0 %v2895
    %v4565 = vpop.f32.mrf.mxu0
    %v4566 = vadd.f32 %v4277, %v4565
    %v4567 = vpop.f32.mrf.mxu0
    %v4568 = vpop.f32.mrf.mxu0
    %v4569 = vadd.f32 %v4280, %v4568
    %v4570 = vpop.f32.mrf.mxu0
    %4571 = vmatprep.mubr.bf16.mxu0 %v2904
    %4572 = vmatmul.mubr.bf16.gmra.mxu0 %v2903
    %v4573 = vpop.f32.mrf.mxu0
    %v4574 = vadd.f32 %v4285, %v4573
    %v4575 = vpop.f32.mrf.mxu0
    %v4576 = vpop.f32.mrf.mxu0
    %v4577 = vadd.f32 %v4288, %v4576
    %v4578 = vpop.f32.mrf.mxu0
    %4579 = vmatprep.mubr.bf16.mxu0 %v2912
    %4580 = vmatmul.mubr.bf16.gmra.mxu0 %v2911
    %v4581 = vpop.f32.mrf.mxu0
    %v4582 = vadd.f32 %v4293, %v4581
    %v4583 = vpop.f32.mrf.mxu0
    %v4584 = vpop.f32.mrf.mxu0
    %v4585 = vadd.f32 %v4296, %v4584
    %v4586 = vpop.f32.mrf.mxu0
    %4587 = vmatprep.mubr.bf16.mxu0 %v2920
    %4588 = vmatmul.mubr.bf16.gmra.mxu0 %v2919
    %v4589 = vpop.f32.mrf.mxu0
    %v4590 = vadd.f32 %v4301, %v4589
    %v4591 = vpop.f32.mrf.mxu0
    %v4592 = vpop.f32.mrf.mxu0
    %v4593 = vadd.f32 %v4304, %v4592
    %v4594 = vpop.f32.mrf.mxu0
    %4595 = vmatprep.mubr.bf16.mxu0 %v2928
    %4596 = vmatmul.mubr.bf16.gmra.mxu0 %v2927
    %v4597 = vpop.f32.mrf.mxu0
    %v4598 = vadd.f32 %v4309, %v4597
    %v4599 = vpop.f32.mrf.mxu0
    %v4600 = vpop.f32.mrf.mxu0
    %v4601 = vadd.f32 %v4312, %v4600
    %v4602 = vpop.f32.mrf.mxu0
    %4603 = vmatprep.mubr.bf16.mxu0 %v2936
    %4604 = vmatmul.mubr.bf16.gmra.mxu0 %v2935
    %v4605 = vpop.f32.mrf.mxu0
    %v4606 = vadd.f32 %v4317, %v4605
    %v4607 = vpop.f32.mrf.mxu0
    %v4608 = vpop.f32.mrf.mxu0
    %v4609 = vadd.f32 %v4320, %v4608
    %v4610 = vpop.f32.mrf.mxu0
    %4611 = vdwg.mxu0
    %4612 = vst [vmem:[#allocation10] sm:$0xff] %v4358
    %4613 = vst [vmem:[#allocation10 + $0x8] sm:$0xff] %v4361
    %4614 = vst [vmem:[#allocation10 + $0x10] sm:$0xff] %v4366
    %4615 = vst [vmem:[#allocation10 + $0x18] sm:$0xff] %v4369
    %4616 = vst [vmem:[#allocation10 + $0x20] sm:$0xff] %v4374
    %4617 = vst [vmem:[#allocation10 + $0x28] sm:$0xff] %v4377
    %4618 = vst [vmem:[#allocation10 + $0x30] sm:$0xff] %v4382
    %4619 = vst [vmem:[#allocation10 + $0x38] sm:$0xff] %v4385
    %4620 = vst [vmem:[#allocation10 + $0x40] sm:$0xff] %v4390
    %4621 = vst [vmem:[#allocation10 + $0x48] sm:$0xff] %v4393
    %4622 = vst [vmem:[#allocation10 + $0x50] sm:$0xff] %v4398
    %4623 = vst [vmem:[#allocation10 + $0x58] sm:$0xff] %v4401
    %4624 = vst [vmem:[#allocation10 + $0x60] sm:$0xff] %v4406
    %4625 = vst [vmem:[#allocation10 + $0x68] sm:$0xff] %v4409
    %4626 = vst [vmem:[#allocation10 + $0x70] sm:$0xff] %v4414
    %4627 = vst [vmem:[#allocation10 + $0x78] sm:$0xff] %v4417
    %4628 = vst [vmem:[#allocation10 + $0x80] sm:$0xff] %v4422
    %4629 = vst [vmem:[#allocation10 + $0x88] sm:$0xff] %v4425
    %4630 = vst [vmem:[#allocation10 + $0x90] sm:$0xff] %v4430
    %4631 = vst [vmem:[#allocation10 + $0x98] sm:$0xff] %v4433
    %4632 = vst [vmem:[#allocation10 + $0xa0] sm:$0xff] %v4438
    %4633 = vst [vmem:[#allocation10 + $0xa8] sm:$0xff] %v4441
    %4634 = vst [vmem:[#allocation10 + $0xb0] sm:$0xff] %v4446
    %4635 = vst [vmem:[#allocation10 + $0xb8] sm:$0xff] %v4449
    %4636 = vst [vmem:[#allocation10 + $0xc0] sm:$0xff] %v4454
    %4637 = vst [vmem:[#allocation10 + $0xc8] sm:$0xff] %v4457
    %4638 = vst [vmem:[#allocation10 + $0xd0] sm:$0xff] %v4462
    %4639 = vst [vmem:[#allocation10 + $0xd8] sm:$0xff] %v4465
    %4640 = vst [vmem:[#allocation10 + $0xe0] sm:$0xff] %v4470
    %4641 = vst [vmem:[#allocation10 + $0xe8] sm:$0xff] %v4473
    %4642 = vst [vmem:[#allocation10 + $0xf0] sm:$0xff] %v4478
    %4643 = vst [vmem:[#allocation10 + $0xf8] sm:$0xff] %v4481
    %4644 = vst [vmem:[#allocation10 + $0x100] sm:$0xff] %v4486
    %4645 = vst [vmem:[#allocation10 + $0x108] sm:$0xff] %v4489
    %4646 = vst [vmem:[#allocation10 + $0x110] sm:$0xff] %v4494
    %4647 = vst [vmem:[#allocation10 + $0x118] sm:$0xff] %v4497
    %4648 = vst [vmem:[#allocation10 + $0x120] sm:$0xff] %v4502
    %4649 = vst [vmem:[#allocation10 + $0x128] sm:$0xff] %v4505
    %4650 = vst [vmem:[#allocation10 + $0x130] sm:$0xff] %v4510
    %4651 = vst [vmem:[#allocation10 + $0x138] sm:$0xff] %v4513
    %4652 = vst [vmem:[#allocation10 + $0x140] sm:$0xff] %v4518
    %4653 = vst [vmem:[#allocation10 + $0x148] sm:$0xff] %v4521
    %4654 = vst [vmem:[#allocation10 + $0x150] sm:$0xff] %v4526
    %4655 = vst [vmem:[#allocation10 + $0x158] sm:$0xff] %v4529
    %4656 = vst [vmem:[#allocation10 + $0x160] sm:$0xff] %v4534
    %4657 = vst [vmem:[#allocation10 + $0x168] sm:$0xff] %v4537
    %4658 = vst [vmem:[#allocation10 + $0x170] sm:$0xff] %v4542
    %4659 = vst [vmem:[#allocation10 + $0x178] sm:$0xff] %v4545
    %4660 = vst [vmem:[#allocation10 + $0x180] sm:$0xff] %v4550
    %4661 = vst [vmem:[#allocation10 + $0x188] sm:$0xff] %v4553
    %4662 = vst [vmem:[#allocation10 + $0x190] sm:$0xff] %v4558
    %4663 = vst [vmem:[#allocation10 + $0x198] sm:$0xff] %v4561
    %4664 = vst [vmem:[#allocation10 + $0x1a0] sm:$0xff] %v4566
    %4665 = vst [vmem:[#allocation10 + $0x1a8] sm:$0xff] %v4569
    %4666 = vst [vmem:[#allocation10 + $0x1b0] sm:$0xff] %v4574
    %4667 = vst [vmem:[#allocation10 + $0x1b8] sm:$0xff] %v4577
    %4668 = vst [vmem:[#allocation10 + $0x1c0] sm:$0xff] %v4582
    %4669 = vst [vmem:[#allocation10 + $0x1c8] sm:$0xff] %v4585
    %4670 = vst [vmem:[#allocation10 + $0x1d0] sm:$0xff] %v4590
    %4671 = vst [vmem:[#allocation10 + $0x1d8] sm:$0xff] %v4593
    %4672 = vst [vmem:[#allocation10 + $0x1e0] sm:$0xff] %v4598
    %4673 = vst [vmem:[#allocation10 + $0x1e8] sm:$0xff] %v4601
    %4674 = vst [vmem:[#allocation10 + $0x1f0] sm:$0xff] %v4606
    %4675 = vst [vmem:[#allocation10 + $0x1f8] sm:$0xff] %v4609
    // Predicated region
    $region38: #{tpu_custom_call.1} parent=1 // pred_check
      _
    $region39: #{tpu_custom_call.1} parent=1 // pred_check_branch
      %4677 = sbr.rel (0) target = $region41
    $region40: #{tpu_custom_call.1} parent=1 // pred_region
      %s4679 = ssub.s32 8192, 8192
      %4680 = vsyncadd [#allocation4], %s4679
      %s4681 = sshll.u32 [#allocation10], 4
      %s4682 = int_to_ptr.vmem [resolvable:$true] %s4681
      %4687 = dma.vmem_to_hbm [thread:$0]  %s4682, 8192, %s5, [#allocation4], 128, 128, 8
    $region41: #{tpu_custom_call.1} parent=1 // pred_fallthru
      _
    // Predicated region
    $region42: #{tpu_custom_call.1} parent=1 // pred_check
      _
    $region43: #{tpu_custom_call.1} parent=1 // pred_check_branch
      %4689 = sbr.rel (0) target = $region45
    $region44: #{tpu_custom_call.1} parent=1 // pred_region
      %4690 = dma.done [#allocation4], 8192
    $region45: #{tpu_custom_call.1} parent=1 // pred_fallthru
      _
    %4691 = vsyncpa [#allocation3], 1
    %4692 = vsyncpa [#allocation6], 1
    %4693 = vsyncpa [#allocation9], 1
    %4694 = vsyncpa [#allocation4], 1

</llo_original>
